<compile_context>
chip_gen: v7x
topology: tpu7x:2x2x1
jax: 0.10.0
libtpu: 0.0.40
codegen_flags: <defaults>
</compile_context>

<pallas_src>
import math
import functools

import jax
import jax.numpy as jnp
from jax.experimental import pallas as pl
from jax.experimental.pallas import tpu as pltpu


# ----------------------------- Pallas kernel --------------------------------

def encoder_stack_kernel(x_ref,
                         wq_ref, bq_ref, wk_ref, bk_ref, wv_ref, bv_ref,
                         wo_ref, bo_ref,
                         g1_ref, be1_ref,
                         w1_ref, b1_ref, w2_ref, b2_ref,
                         g2_ref, be2_ref,
                         o_ref,
                         carry_ref,
                         *, heads, seq):
    layer = pl.program_id(1)

    # First layer for this row block: load the input rows into the f32 carry.
    @pl.when(layer == 0)
    def _():
        carry_ref[...] = x_ref[...].astype(jnp.float32)

    x = carry_ref[...]                       # (N, D) f32, N = batch_block*seq
    N, D = x.shape
    H = heads
    Dh = wq_ref.shape[2]
    cd = wq_ref.dtype                        # MXU operand dtype (f32 or bf16)
    scale = 1.0 / math.sqrt(Dh)

    xc = x.astype(cd)
    xh = jnp.broadcast_to(xc, (H, N, D))     # heads become a leading batch dim

    # ---- Multi-head attention (head-batched dot_generals) -------------------
    q = jnp.einsum('hnd,hde->hne', xh, wq_ref[...],
                   preferred_element_type=jnp.float32) + bq_ref[...]
    k = jnp.einsum('hnd,hde->hne', xh, wk_ref[...],
                   preferred_element_type=jnp.float32) + bk_ref[...]
    v = jnp.einsum('hnd,hde->hne', xh, wv_ref[...],
                   preferred_element_type=jnp.float32) + bv_ref[...]

    s = jnp.einsum('hqe,hke->hqk', q.astype(cd), k.astype(cd),
                   preferred_element_type=jnp.float32) * scale   # (H, N, N)

    if N != seq:
        # Multiple sequences packed in this row block: block-diagonal mask.
        row_b = jax.lax.broadcasted_iota(jnp.int32, (N, N), 0) // seq
        col_b = jax.lax.broadcasted_iota(jnp.int32, (N, N), 1) // seq
        s = jnp.where((row_b == col_b)[None, :, :], s, -1e30)

    s = s - jnp.max(s, axis=-1, keepdims=True)
    p = jnp.exp(s)
    p = p * pl.reciprocal(jnp.sum(p, axis=-1, keepdims=True), approx=True)

    ctx = jnp.einsum('hqk,hke->hqe', p.astype(cd), v.astype(cd),
                     preferred_element_type=jnp.float32)          # (H, N, Dh)

    # Per-head output projection summed over heads == concat(heads) @ Wo.
    mo = jnp.einsum('hne,hed->hnd', ctx.astype(cd), wo_ref[...],
                    preferred_element_type=jnp.float32)           # (H, N, D)
    mha = jnp.sum(mo, axis=0) + bo_ref[...]                       # (N, D)

    # ---- residual + LayerNorm 1 ---------------------------------------------
    y = x + mha
    mu = jnp.mean(y, axis=-1, keepdims=True)
    var = jnp.mean((y - mu) ** 2, axis=-1, keepdims=True)
    y = (y - mu) * jax.lax.rsqrt(var + 1e-5) * g1_ref[...] + be1_ref[...]

    # ---- MLP (dropout = identity, eval-mode semantics) ----------------------
    h1 = jnp.dot(y.astype(cd), w1_ref[...],
                 preferred_element_type=jnp.float32) + b1_ref[...]
    h1 = jnp.maximum(h1, 0.0)
    m = jnp.dot(h1.astype(cd), w2_ref[...],
                preferred_element_type=jnp.float32) + b2_ref[...]

    # ---- residual + LayerNorm 2 ---------------------------------------------
    z = y + m
    mu2 = jnp.mean(z, axis=-1, keepdims=True)
    var2 = jnp.mean((z - mu2) ** 2, axis=-1, keepdims=True)
    out = (z - mu2) * jax.lax.rsqrt(var2 + 1e-5) * g2_ref[...] + be2_ref[...]

    carry_ref[...] = out                      # feed next layer

    @pl.when(layer == pl.num_programs(1) - 1)
    def _():
        o_ref[...] = out.astype(o_ref.dtype)


# ------------------------------ wrapper --------------------------------------

def _prepare_stacked_params(all_params, heads, compute_dtype):
    """Stack per-layer weights and pre-split Q/K/V/O into per-head layouts."""
    D = all_params[0]["wq"].shape[0]
    Dh = D // heads

    def ph_in(w):    # (D, D) -> (H, D, Dh): head h uses columns h*Dh:(h+1)*Dh
        return w.reshape(D, heads, Dh).transpose(1, 0, 2)

    def ph_bias(b):  # (1, D) -> (H, 1, Dh)
        return b.reshape(heads, Dh)[:, None, :]

    def ph_out(w):   # (D, D) -> (H, Dh, D): head h uses rows h*Dh:(h+1)*Dh
        return w.reshape(heads, Dh, D)

    def stack(fn, name, dtype):
        return jnp.stack([fn(p[name]) for p in all_params]).astype(dtype)

    ident = lambda a: a
    return {
        "wq": stack(ph_in, "wq", compute_dtype), "bq": stack(ph_bias, "bq", jnp.float32),
        "wk": stack(ph_in, "wk", compute_dtype), "bk": stack(ph_bias, "bk", jnp.float32),
        "wv": stack(ph_in, "wv", compute_dtype), "bv": stack(ph_bias, "bv", jnp.float32),
        "wo": stack(ph_out, "wo", compute_dtype), "bo": stack(ident, "bo", jnp.float32),
        "g1": stack(ident, "g1", jnp.float32), "be1": stack(ident, "be1", jnp.float32),
        "w1": stack(ident, "w1", compute_dtype), "b1": stack(ident, "b1", jnp.float32),
        "w2": stack(ident, "w2", compute_dtype), "b2": stack(ident, "b2", jnp.float32),
        "g2": stack(ident, "g2", jnp.float32), "be2": stack(ident, "be2", jnp.float32),
    }


def transformer_encoder_pallas(x, all_params, heads, *,
                               compute_dtype=jnp.float32, batch_block=None):
    """x: (B, S, D) float32.  all_params: list of per-layer weight dicts."""
    B, S, D = x.shape
    L = len(all_params)
    mlp_dim = all_params[0]["w1"].shape[1]
    assert D % heads == 0, "input_dim must be divisible by heads"
    Dh = D // heads

    if batch_block is None:
        batch_block = B            # fold the whole batch into one row block
    assert B % batch_block == 0
    rows = batch_block * S
    assert rows == B * S or rows % 8 == 0, "row block must be sublane aligned"
    nb = B // batch_block

    sp = _prepare_stacked_params(all_params, heads, compute_dtype)
    x2 = x.reshape(B * S, D).astype(compute_dtype)

    def wspec(shape):
        nd = len(shape)
        return pl.BlockSpec((None,) + shape, lambda i, l, _n=nd: (l,) + (0,) * _n)

    in_specs = [
        pl.BlockSpec((rows, D), lambda i, l: (i, 0)),      # x rows
        wspec((heads, D, Dh)), wspec((heads, 1, Dh)),      # Wq, bq
        wspec((heads, D, Dh)), wspec((heads, 1, Dh)),      # Wk, bk
        wspec((heads, D, Dh)), wspec((heads, 1, Dh)),      # Wv, bv
        wspec((heads, Dh, D)), wspec((1, D)),              # Wo, bo
        wspec((1, D)), wspec((1, D)),                      # ln1 gamma, beta
        wspec((D, mlp_dim)), wspec((1, mlp_dim)),          # W1, b1
        wspec((mlp_dim, D)), wspec((1, D)),                # W2, b2
        wspec((1, D)), wspec((1, D)),                      # ln2 gamma, beta
    ]

    out = pl.pallas_call(
        functools.partial(encoder_stack_kernel, heads=heads, seq=S),
        out_shape=jax.ShapeDtypeStruct((B * S, D), jnp.float32),
        grid=(nb, L),
        in_specs=in_specs,
        out_specs=pl.BlockSpec((rows, D), lambda i, l: (i, 0)),
        scratch_shapes=[pltpu.VMEM((rows, D), jnp.float32)],
        compiler_params=pltpu.CompilerParams(
            dimension_semantics=("parallel", "arbitrary"),
            vmem_limit_bytes=48 * 1024 * 1024),
    )(x2,
      sp["wq"], sp["bq"], sp["wk"], sp["bk"], sp["wv"], sp["bv"],
      sp["wo"], sp["bo"], sp["g1"], sp["be1"],
      sp["w1"], sp["b1"], sp["w2"], sp["b2"], sp["g2"], sp["be2"])

    return out.reshape(B, S, D)


# --------------------------- pure-JAX reference -------------------------------

def encoder_block_ref(x, p, heads):
    B, S, D = x.shape
    Dh = D // heads
    q = x @ p["wq"] + p["bq"]
    k = x @ p["wk"] + p["bk"]
    v = x @ p["wv"] + p["bv"]
    q = q.reshape(B, S, heads, Dh).transpose(0, 2, 1, 3)
    k = k.reshape(B, S, heads, Dh).transpose(0, 2, 1, 3)
    v = v.reshape(B, S, heads, Dh).transpose(0, 2, 1, 3)
    s = jnp.einsum("bhqd,bhkd->bhqk", q, k) / math.sqrt(Dh)
    a = jax.nn.softmax(s, axis=-1)
    o = jnp.einsum("bhqk,bhkd->bhqd", a, v).transpose(0, 2, 1, 3).reshape(B, S, D)
    mha = o @ p["wo"] + p["bo"]

    def ln(t, g, b):
        mu = jnp.mean(t, -1, keepdims=True)
        var = jnp.mean((t - mu) ** 2, -1, keepdims=True)
        return (t - mu) * jax.lax.rsqrt(var + 1e-5) * g + b

    y = ln(x + mha, p["g1"], p["be1"])
    m = jnp.maximum(y @ p["w1"] + p["b1"], 0.0) @ p["w2"] + p["b2"]
    return ln(y + m, p["g2"], p["be2"])


def transformer_encoder_ref(x, all_params, heads):
    for p in all_params:
        x = encoder_block_ref(x, p, heads)
    return x


# ------------------------------ param init ------------------------------------

def init_block_params(key, dim, mlp_dim):
    ks = jax.random.split(key, 6)
    f = jnp.float32
    return {
        "wq": 0.05 * jax.random.normal(ks[0], (dim, dim), f),
        "bq": jnp.zeros((1, dim), f),
        "wk": 0.05 * jax.random.normal(ks[1], (dim, dim), f),
        "bk": jnp.zeros((1, dim), f),
        "wv": 0.05 * jax.random.normal(ks[2], (dim, dim), f),
        "bv": jnp.zeros((1, dim), f),
        "wo": 0.05 * jax.random.normal(ks[3], (dim, dim), f),
        "bo": jnp.zeros((1, dim), f),
        "g1": jnp.ones((1, dim), f),
        "be1": jnp.zeros((1, dim), f),
        "w1": 0.05 * jax.random.normal(ks[4], (dim, mlp_dim), f),
        "b1": jnp.zeros((1, mlp_dim), f),
        "w2": 0.05 * jax.random.normal(ks[5], (mlp_dim, dim), f),
        "b2": jnp.zeros((1, dim), f),
        "g2": jnp.ones((1, dim), f),
        "be2": jnp.zeros((1, dim), f),
    }


# ---------------------------------- main ---------------------------------------

if __name__ == "__main__":
    N_loops, B, S, D, heads, mlp_dim = 2, 2, 8, 32, 4, 64

    root = jax.random.PRNGKey(0)
    kx, *kblocks = jax.random.split(root, N_loops + 1)
    x = jax.random.normal(kx, (B, S, D), jnp.float32)
    params = [init_block_params(k, D, mlp_dim) for k in kblocks]

    ref = transformer_encoder_ref(x, params, heads)

    # f32 path: one sequence per grid step -> 2 "parallel" steps (v7x megacore).
    out_f32 = transformer_encoder_pallas(x, params, heads,
                                         compute_dtype=jnp.float32,
                                         batch_block=1)
    out_f32 = jax.block_until_ready(out_f32)
    assert out_f32.shape == (B, S, D)
    assert jnp.allclose(out_f32, ref, rtol=1e-2, atol=1e-2), "f32 mismatch vs reference"

    # bf16 MXU path: whole batch folded into one row block (grid=(1, L)).
    out_bf16 = transformer_encoder_pallas(x, params, heads,
                                          compute_dtype=jnp.bfloat16,
                                          batch_block=B)
    out_bf16 = jax.block_until_ready(out_bf16)
    assert out_bf16.shape == (B, S, D)
    assert jnp.allclose(out_bf16, ref, rtol=1e-1, atol=1e-1), "bf16 mismatch vs reference"

    # TODO(synk): MultiHeadAttention class was not supplied in the source file;
    # standard scaled-dot-product MHA with in/out projections is assumed, and
    # dropout is treated as identity (eval-mode / p=0 semantics).
    # TODO(synk): for large S, swap the dense masked softmax for a flash-style
    # online-softmax with a KV grid axis; unnecessary at these shapes.
    print("KERNEL_OK")
</pallas_src>

<mosaic_0001>
module attributes {stable_mosaic.version = 11 : i64} {
  func.func @encoder_stack_kernel(%arg0: i32, %arg1: i32, %arg2: memref<8x32xf32, #tpu.memory_space<vmem>>, %arg3: memref<1x4x32x8xf32, #tpu.memory_space<vmem>>, %arg4: memref<1x4x1x8xf32, #tpu.memory_space<vmem>>, %arg5: memref<1x4x32x8xf32, #tpu.memory_space<vmem>>, %arg6: memref<1x4x1x8xf32, #tpu.memory_space<vmem>>, %arg7: memref<1x4x32x8xf32, #tpu.memory_space<vmem>>, %arg8: memref<1x4x1x8xf32, #tpu.memory_space<vmem>>, %arg9: memref<1x4x8x32xf32, #tpu.memory_space<vmem>>, %arg10: memref<1x1x32xf32, #tpu.memory_space<vmem>>, %arg11: memref<1x1x32xf32, #tpu.memory_space<vmem>>, %arg12: memref<1x1x32xf32, #tpu.memory_space<vmem>>, %arg13: memref<1x32x64xf32, #tpu.memory_space<vmem>>, %arg14: memref<1x1x64xf32, #tpu.memory_space<vmem>>, %arg15: memref<1x64x32xf32, #tpu.memory_space<vmem>>, %arg16: memref<1x1x32xf32, #tpu.memory_space<vmem>>, %arg17: memref<1x1x32xf32, #tpu.memory_space<vmem>>, %arg18: memref<1x1x32xf32, #tpu.memory_space<vmem>>, %arg19: memref<8x32xf32, #tpu.memory_space<vmem>>, %arg20: memref<8x32xf32, #tpu.memory_space<vmem>>) attributes {dimension_semantics = [#tpu.dimension_semantics<parallel>, #tpu.dimension_semantics<arbitrary>], iteration_bounds = array<i64: 2, 2>, scalar_prefetch = 0 : i64, scratch_operands = 1 : i64, tpu.core_type = #tpu.core_type<tc>, window_params = [{transform_indices = @transform_0, window_bounds = array<i64: 8, 32>}, {transform_indices = @transform_1, window_bounds = array<i64: 1, 4, 32, 8>}, {transform_indices = @transform_2, window_bounds = array<i64: 1, 4, 1, 8>}, {transform_indices = @transform_3, window_bounds = array<i64: 1, 4, 32, 8>}, {transform_indices = @transform_4, window_bounds = array<i64: 1, 4, 1, 8>}, {transform_indices = @transform_5, window_bounds = array<i64: 1, 4, 32, 8>}, {transform_indices = @transform_6, window_bounds = array<i64: 1, 4, 1, 8>}, {transform_indices = @transform_7, window_bounds = array<i64: 1, 4, 8, 32>}, {transform_indices = @transform_8, window_bounds = array<i64: 1, 1, 32>}, {transform_indices = @transform_9, window_bounds = array<i64: 1, 1, 32>}, {transform_indices = @transform_10, window_bounds = array<i64: 1, 1, 32>}, {transform_indices = @transform_11, window_bounds = array<i64: 1, 32, 64>}, {transform_indices = @transform_12, window_bounds = array<i64: 1, 1, 64>}, {transform_indices = @transform_13, window_bounds = array<i64: 1, 64, 32>}, {transform_indices = @transform_14, window_bounds = array<i64: 1, 1, 32>}, {transform_indices = @transform_15, window_bounds = array<i64: 1, 1, 32>}, {transform_indices = @transform_16, window_bounds = array<i64: 1, 1, 32>}, {transform_indices = @transform_17, window_bounds = array<i64: 8, 32>}]} {
    %c0_i32 = arith.constant 0 : i32
    %0 = arith.cmpi eq, %arg1, %c0_i32 : i32
    %1 = arith.extui %0 : i1 to i32
    %c0_i32_0 = arith.constant 0 : i32
    %2 = arith.cmpi ne, %1, %c0_i32_0 : i32
    scf.if %2 {
      %c0_82 = arith.constant 0 : index
      %c0_83 = arith.constant 0 : index
      %123 = vector.load %arg2[%c0_82, %c0_83] : memref<8x32xf32, #tpu.memory_space<vmem>>, vector<8x32xf32>
      %c0_84 = arith.constant 0 : index
      %c0_85 = arith.constant 0 : index
      %124 = vector.load %arg20[%c0_84, %c0_85] : memref<8x32xf32, #tpu.memory_space<vmem>>, vector<8x32xf32>
      tpu.vector_store %arg20[%c0_84, %c0_85], %123 {strides = array<i32>} : memref<8x32xf32, #tpu.memory_space<vmem>>, vector<8x32xf32>,
    } else {
    }
    %c0 = arith.constant 0 : index
    %c0_1 = arith.constant 0 : index
    %3 = vector.load %arg20[%c0, %c0_1] : memref<8x32xf32, #tpu.memory_space<vmem>>, vector<8x32xf32>
    %4 = vector.shape_cast %3 : vector<8x32xf32> to vector<1x8x32xf32>
    %5 = vector.broadcast %4 : vector<1x8x32xf32> to vector<4x8x32xf32>
    %c0_2 = arith.constant 0 : index
    %c0_3 = arith.constant 0 : index
    %c0_4 = arith.constant 0 : index
    %c0_5 = arith.constant 0 : index
    %6 = vector.load %arg3[%c0_2, %c0_3, %c0_4, %c0_5] : memref<1x4x32x8xf32, #tpu.memory_space<vmem>>, vector<1x4x32x8xf32>
    %7 = vector.shape_cast %6 : vector<1x4x32x8xf32> to vector<4x32x8xf32>
    "tpu.trace_start"() <{level = 10 : i32, message = "hnd,hde->hne"}> : () -> ()
    %cst = arith.constant dense<0.000000e+00> : vector<4x8x8xf32>
    %8 = tpu.matmul %5, %7, %cst {dimension_numbers = #tpu.dot_dimension_numbers<[2], [1], [1], [2], [0, 0, 0, 1, 1, 2], [0], [0]>} : vector<4x8x32xf32>, vector<4x32x8xf32>, vector<4x8x8xf32> -> vector<4x8x8xf32>
    "tpu.trace_stop"() : () -> ()
    %c0_6 = arith.constant 0 : index
    %c0_7 = arith.constant 0 : index
    %c0_8 = arith.constant 0 : index
    %c0_9 = arith.constant 0 : index
    %9 = vector.load %arg4[%c0_6, %c0_7, %c0_8, %c0_9] : memref<1x4x1x8xf32, #tpu.memory_space<vmem>>, vector<1x4x1x8xf32>
    %10 = vector.shape_cast %9 : vector<1x4x1x8xf32> to vector<4x1x8xf32>
    %11 = vector.broadcast %10 : vector<4x1x8xf32> to vector<4x8x8xf32>
    %12 = arith.addf %8, %11 : vector<4x8x8xf32>
    %c0_10 = arith.constant 0 : index
    %c0_11 = arith.constant 0 : index
    %c0_12 = arith.constant 0 : index
    %c0_13 = arith.constant 0 : index
    %13 = vector.load %arg5[%c0_10, %c0_11, %c0_12, %c0_13] : memref<1x4x32x8xf32, #tpu.memory_space<vmem>>, vector<1x4x32x8xf32>
    %14 = vector.shape_cast %13 : vector<1x4x32x8xf32> to vector<4x32x8xf32>
    "tpu.trace_start"() <{level = 10 : i32, message = "hnd,hde->hne"}> : () -> ()
    %cst_14 = arith.constant dense<0.000000e+00> : vector<4x8x8xf32>
    %15 = tpu.matmul %5, %14, %cst_14 {dimension_numbers = #tpu.dot_dimension_numbers<[2], [1], [1], [2], [0, 0, 0, 1, 1, 2], [0], [0]>} : vector<4x8x32xf32>, vector<4x32x8xf32>, vector<4x8x8xf32> -> vector<4x8x8xf32>
    "tpu.trace_stop"() : () -> ()
    %c0_15 = arith.constant 0 : index
    %c0_16 = arith.constant 0 : index
    %c0_17 = arith.constant 0 : index
    %c0_18 = arith.constant 0 : index
    %16 = vector.load %arg6[%c0_15, %c0_16, %c0_17, %c0_18] : memref<1x4x1x8xf32, #tpu.memory_space<vmem>>, vector<1x4x1x8xf32>
    %17 = vector.shape_cast %16 : vector<1x4x1x8xf32> to vector<4x1x8xf32>
    %18 = vector.broadcast %17 : vector<4x1x8xf32> to vector<4x8x8xf32>
    %19 = arith.addf %15, %18 : vector<4x8x8xf32>
    %c0_19 = arith.constant 0 : index
    %c0_20 = arith.constant 0 : index
    %c0_21 = arith.constant 0 : index
    %c0_22 = arith.constant 0 : index
    %20 = vector.load %arg7[%c0_19, %c0_20, %c0_21, %c0_22] : memref<1x4x32x8xf32, #tpu.memory_space<vmem>>, vector<1x4x32x8xf32>
    %21 = vector.shape_cast %20 : vector<1x4x32x8xf32> to vector<4x32x8xf32>
    "tpu.trace_start"() <{level = 10 : i32, message = "hnd,hde->hne"}> : () -> ()
    %cst_23 = arith.constant dense<0.000000e+00> : vector<4x8x8xf32>
    %22 = tpu.matmul %5, %21, %cst_23 {dimension_numbers = #tpu.dot_dimension_numbers<[2], [1], [1], [2], [0, 0, 0, 1, 1, 2], [0], [0]>} : vector<4x8x32xf32>, vector<4x32x8xf32>, vector<4x8x8xf32> -> vector<4x8x8xf32>
    "tpu.trace_stop"() : () -> ()
    %c0_24 = arith.constant 0 : index
    %c0_25 = arith.constant 0 : index
    %c0_26 = arith.constant 0 : index
    %c0_27 = arith.constant 0 : index
    %23 = vector.load %arg8[%c0_24, %c0_25, %c0_26, %c0_27] : memref<1x4x1x8xf32, #tpu.memory_space<vmem>>, vector<1x4x1x8xf32>
    %24 = vector.shape_cast %23 : vector<1x4x1x8xf32> to vector<4x1x8xf32>
    %25 = vector.broadcast %24 : vector<4x1x8xf32> to vector<4x8x8xf32>
    %26 = arith.addf %22, %25 : vector<4x8x8xf32>
    "tpu.trace_start"() <{level = 10 : i32, message = "hqe,hke->hqk"}> : () -> ()
    %cst_28 = arith.constant dense<0.000000e+00> : vector<4x8x8xf32>
    %27 = tpu.matmul %12, %19, %cst_28 {dimension_numbers = #tpu.dot_dimension_numbers<[2], [2], [1], [1], [0, 0, 0, 1, 1, 1], [0], [0]>} : vector<4x8x8xf32>, vector<4x8x8xf32>, vector<4x8x8xf32> -> vector<4x8x8xf32>
    "tpu.trace_stop"() : () -> ()
    %cst_29 = arith.constant 0.353553385 : f32
    %28 = vector.broadcast %cst_29 : f32 to vector<4x8x8xf32>
    %29 = arith.mulf %27, %28 : vector<4x8x8xf32>
    %cst_30 = arith.constant dense<0xFF800000> : vector<4x8xf32>
    %30 = vector.multi_reduction <maximumf>, %29, %cst_30 [2] : vector<4x8x8xf32> to vector<4x8xf32>
    %31 = vector.shape_cast %30 : vector<4x8xf32> to vector<4x8x1xf32>
    %32 = vector.broadcast %31 : vector<4x8x1xf32> to vector<4x8x8xf32>
    %33 = arith.subf %29, %32 : vector<4x8x8xf32>
    %34 = math.exp %33 : vector<4x8x8xf32>
    %cst_31 = arith.constant dense<0.000000e+00> : vector<4x8xf32>
    %35 = vector.multi_reduction <add>, %34, %cst_31 [2] : vector<4x8x8xf32> to vector<4x8xf32>
    %36 = vector.shape_cast %35 : vector<4x8xf32> to vector<4x8x1xf32>
    %37 = tpu.reciprocal %36 {approx = true} : vector<4x8x1xf32> -> vector<4x8x1xf32>
    %38 = vector.broadcast %37 : vector<4x8x1xf32> to vector<4x8x8xf32>
    %39 = arith.mulf %34, %38 : vector<4x8x8xf32>
    "tpu.trace_start"() <{level = 10 : i32, message = "hqk,hke->hqe"}> : () -> ()
    %cst_32 = arith.constant dense<0.000000e+00> : vector<4x8x8xf32>
    %40 = tpu.matmul %39, %26, %cst_32 {dimension_numbers = #tpu.dot_dimension_numbers<[2], [1], [1], [2], [0, 0, 0, 1, 1, 2], [0], [0]>} : vector<4x8x8xf32>, vector<4x8x8xf32>, vector<4x8x8xf32> -> vector<4x8x8xf32>
    "tpu.trace_stop"() : () -> ()
    %c0_33 = arith.constant 0 : index
    %c0_34 = arith.constant 0 : index
    %c0_35 = arith.constant 0 : index
    %c0_36 = arith.constant 0 : index
    %41 = vector.load %arg9[%c0_33, %c0_34, %c0_35, %c0_36] : memref<1x4x8x32xf32, #tpu.memory_space<vmem>>, vector<1x4x8x32xf32>
    %42 = vector.shape_cast %41 : vector<1x4x8x32xf32> to vector<4x8x32xf32>
    "tpu.trace_start"() <{level = 10 : i32, message = "hne,hed->hnd"}> : () -> ()
    %cst_37 = arith.constant dense<0.000000e+00> : vector<4x8x32xf32>
    %43 = tpu.matmul %40, %42, %cst_37 {dimension_numbers = #tpu.dot_dimension_numbers<[2], [1], [1], [2], [0, 0, 0, 1, 1, 2], [0], [0]>} : vector<4x8x8xf32>, vector<4x8x32xf32>, vector<4x8x32xf32> -> vector<4x8x32xf32>
    "tpu.trace_stop"() : () -> ()
    %cst_38 = arith.constant dense<0.000000e+00> : vector<8x32xf32>
    %44 = vector.multi_reduction <add>, %43, %cst_38 [0] : vector<4x8x32xf32> to vector<8x32xf32>
    %c0_39 = arith.constant 0 : index
    %c0_40 = arith.constant 0 : index
    %c0_41 = arith.constant 0 : index
    %45 = vector.load %arg10[%c0_39, %c0_40, %c0_41] : memref<1x1x32xf32, #tpu.memory_space<vmem>>, vector<1x1x32xf32>
    %46 = vector.shape_cast %45 : vector<1x1x32xf32> to vector<1x32xf32>
    %47 = vector.broadcast %46 : vector<1x32xf32> to vector<8x32xf32>
    %48 = arith.addf %44, %47 : vector<8x32xf32>
    %49 = arith.addf %3, %48 : vector<8x32xf32>
    %cst_42 = arith.constant dense<0.000000e+00> : vector<8xf32>
    %50 = vector.multi_reduction <add>, %49, %cst_42 [1] : vector<8x32xf32> to vector<8xf32>
    %51 = vector.shape_cast %50 : vector<8xf32> to vector<8x1xf32>
    %cst_43 = arith.constant 3.200000e+01 : f32
    %52 = vector.broadcast %cst_43 : f32 to vector<8x1xf32>
    %53 = arith.divf %51, %52 : vector<8x1xf32>
    %54 = vector.broadcast %53 : vector<8x1xf32> to vector<8x32xf32>
    %55 = arith.subf %49, %54 : vector<8x32xf32>
    %56 = arith.mulf %55, %55 : vector<8x32xf32>
    %cst_44 = arith.constant dense<0.000000e+00> : vector<8xf32>
    %57 = vector.multi_reduction <add>, %56, %cst_44 [1] : vector<8x32xf32> to vector<8xf32>
    %58 = vector.shape_cast %57 : vector<8xf32> to vector<8x1xf32>
    %cst_45 = arith.constant 3.200000e+01 : f32
    %59 = vector.broadcast %cst_45 : f32 to vector<8x1xf32>
    %60 = arith.divf %58, %59 : vector<8x1xf32>
    %61 = vector.broadcast %53 : vector<8x1xf32> to vector<8x32xf32>
    %62 = arith.subf %49, %61 : vector<8x32xf32>
    %cst_46 = arith.constant 9.99999974E-6 : f32
    %63 = vector.broadcast %cst_46 : f32 to vector<8x1xf32>
    %64 = arith.addf %60, %63 : vector<8x1xf32>
    %65 = math.rsqrt %64 : vector<8x1xf32>
    %66 = vector.broadcast %65 : vector<8x1xf32> to vector<8x32xf32>
    %67 = arith.mulf %62, %66 : vector<8x32xf32>
    %c0_47 = arith.constant 0 : index
    %c0_48 = arith.constant 0 : index
    %c0_49 = arith.constant 0 : index
    %68 = vector.load %arg11[%c0_47, %c0_48, %c0_49] : memref<1x1x32xf32, #tpu.memory_space<vmem>>, vector<1x1x32xf32>
    %69 = vector.shape_cast %68 : vector<1x1x32xf32> to vector<1x32xf32>
    %70 = vector.broadcast %69 : vector<1x32xf32> to vector<8x32xf32>
    %71 = arith.mulf %67, %70 : vector<8x32xf32>
    %c0_50 = arith.constant 0 : index
    %c0_51 = arith.constant 0 : index
    %c0_52 = arith.constant 0 : index
    %72 = vector.load %arg12[%c0_50, %c0_51, %c0_52] : memref<1x1x32xf32, #tpu.memory_space<vmem>>, vector<1x1x32xf32>
    %73 = vector.shape_cast %72 : vector<1x1x32xf32> to vector<1x32xf32>
    %74 = vector.broadcast %73 : vector<1x32xf32> to vector<8x32xf32>
    %75 = arith.addf %71, %74 : vector<8x32xf32>
    %c0_53 = arith.constant 0 : index
    %c0_54 = arith.constant 0 : index
    %c0_55 = arith.constant 0 : index
    %76 = vector.load %arg13[%c0_53, %c0_54, %c0_55] : memref<1x32x64xf32, #tpu.memory_space<vmem>>, vector<1x32x64xf32>
    %77 = vector.shape_cast %76 : vector<1x32x64xf32> to vector<32x64xf32>
    %cst_56 = arith.constant dense<0.000000e+00> : vector<8x64xf32>
    %78 = tpu.matmul %75, %77, %cst_56 {dimension_numbers = #tpu.dot_dimension_numbers<[1], [0], [0], [1], [0, 0, 1, 1], [], []>} : vector<8x32xf32>, vector<32x64xf32>, vector<8x64xf32> -> vector<8x64xf32>
    %c0_57 = arith.constant 0 : index
    %c0_58 = arith.constant 0 : index
    %c0_59 = arith.constant 0 : index
    %79 = vector.load %arg14[%c0_57, %c0_58, %c0_59] : memref<1x1x64xf32, #tpu.memory_space<vmem>>, vector<1x1x64xf32>
    %80 = vector.shape_cast %79 : vector<1x1x64xf32> to vector<1x64xf32>
    %81 = vector.broadcast %80 : vector<1x64xf32> to vector<8x64xf32>
    %82 = arith.addf %78, %81 : vector<8x64xf32>
    %cst_60 = arith.constant 0.000000e+00 : f32
    %83 = vector.broadcast %cst_60 : f32 to vector<8x64xf32>
    %84 = arith.maximumf %82, %83 : vector<8x64xf32>
    %c0_61 = arith.constant 0 : index
    %c0_62 = arith.constant 0 : index
    %c0_63 = arith.constant 0 : index
    %85 = vector.load %arg15[%c0_61, %c0_62, %c0_63] : memref<1x64x32xf32, #tpu.memory_space<vmem>>, vector<1x64x32xf32>
    %86 = vector.shape_cast %85 : vector<1x64x32xf32> to vector<64x32xf32>
    %cst_64 = arith.constant dense<0.000000e+00> : vector<8x32xf32>
    %87 = tpu.matmul %84, %86, %cst_64 {dimension_numbers = #tpu.dot_dimension_numbers<[1], [0], [0], [1], [0, 0, 1, 1], [], []>} : vector<8x64xf32>, vector<64x32xf32>, vector<8x32xf32> -> vector<8x32xf32>
    %c0_65 = arith.constant 0 : index
    %c0_66 = arith.constant 0 : index
    %c0_67 = arith.constant 0 : index
    %88 = vector.load %arg16[%c0_65, %c0_66, %c0_67] : memref<1x1x32xf32, #tpu.memory_space<vmem>>, vector<1x1x32xf32>
    %89 = vector.shape_cast %88 : vector<1x1x32xf32> to vector<1x32xf32>
    %90 = vector.broadcast %89 : vector<1x32xf32> to vector<8x32xf32>
    %91 = arith.addf %87, %90 : vector<8x32xf32>
    %92 = arith.addf %75, %91 : vector<8x32xf32>
    %cst_68 = arith.constant dense<0.000000e+00> : vector<8xf32>
    %93 = vector.multi_reduction <add>, %92, %cst_68 [1] : vector<8x32xf32> to vector<8xf32>
    %94 = vector.shape_cast %93 : vector<8xf32> to vector<8x1xf32>
    %cst_69 = arith.constant 3.200000e+01 : f32
    %95 = vector.broadcast %cst_69 : f32 to vector<8x1xf32>
    %96 = arith.divf %94, %95 : vector<8x1xf32>
    %97 = vector.broadcast %96 : vector<8x1xf32> to vector<8x32xf32>
    %98 = arith.subf %92, %97 : vector<8x32xf32>
    %99 = arith.mulf %98, %98 : vector<8x32xf32>
    %cst_70 = arith.constant dense<0.000000e+00> : vector<8xf32>
    %100 = vector.multi_reduction <add>, %99, %cst_70 [1] : vector<8x32xf32> to vector<8xf32>
    %101 = vector.shape_cast %100 : vector<8xf32> to vector<8x1xf32>
    %cst_71 = arith.constant 3.200000e+01 : f32
    %102 = vector.broadcast %cst_71 : f32 to vector<8x1xf32>
    %103 = arith.divf %101, %102 : vector<8x1xf32>
    %104 = vector.broadcast %96 : vector<8x1xf32> to vector<8x32xf32>
    %105 = arith.subf %92, %104 : vector<8x32xf32>
    %cst_72 = arith.constant 9.99999974E-6 : f32
    %106 = vector.broadcast %cst_72 : f32 to vector<8x1xf32>
    %107 = arith.addf %103, %106 : vector<8x1xf32>
    %108 = math.rsqrt %107 : vector<8x1xf32>
    %109 = vector.broadcast %108 : vector<8x1xf32> to vector<8x32xf32>
    %110 = arith.mulf %105, %109 : vector<8x32xf32>
    %c0_73 = arith.constant 0 : index
    %c0_74 = arith.constant 0 : index
    %c0_75 = arith.constant 0 : index
    %111 = vector.load %arg17[%c0_73, %c0_74, %c0_75] : memref<1x1x32xf32, #tpu.memory_space<vmem>>, vector<1x1x32xf32>
    %112 = vector.shape_cast %111 : vector<1x1x32xf32> to vector<1x32xf32>
    %113 = vector.broadcast %112 : vector<1x32xf32> to vector<8x32xf32>
    %114 = arith.mulf %110, %113 : vector<8x32xf32>
    %c0_76 = arith.constant 0 : index
    %c0_77 = arith.constant 0 : index
    %c0_78 = arith.constant 0 : index
    %115 = vector.load %arg18[%c0_76, %c0_77, %c0_78] : memref<1x1x32xf32, #tpu.memory_space<vmem>>, vector<1x1x32xf32>
    %116 = vector.shape_cast %115 : vector<1x1x32xf32> to vector<1x32xf32>
    %117 = vector.broadcast %116 : vector<1x32xf32> to vector<8x32xf32>
    %118 = arith.addf %114, %117 : vector<8x32xf32>
    %c0_79 = arith.constant 0 : index
    %c0_80 = arith.constant 0 : index
    %119 = vector.load %arg20[%c0_79, %c0_80] : memref<8x32xf32, #tpu.memory_space<vmem>>, vector<8x32xf32>
    tpu.vector_store %arg20[%c0_79, %c0_80], %118 {strides = array<i32>} : memref<8x32xf32, #tpu.memory_space<vmem>>, vector<8x32xf32>,
    %c1_i32 = arith.constant 1 : i32
    %120 = arith.cmpi eq, %arg1, %c1_i32 : i32
    %121 = arith.extui %120 : i1 to i32
    %c0_i32_81 = arith.constant 0 : i32
    %122 = arith.cmpi ne, %121, %c0_i32_81 : i32
    scf.if %122 {
      %c0_82 = arith.constant 0 : index
      %c0_83 = arith.constant 0 : index
      %123 = vector.load %arg19[%c0_82, %c0_83] : memref<8x32xf32, #tpu.memory_space<vmem>>, vector<8x32xf32>
      tpu.vector_store %arg19[%c0_82, %c0_83], %118 {strides = array<i32>} : memref<8x32xf32, #tpu.memory_space<vmem>>, vector<8x32xf32>,
    } else {
    }
    return
  }
  func.func @transform_0(%arg0: i32, %arg1: i32) -> (i32, i32) {
    %c0_i32 = arith.constant 0 : i32
    %c0_i32_0 = arith.constant 0 : i32
    return %arg0, %c0_i32 : i32, i32
  }
  func.func @transform_1(%arg0: i32, %arg1: i32) -> (i32, i32, i32, i32) {
    %c0_i32 = arith.constant 0 : i32
    %c0_i32_0 = arith.constant 0 : i32
    %c0_i32_1 = arith.constant 0 : i32
    %c0_i32_2 = arith.constant 0 : i32
    return %arg1, %c0_i32, %c0_i32_0, %c0_i32_1 : i32, i32, i32, i32
  }
  func.func @transform_2(%arg0: i32, %arg1: i32) -> (i32, i32, i32, i32) {
    %c0_i32 = arith.constant 0 : i32
    %c0_i32_0 = arith.constant 0 : i32
    %c0_i32_1 = arith.constant 0 : i32
    %c0_i32_2 = arith.constant 0 : i32
    return %arg1, %c0_i32, %c0_i32_0, %c0_i32_1 : i32, i32, i32, i32
  }
  func.func @transform_3(%arg0: i32, %arg1: i32) -> (i32, i32, i32, i32) {
    %c0_i32 = arith.constant 0 : i32
    %c0_i32_0 = arith.constant 0 : i32
    %c0_i32_1 = arith.constant 0 : i32
    %c0_i32_2 = arith.constant 0 : i32
    return %arg1, %c0_i32, %c0_i32_0, %c0_i32_1 : i32, i32, i32, i32
  }
  func.func @transform_4(%arg0: i32, %arg1: i32) -> (i32, i32, i32, i32) {
    %c0_i32 = arith.constant 0 : i32
    %c0_i32_0 = arith.constant 0 : i32
    %c0_i32_1 = arith.constant 0 : i32
    %c0_i32_2 = arith.constant 0 : i32
    return %arg1, %c0_i32, %c0_i32_0, %c0_i32_1 : i32, i32, i32, i32
  }
  func.func @transform_5(%arg0: i32, %arg1: i32) -> (i32, i32, i32, i32) {
    %c0_i32 = arith.constant 0 : i32
    %c0_i32_0 = arith.constant 0 : i32
    %c0_i32_1 = arith.constant 0 : i32
    %c0_i32_2 = arith.constant 0 : i32
    return %arg1, %c0_i32, %c0_i32_0, %c0_i32_1 : i32, i32, i32, i32
  }
  func.func @transform_6(%arg0: i32, %arg1: i32) -> (i32, i32, i32, i32) {
    %c0_i32 = arith.constant 0 : i32
    %c0_i32_0 = arith.constant 0 : i32
    %c0_i32_1 = arith.constant 0 : i32
    %c0_i32_2 = arith.constant 0 : i32
    return %arg1, %c0_i32, %c0_i32_0, %c0_i32_1 : i32, i32, i32, i32
  }
  func.func @transform_7(%arg0: i32, %arg1: i32) -> (i32, i32, i32, i32) {
    %c0_i32 = arith.constant 0 : i32
    %c0_i32_0 = arith.constant 0 : i32
    %c0_i32_1 = arith.constant 0 : i32
    %c0_i32_2 = arith.constant 0 : i32
    return %arg1, %c0_i32, %c0_i32_0, %c0_i32_1 : i32, i32, i32, i32
  }
  func.func @transform_8(%arg0: i32, %arg1: i32) -> (i32, i32, i32) {
    %c0_i32 = arith.constant 0 : i32
    %c0_i32_0 = arith.constant 0 : i32
    %c0_i32_1 = arith.constant 0 : i32
    return %arg1, %c0_i32, %c0_i32_0 : i32, i32, i32
  }
  func.func @transform_9(%arg0: i32, %arg1: i32) -> (i32, i32, i32) {
    %c0_i32 = arith.constant 0 : i32
    %c0_i32_0 = arith.constant 0 : i32
    %c0_i32_1 = arith.constant 0 : i32
    return %arg1, %c0_i32, %c0_i32_0 : i32, i32, i32
  }
  func.func @transform_10(%arg0: i32, %arg1: i32) -> (i32, i32, i32) {
    %c0_i32 = arith.constant 0 : i32
    %c0_i32_0 = arith.constant 0 : i32
    %c0_i32_1 = arith.constant 0 : i32
    return %arg1, %c0_i32, %c0_i32_0 : i32, i32, i32
  }
  func.func @transform_11(%arg0: i32, %arg1: i32) -> (i32, i32, i32) {
    %c0_i32 = arith.constant 0 : i32
    %c0_i32_0 = arith.constant 0 : i32
    %c0_i32_1 = arith.constant 0 : i32
    return %arg1, %c0_i32, %c0_i32_0 : i32, i32, i32
  }
  func.func @transform_12(%arg0: i32, %arg1: i32) -> (i32, i32, i32) {
    %c0_i32 = arith.constant 0 : i32
    %c0_i32_0 = arith.constant 0 : i32
    %c0_i32_1 = arith.constant 0 : i32
    return %arg1, %c0_i32, %c0_i32_0 : i32, i32, i32
  }
  func.func @transform_13(%arg0: i32, %arg1: i32) -> (i32, i32, i32) {
    %c0_i32 = arith.constant 0 : i32
    %c0_i32_0 = arith.constant 0 : i32
    %c0_i32_1 = arith.constant 0 : i32
    return %arg1, %c0_i32, %c0_i32_0 : i32, i32, i32
  }
  func.func @transform_14(%arg0: i32, %arg1: i32) -> (i32, i32, i32) {
    %c0_i32 = arith.constant 0 : i32
    %c0_i32_0 = arith.constant 0 : i32
    %c0_i32_1 = arith.constant 0 : i32
    return %arg1, %c0_i32, %c0_i32_0 : i32, i32, i32
  }
  func.func @transform_15(%arg0: i32, %arg1: i32) -> (i32, i32, i32) {
    %c0_i32 = arith.constant 0 : i32
    %c0_i32_0 = arith.constant 0 : i32
    %c0_i32_1 = arith.constant 0 : i32
    return %arg1, %c0_i32, %c0_i32_0 : i32, i32, i32
  }
  func.func @transform_16(%arg0: i32, %arg1: i32) -> (i32, i32, i32) {
    %c0_i32 = arith.constant 0 : i32
    %c0_i32_0 = arith.constant 0 : i32
    %c0_i32_1 = arith.constant 0 : i32
    return %arg1, %c0_i32, %c0_i32_0 : i32, i32, i32
  }
  func.func @transform_17(%arg0: i32, %arg1: i32) -> (i32, i32) {
    %c0_i32 = arith.constant 0 : i32
    %c0_i32_0 = arith.constant 0 : i32
    return %arg0, %c0_i32 : i32, i32
  }
}

</mosaic_0001>

<llo_original>
// kernel: tpu_custom_call.1
$region0: #{tpu_custom_call.1}
  #allocation0 [shape = 'u32[]', space=smem, size = 0x4, offset = 0x4, fixed_abs, tag = 'smem constant byte address 0x4 - core index']
  #allocation1 [shape = 'u32[144,128]{1,0:T(1,128)}', space=vmem, size = 0x12000, scoped, tag = 'internal scratch']
  #allocation2 [shape = 'f32[8,32]{1,0:T(8,128)}', space=vmem, size = 0x1000, scoped, tag = 'scratch operand']
  %s0 = inlined_call_operand.vmem [shape: f32[16,32], index: 0, kind: input, shape index: {}]
  %s1 = inlined_call_operand.vmem [shape: f32[2,4,32,8], index: 1, kind: input, shape index: {}]
  %s2 = inlined_call_operand.vmem [shape: f32[2,4,1,8], index: 2, kind: input, shape index: {}]
  %s3 = inlined_call_operand.vmem [shape: f32[2,4,32,8], index: 3, kind: input, shape index: {}]
  %s4 = inlined_call_operand.vmem [shape: f32[2,4,1,8], index: 4, kind: input, shape index: {}]
  %s5 = inlined_call_operand.vmem [shape: f32[2,4,32,8], index: 5, kind: input, shape index: {}]
  %s6 = inlined_call_operand.vmem [shape: f32[2,4,1,8], index: 6, kind: input, shape index: {}]
  %s7 = inlined_call_operand.vmem [shape: f32[2,4,8,32], index: 7, kind: input, shape index: {}]
  %s8 = inlined_call_operand.vmem [shape: f32[2,1,32], index: 8, kind: input, shape index: {}]
  %s9 = inlined_call_operand.vmem [shape: f32[2,1,32], index: 9, kind: input, shape index: {}]
  %s10 = inlined_call_operand.vmem [shape: f32[2,1,32], index: 10, kind: input, shape index: {}]
  %s11 = inlined_call_operand.vmem [shape: f32[2,32,64], index: 11, kind: input, shape index: {}]
  %s12 = inlined_call_operand.vmem [shape: f32[2,1,64], index: 12, kind: input, shape index: {}]
  %s13 = inlined_call_operand.vmem [shape: f32[2,64,32], index: 13, kind: input, shape index: {}]
  %s14 = inlined_call_operand.vmem [shape: f32[2,1,32], index: 14, kind: input, shape index: {}]
  %s15 = inlined_call_operand.vmem [shape: f32[2,1,32], index: 15, kind: input, shape index: {}]
  %s16 = inlined_call_operand.vmem [shape: f32[2,1,32], index: 16, kind: input, shape index: {}]
  %s17 = inlined_call_operand.hbm [shape: f32[16,32], index: 17, kind: output, shape index: {}]
  %s18 = sld [smem:[#allocation0]]
  $region109: #{tpu_custom_call.1} parent=0
    _
  %s20 = ssub.s32 1, %s18
  %s21 = scalar_select 0, %s20, %s18
  $region1: #{tpu_custom_call.1} parent=0
    #allocation3 [shape = 'u8[8192]{0}', space=vmem, size = 0x2000, scoped, tag = 'output window, operand 0']
    #allocation4 [shape = 's32[2]{0}', space=sflag, size = 0x8, scoped, tag = 'scoped memory for tpu_custom_call.1']
    %22 = vsyncpa [#allocation4], 0
    %s23 = scalar_lea.sflag [#allocation4], 1
    %24 = vsyncpa %s23, 0
    loop: start=0, step=1, limit=6
    $region2: #{tpu_custom_call.1} parent=1 // loop_pre_header
      _
    $region3: #{tpu_custom_call.1} parent=1 // loop_header
      %s26 = sphi 0, %s30
      %p27 = scmp.ge.s32.totalorder %s26, 6
      %s33 = sphi 0, %s45
      %s34 = sphi 0, %s41
      %s35 = sphi 0, %s33
      %s36 = sphi 0, %s34
      %s37 = sphi 0, %s35
      %s38 = sphi 0, %s36
      %s48 = sphi 0, %s50
      %s51 = sphi 0, %s48
      %s52 = sphi 0, %s51
      %s68 = sphi 0, %s52
      %s74 = sphi 0, %s76
      %s77 = sphi 0, %s74
      %s78 = sphi 0, %s77
      %s94 = sphi 0, %s78
      %s100 = sphi 0, %s102
      %s103 = sphi 0, %s100
      %s104 = sphi 0, %s103
      %s120 = sphi 0, %s104
      %s126 = sphi 0, %s128
      %s129 = sphi 0, %s126
      %s130 = sphi 0, %s129
      %s146 = sphi 0, %s130
      %s152 = sphi 0, %s154
      %s155 = sphi 0, %s152
      %s156 = sphi 0, %s155
      %s172 = sphi 0, %s156
      %s178 = sphi 0, %s180
      %s181 = sphi 0, %s178
      %s182 = sphi 0, %s181
      %s198 = sphi 0, %s182
      %s204 = sphi 0, %s206
      %s207 = sphi 0, %s204
      %s208 = sphi 0, %s207
      %s224 = sphi 0, %s208
      %s230 = sphi 0, %s232
      %s233 = sphi 0, %s230
      %s234 = sphi 0, %s233
      %s250 = sphi 0, %s234
      %s256 = sphi 0, %s258
      %s259 = sphi 0, %s256
      %s260 = sphi 0, %s259
      %s276 = sphi 0, %s260
      %s282 = sphi 0, %s284
      %s285 = sphi 0, %s282
      %s286 = sphi 0, %s285
      %s302 = sphi 0, %s286
      %s308 = sphi 0, %s310
      %s311 = sphi 0, %s308
      %s312 = sphi 0, %s311
      %s328 = sphi 0, %s312
      %s334 = sphi 0, %s336
      %s337 = sphi 0, %s334
      %s338 = sphi 0, %s337
      %s354 = sphi 0, %s338
      %s360 = sphi 0, %s362
      %s363 = sphi 0, %s360
      %s364 = sphi 0, %s363
      %s380 = sphi 0, %s364
      %s386 = sphi 0, %s388
      %s389 = sphi 0, %s386
      %s390 = sphi 0, %s389
      %s406 = sphi 0, %s390
      %s412 = sphi 0, %s414
      %s415 = sphi 0, %s412
      %s416 = sphi 0, %s415
      %s432 = sphi 0, %s416
      %s438 = sphi 0, %s440
      %s441 = sphi 0, %s438
      %s442 = sphi 0, %s441
      %s458 = sphi 0, %s442
      %s464 = sphi 0, %s466
      %s467 = sphi 0, %s464
      %s468 = sphi 0, %s467
      %s484 = sphi 0, %s468
      %s490 = sphi 0, %s492
      %s493 = sphi 0, %s490
      %s494 = sphi 0, %s493
      %s510 = sphi 0, %s494
    $region4: #{tpu_custom_call.1} parent=1 // loop_header_branch
      %29 = sbr.rel (%p27) target = $region8
    $region5: #{tpu_custom_call.1} parent=1 // loop_body
      %s31 = ssub.s32 %s26, 1
      %s32 = ssub.s32 %s26, 2
      %s39 = sadd.s32 1, %s34
      %p40 = scmp.ge.s32.totalorder %s39, 2
      %s41 = scalar_select %p40, 0, %s39
      %s42 = sadd.s32 1, %s33
      %s43 = scalar_select %p40, %s42, %s33
      %p44 = scmp.ge.s32.totalorder %s43, 2
      %s45 = scalar_select %p44, 0, %s43
      %s46 = ssub.s32 %s33, %s45
      %p47 = scmp.eq.s32.totalorder %s46, 0
      %s49 = sadd.s32 %s48, 1
      %s50 = scalar_select %p47, %s48, %s49
      %p53 = pneg %p47
      %p54 = scmp.eq.s32.totalorder %s26, 3
      %p55 = por %p53, %p54
      %p56 = scmp.ne.s32.totalorder %s48, %s51
      %p57 = scmp.eq.s32.totalorder %s26, 0
      %p58 = por %p56, %p57
      %p59 = scmp.ne.s32.totalorder %s48, %s51
      %p60 = scmp.eq.s32.totalorder %s31, 3
      %p61 = por %p59, %p60
      %p62 = scmp.ne.s32.totalorder %s51, %s52
      %p63 = scmp.eq.s32.totalorder %s31, 0
      %p64 = por %p62, %p63
      %p65 = scmp.ne.s32.totalorder %s51, %s52
      %p66 = scmp.eq.s32.totalorder %s32, 3
      %p67 = por %p65, %p66
      %p69 = scmp.ne.s32.totalorder %s52, %s68
      %p70 = scmp.eq.s32.totalorder %s32, 0
      %p71 = por %p69, %p70
      %s72 = ssub.s32 %s34, %s41
      %p73 = scmp.eq.s32.totalorder %s72, 0
      %s75 = sadd.s32 %s74, 1
      %s76 = scalar_select %p73, %s74, %s75
      %p79 = pneg %p73
      %p80 = scmp.eq.s32.totalorder %s26, 3
      %p81 = por %p79, %p80
      %p82 = scmp.ne.s32.totalorder %s74, %s77
      %p83 = scmp.eq.s32.totalorder %s26, 0
      %p84 = por %p82, %p83
      %p85 = scmp.ne.s32.totalorder %s74, %s77
      %p86 = scmp.eq.s32.totalorder %s31, 3
      %p87 = por %p85, %p86
      %p88 = scmp.ne.s32.totalorder %s77, %s78
      %p89 = scmp.eq.s32.totalorder %s31, 0
      %p90 = por %p88, %p89
      %p91 = scmp.ne.s32.totalorder %s77, %s78
      %p92 = scmp.eq.s32.totalorder %s32, 3
      %p93 = por %p91, %p92
      %p95 = scmp.ne.s32.totalorder %s78, %s94
      %p96 = scmp.eq.s32.totalorder %s32, 0
      %p97 = por %p95, %p96
      %s98 = ssub.s32 %s34, %s41
      %p99 = scmp.eq.s32.totalorder %s98, 0
      %s101 = sadd.s32 %s100, 1
      %s102 = scalar_select %p99, %s100, %s101
      %p105 = pneg %p99
      %p106 = scmp.eq.s32.totalorder %s26, 3
      %p107 = por %p105, %p106
      %p108 = scmp.ne.s32.totalorder %s100, %s103
      %p109 = scmp.eq.s32.totalorder %s26, 0
      %p110 = por %p108, %p109
      %p111 = scmp.ne.s32.totalorder %s100, %s103
      %p112 = scmp.eq.s32.totalorder %s31, 3
      %p113 = por %p111, %p112
      %p114 = scmp.ne.s32.totalorder %s103, %s104
      %p115 = scmp.eq.s32.totalorder %s31, 0
      %p116 = por %p114, %p115
      %p117 = scmp.ne.s32.totalorder %s103, %s104
      %p118 = scmp.eq.s32.totalorder %s32, 3
      %p119 = por %p117, %p118
      %p121 = scmp.ne.s32.totalorder %s104, %s120
      %p122 = scmp.eq.s32.totalorder %s32, 0
      %p123 = por %p121, %p122
      %s124 = ssub.s32 %s34, %s41
      %p125 = scmp.eq.s32.totalorder %s124, 0
      %s127 = sadd.s32 %s126, 1
      %s128 = scalar_select %p125, %s126, %s127
      %p131 = pneg %p125
      %p132 = scmp.eq.s32.totalorder %s26, 3
      %p133 = por %p131, %p132
      %p134 = scmp.ne.s32.totalorder %s126, %s129
      %p135 = scmp.eq.s32.totalorder %s26, 0
      %p136 = por %p134, %p135
      %p137 = scmp.ne.s32.totalorder %s126, %s129
      %p138 = scmp.eq.s32.totalorder %s31, 3
      %p139 = por %p137, %p138
      %p140 = scmp.ne.s32.totalorder %s129, %s130
      %p141 = scmp.eq.s32.totalorder %s31, 0
      %p142 = por %p140, %p141
      %p143 = scmp.ne.s32.totalorder %s129, %s130
      %p144 = scmp.eq.s32.totalorder %s32, 3
      %p145 = por %p143, %p144
      %p147 = scmp.ne.s32.totalorder %s130, %s146
      %p148 = scmp.eq.s32.totalorder %s32, 0
      %p149 = por %p147, %p148
      %s150 = ssub.s32 %s34, %s41
      %p151 = scmp.eq.s32.totalorder %s150, 0
      %s153 = sadd.s32 %s152, 1
      %s154 = scalar_select %p151, %s152, %s153
      %p157 = pneg %p151
      %p158 = scmp.eq.s32.totalorder %s26, 3
      %p159 = por %p157, %p158
      %p160 = scmp.ne.s32.totalorder %s152, %s155
      %p161 = scmp.eq.s32.totalorder %s26, 0
      %p162 = por %p160, %p161
      %p163 = scmp.ne.s32.totalorder %s152, %s155
      %p164 = scmp.eq.s32.totalorder %s31, 3
      %p165 = por %p163, %p164
      %p166 = scmp.ne.s32.totalorder %s155, %s156
      %p167 = scmp.eq.s32.totalorder %s31, 0
      %p168 = por %p166, %p167
      %p169 = scmp.ne.s32.totalorder %s155, %s156
      %p170 = scmp.eq.s32.totalorder %s32, 3
      %p171 = por %p169, %p170
      %p173 = scmp.ne.s32.totalorder %s156, %s172
      %p174 = scmp.eq.s32.totalorder %s32, 0
      %p175 = por %p173, %p174
      %s176 = ssub.s32 %s34, %s41
      %p177 = scmp.eq.s32.totalorder %s176, 0
      %s179 = sadd.s32 %s178, 1
      %s180 = scalar_select %p177, %s178, %s179
      %p183 = pneg %p177
      %p184 = scmp.eq.s32.totalorder %s26, 3
      %p185 = por %p183, %p184
      %p186 = scmp.ne.s32.totalorder %s178, %s181
      %p187 = scmp.eq.s32.totalorder %s26, 0
      %p188 = por %p186, %p187
      %p189 = scmp.ne.s32.totalorder %s178, %s181
      %p190 = scmp.eq.s32.totalorder %s31, 3
      %p191 = por %p189, %p190
      %p192 = scmp.ne.s32.totalorder %s181, %s182
      %p193 = scmp.eq.s32.totalorder %s31, 0
      %p194 = por %p192, %p193
      %p195 = scmp.ne.s32.totalorder %s181, %s182
      %p196 = scmp.eq.s32.totalorder %s32, 3
      %p197 = por %p195, %p196
      %p199 = scmp.ne.s32.totalorder %s182, %s198
      %p200 = scmp.eq.s32.totalorder %s32, 0
      %p201 = por %p199, %p200
      %s202 = ssub.s32 %s34, %s41
      %p203 = scmp.eq.s32.totalorder %s202, 0
      %s205 = sadd.s32 %s204, 1
      %s206 = scalar_select %p203, %s204, %s205
      %p209 = pneg %p203
      %p210 = scmp.eq.s32.totalorder %s26, 3
      %p211 = por %p209, %p210
      %p212 = scmp.ne.s32.totalorder %s204, %s207
      %p213 = scmp.eq.s32.totalorder %s26, 0
      %p214 = por %p212, %p213
      %p215 = scmp.ne.s32.totalorder %s204, %s207
      %p216 = scmp.eq.s32.totalorder %s31, 3
      %p217 = por %p215, %p216
      %p218 = scmp.ne.s32.totalorder %s207, %s208
      %p219 = scmp.eq.s32.totalorder %s31, 0
      %p220 = por %p218, %p219
      %p221 = scmp.ne.s32.totalorder %s207, %s208
      %p222 = scmp.eq.s32.totalorder %s32, 3
      %p223 = por %p221, %p222
      %p225 = scmp.ne.s32.totalorder %s208, %s224
      %p226 = scmp.eq.s32.totalorder %s32, 0
      %p227 = por %p225, %p226
      %s228 = ssub.s32 %s34, %s41
      %p229 = scmp.eq.s32.totalorder %s228, 0
      %s231 = sadd.s32 %s230, 1
      %s232 = scalar_select %p229, %s230, %s231
      %p235 = pneg %p229
      %p236 = scmp.eq.s32.totalorder %s26, 3
      %p237 = por %p235, %p236
      %p238 = scmp.ne.s32.totalorder %s230, %s233
      %p239 = scmp.eq.s32.totalorder %s26, 0
      %p240 = por %p238, %p239
      %p241 = scmp.ne.s32.totalorder %s230, %s233
      %p242 = scmp.eq.s32.totalorder %s31, 3
      %p243 = por %p241, %p242
      %p244 = scmp.ne.s32.totalorder %s233, %s234
      %p245 = scmp.eq.s32.totalorder %s31, 0
      %p246 = por %p244, %p245
      %p247 = scmp.ne.s32.totalorder %s233, %s234
      %p248 = scmp.eq.s32.totalorder %s32, 3
      %p249 = por %p247, %p248
      %p251 = scmp.ne.s32.totalorder %s234, %s250
      %p252 = scmp.eq.s32.totalorder %s32, 0
      %p253 = por %p251, %p252
      %s254 = ssub.s32 %s34, %s41
      %p255 = scmp.eq.s32.totalorder %s254, 0
      %s257 = sadd.s32 %s256, 1
      %s258 = scalar_select %p255, %s256, %s257
      %p261 = pneg %p255
      %p262 = scmp.eq.s32.totalorder %s26, 3
      %p263 = por %p261, %p262
      %p264 = scmp.ne.s32.totalorder %s256, %s259
      %p265 = scmp.eq.s32.totalorder %s26, 0
      %p266 = por %p264, %p265
      %p267 = scmp.ne.s32.totalorder %s256, %s259
      %p268 = scmp.eq.s32.totalorder %s31, 3
      %p269 = por %p267, %p268
      %p270 = scmp.ne.s32.totalorder %s259, %s260
      %p271 = scmp.eq.s32.totalorder %s31, 0
      %p272 = por %p270, %p271
      %p273 = scmp.ne.s32.totalorder %s259, %s260
      %p274 = scmp.eq.s32.totalorder %s32, 3
      %p275 = por %p273, %p274
      %p277 = scmp.ne.s32.totalorder %s260, %s276
      %p278 = scmp.eq.s32.totalorder %s32, 0
      %p279 = por %p277, %p278
      %s280 = ssub.s32 %s34, %s41
      %p281 = scmp.eq.s32.totalorder %s280, 0
      %s283 = sadd.s32 %s282, 1
      %s284 = scalar_select %p281, %s282, %s283
      %p287 = pneg %p281
      %p288 = scmp.eq.s32.totalorder %s26, 3
      %p289 = por %p287, %p288
      %p290 = scmp.ne.s32.totalorder %s282, %s285
      %p291 = scmp.eq.s32.totalorder %s26, 0
      %p292 = por %p290, %p291
      %p293 = scmp.ne.s32.totalorder %s282, %s285
      %p294 = scmp.eq.s32.totalorder %s31, 3
      %p295 = por %p293, %p294
      %p296 = scmp.ne.s32.totalorder %s285, %s286
      %p297 = scmp.eq.s32.totalorder %s31, 0
      %p298 = por %p296, %p297
      %p299 = scmp.ne.s32.totalorder %s285, %s286
      %p300 = scmp.eq.s32.totalorder %s32, 3
      %p301 = por %p299, %p300
      %p303 = scmp.ne.s32.totalorder %s286, %s302
      %p304 = scmp.eq.s32.totalorder %s32, 0
      %p305 = por %p303, %p304
      %s306 = ssub.s32 %s34, %s41
      %p307 = scmp.eq.s32.totalorder %s306, 0
      %s309 = sadd.s32 %s308, 1
      %s310 = scalar_select %p307, %s308, %s309
      %p313 = pneg %p307
      %p314 = scmp.eq.s32.totalorder %s26, 3
      %p315 = por %p313, %p314
      %p316 = scmp.ne.s32.totalorder %s308, %s311
      %p317 = scmp.eq.s32.totalorder %s26, 0
      %p318 = por %p316, %p317
      %p319 = scmp.ne.s32.totalorder %s308, %s311
      %p320 = scmp.eq.s32.totalorder %s31, 3
      %p321 = por %p319, %p320
      %p322 = scmp.ne.s32.totalorder %s311, %s312
      %p323 = scmp.eq.s32.totalorder %s31, 0
      %p324 = por %p322, %p323
      %p325 = scmp.ne.s32.totalorder %s311, %s312
      %p326 = scmp.eq.s32.totalorder %s32, 3
      %p327 = por %p325, %p326
      %p329 = scmp.ne.s32.totalorder %s312, %s328
      %p330 = scmp.eq.s32.totalorder %s32, 0
      %p331 = por %p329, %p330
      %s332 = ssub.s32 %s34, %s41
      %p333 = scmp.eq.s32.totalorder %s332, 0
      %s335 = sadd.s32 %s334, 1
      %s336 = scalar_select %p333, %s334, %s335
      %p339 = pneg %p333
      %p340 = scmp.eq.s32.totalorder %s26, 3
      %p341 = por %p339, %p340
      %p342 = scmp.ne.s32.totalorder %s334, %s337
      %p343 = scmp.eq.s32.totalorder %s26, 0
      %p344 = por %p342, %p343
      %p345 = scmp.ne.s32.totalorder %s334, %s337
      %p346 = scmp.eq.s32.totalorder %s31, 3
      %p347 = por %p345, %p346
      %p348 = scmp.ne.s32.totalorder %s337, %s338
      %p349 = scmp.eq.s32.totalorder %s31, 0
      %p350 = por %p348, %p349
      %p351 = scmp.ne.s32.totalorder %s337, %s338
      %p352 = scmp.eq.s32.totalorder %s32, 3
      %p353 = por %p351, %p352
      %p355 = scmp.ne.s32.totalorder %s338, %s354
      %p356 = scmp.eq.s32.totalorder %s32, 0
      %p357 = por %p355, %p356
      %s358 = ssub.s32 %s34, %s41
      %p359 = scmp.eq.s32.totalorder %s358, 0
      %s361 = sadd.s32 %s360, 1
      %s362 = scalar_select %p359, %s360, %s361
      %p365 = pneg %p359
      %p366 = scmp.eq.s32.totalorder %s26, 3
      %p367 = por %p365, %p366
      %p368 = scmp.ne.s32.totalorder %s360, %s363
      %p369 = scmp.eq.s32.totalorder %s26, 0
      %p370 = por %p368, %p369
      %p371 = scmp.ne.s32.totalorder %s360, %s363
      %p372 = scmp.eq.s32.totalorder %s31, 3
      %p373 = por %p371, %p372
      %p374 = scmp.ne.s32.totalorder %s363, %s364
      %p375 = scmp.eq.s32.totalorder %s31, 0
      %p376 = por %p374, %p375
      %p377 = scmp.ne.s32.totalorder %s363, %s364
      %p378 = scmp.eq.s32.totalorder %s32, 3
      %p379 = por %p377, %p378
      %p381 = scmp.ne.s32.totalorder %s364, %s380
      %p382 = scmp.eq.s32.totalorder %s32, 0
      %p383 = por %p381, %p382
      %s384 = ssub.s32 %s34, %s41
      %p385 = scmp.eq.s32.totalorder %s384, 0
      %s387 = sadd.s32 %s386, 1
      %s388 = scalar_select %p385, %s386, %s387
      %p391 = pneg %p385
      %p392 = scmp.eq.s32.totalorder %s26, 3
      %p393 = por %p391, %p392
      %p394 = scmp.ne.s32.totalorder %s386, %s389
      %p395 = scmp.eq.s32.totalorder %s26, 0
      %p396 = por %p394, %p395
      %p397 = scmp.ne.s32.totalorder %s386, %s389
      %p398 = scmp.eq.s32.totalorder %s31, 3
      %p399 = por %p397, %p398
      %p400 = scmp.ne.s32.totalorder %s389, %s390
      %p401 = scmp.eq.s32.totalorder %s31, 0
      %p402 = por %p400, %p401
      %p403 = scmp.ne.s32.totalorder %s389, %s390
      %p404 = scmp.eq.s32.totalorder %s32, 3
      %p405 = por %p403, %p404
      %p407 = scmp.ne.s32.totalorder %s390, %s406
      %p408 = scmp.eq.s32.totalorder %s32, 0
      %p409 = por %p407, %p408
      %s410 = ssub.s32 %s34, %s41
      %p411 = scmp.eq.s32.totalorder %s410, 0
      %s413 = sadd.s32 %s412, 1
      %s414 = scalar_select %p411, %s412, %s413
      %p417 = pneg %p411
      %p418 = scmp.eq.s32.totalorder %s26, 3
      %p419 = por %p417, %p418
      %p420 = scmp.ne.s32.totalorder %s412, %s415
      %p421 = scmp.eq.s32.totalorder %s26, 0
      %p422 = por %p420, %p421
      %p423 = scmp.ne.s32.totalorder %s412, %s415
      %p424 = scmp.eq.s32.totalorder %s31, 3
      %p425 = por %p423, %p424
      %p426 = scmp.ne.s32.totalorder %s415, %s416
      %p427 = scmp.eq.s32.totalorder %s31, 0
      %p428 = por %p426, %p427
      %p429 = scmp.ne.s32.totalorder %s415, %s416
      %p430 = scmp.eq.s32.totalorder %s32, 3
      %p431 = por %p429, %p430
      %p433 = scmp.ne.s32.totalorder %s416, %s432
      %p434 = scmp.eq.s32.totalorder %s32, 0
      %p435 = por %p433, %p434
      %s436 = ssub.s32 %s34, %s41
      %p437 = scmp.eq.s32.totalorder %s436, 0
      %s439 = sadd.s32 %s438, 1
      %s440 = scalar_select %p437, %s438, %s439
      %p443 = pneg %p437
      %p444 = scmp.eq.s32.totalorder %s26, 3
      %p445 = por %p443, %p444
      %p446 = scmp.ne.s32.totalorder %s438, %s441
      %p447 = scmp.eq.s32.totalorder %s26, 0
      %p448 = por %p446, %p447
      %p449 = scmp.ne.s32.totalorder %s438, %s441
      %p450 = scmp.eq.s32.totalorder %s31, 3
      %p451 = por %p449, %p450
      %p452 = scmp.ne.s32.totalorder %s441, %s442
      %p453 = scmp.eq.s32.totalorder %s31, 0
      %p454 = por %p452, %p453
      %p455 = scmp.ne.s32.totalorder %s441, %s442
      %p456 = scmp.eq.s32.totalorder %s32, 3
      %p457 = por %p455, %p456
      %p459 = scmp.ne.s32.totalorder %s442, %s458
      %p460 = scmp.eq.s32.totalorder %s32, 0
      %p461 = por %p459, %p460
      %s462 = ssub.s32 %s34, %s41
      %p463 = scmp.eq.s32.totalorder %s462, 0
      %s465 = sadd.s32 %s464, 1
      %s466 = scalar_select %p463, %s464, %s465
      %p469 = pneg %p463
      %p470 = scmp.eq.s32.totalorder %s26, 3
      %p471 = por %p469, %p470
      %p472 = scmp.ne.s32.totalorder %s464, %s467
      %p473 = scmp.eq.s32.totalorder %s26, 0
      %p474 = por %p472, %p473
      %p475 = scmp.ne.s32.totalorder %s464, %s467
      %p476 = scmp.eq.s32.totalorder %s31, 3
      %p477 = por %p475, %p476
      %p478 = scmp.ne.s32.totalorder %s467, %s468
      %p479 = scmp.eq.s32.totalorder %s31, 0
      %p480 = por %p478, %p479
      %p481 = scmp.ne.s32.totalorder %s467, %s468
      %p482 = scmp.eq.s32.totalorder %s32, 3
      %p483 = por %p481, %p482
      %p485 = scmp.ne.s32.totalorder %s468, %s484
      %p486 = scmp.eq.s32.totalorder %s32, 0
      %p487 = por %p485, %p486
      %s488 = ssub.s32 %s33, %s45
      %p489 = scmp.eq.s32.totalorder %s488, 0
      %s491 = sadd.s32 %s490, 1
      %s492 = scalar_select %p489, %s490, %s491
      %p495 = pneg %p489
      %p496 = scmp.eq.s32.totalorder %s26, 3
      %p497 = por %p495, %p496
      %p498 = scmp.ne.s32.totalorder %s490, %s493
      %p499 = scmp.eq.s32.totalorder %s26, 0
      %p500 = por %p498, %p499
      %p501 = scmp.ne.s32.totalorder %s490, %s493
      %p502 = scmp.eq.s32.totalorder %s31, 3
      %p503 = por %p501, %p502
      %p504 = scmp.ne.s32.totalorder %s493, %s494
      %p505 = scmp.eq.s32.totalorder %s31, 0
      %p506 = por %p504, %p505
      %p507 = scmp.ne.s32.totalorder %s493, %s494
      %p508 = scmp.eq.s32.totalorder %s32, 3
      %p509 = por %p507, %p508
      %p511 = scmp.ne.s32.totalorder %s494, %s510
      %p512 = scmp.eq.s32.totalorder %s32, 0
      %p513 = por %p511, %p512
      %p514 = scmp.le.s32.totalorder 1, %s26
      %p515 = scmp.lt.s32.totalorder %s26, 5
      %p516 = pnand %p514, %p515
      %p517 = pneg %p516
      // Predicated region
      $region9: #{tpu_custom_call.1} parent=5 // pred_check
        _
      $region10: #{tpu_custom_call.1} parent=5 // pred_check_branch
        %519 = sbr.rel (%p516) target = $region12
      $region11: #{tpu_custom_call.1} parent=5 // pred_region
        %s520 = ssub.s32 %s26, 1
      $region12: #{tpu_custom_call.1} parent=5 // pred_fallthru
        _
      %p521 = scmp.lt.s32.totalorder %s26, 4
      // Predicated region
      $region13: #{tpu_custom_call.1} parent=5 // pred_check
        %p522 = pneg %p521
      $region14: #{tpu_custom_call.1} parent=5 // pred_check_branch
        %524 = sbr.rel (%p522) target = $region16
      $region15: #{tpu_custom_call.1} parent=5 // pred_region
        // Predicated region
        $region17: #{tpu_custom_call.1} parent=15 // pred_check
          %p525 = pneg %p58
        $region18: #{tpu_custom_call.1} parent=15 // pred_check_branch
          %527 = sbr.rel (%p525) target = $region20
        $region19: #{tpu_custom_call.1} parent=15 // pred_region
          %p528 = scmp.lt.s32.totalorder %s33, 1
          %s529 = scalar_select %p528, %s33, 1
          %s530 = smul.addr %s529, 8
          %s531 = scalar_lea.vmem %s0, %s530
        $region20: #{tpu_custom_call.1} parent=15 // pred_fallthru
          _
        // Predicated region
        $region21: #{tpu_custom_call.1} parent=15 // pred_check
          %p532 = pneg %p84
        $region22: #{tpu_custom_call.1} parent=15 // pred_check_branch
          %534 = sbr.rel (%p532) target = $region24
        $region23: #{tpu_custom_call.1} parent=15 // pred_region
          %p535 = scmp.lt.s32.totalorder %s34, 1
          %s536 = scalar_select %p535, %s34, 1
          %s537 = smul.addr %s536, 16
          %s538 = smul.addr %s537, 8
          %s539 = scalar_lea.vmem %s1, %s538
        $region24: #{tpu_custom_call.1} parent=15 // pred_fallthru
          _
        // Predicated region
        $region25: #{tpu_custom_call.1} parent=15 // pred_check
          %p540 = pneg %p110
        $region26: #{tpu_custom_call.1} parent=15 // pred_check_branch
          %542 = sbr.rel (%p540) target = $region28
        $region27: #{tpu_custom_call.1} parent=15 // pred_region
          %p543 = scmp.lt.s32.totalorder %s34, 1
          %s544 = scalar_select %p543, %s34, 1
          %s545 = smul.addr %s544, 4
          %s546 = scalar_lea.vmem %s2, %s545
        $region28: #{tpu_custom_call.1} parent=15 // pred_fallthru
          _
        // Predicated region
        $region29: #{tpu_custom_call.1} parent=15 // pred_check
          %p547 = pneg %p136
        $region30: #{tpu_custom_call.1} parent=15 // pred_check_branch
          %549 = sbr.rel (%p547) target = $region32
        $region31: #{tpu_custom_call.1} parent=15 // pred_region
          %p550 = scmp.lt.s32.totalorder %s34, 1
          %s551 = scalar_select %p550, %s34, 1
          %s552 = smul.addr %s551, 16
          %s553 = smul.addr %s552, 8
          %s554 = scalar_lea.vmem %s3, %s553
        $region32: #{tpu_custom_call.1} parent=15 // pred_fallthru
          _
        // Predicated region
        $region33: #{tpu_custom_call.1} parent=15 // pred_check
          %p555 = pneg %p162
        $region34: #{tpu_custom_call.1} parent=15 // pred_check_branch
          %557 = sbr.rel (%p555) target = $region36
        $region35: #{tpu_custom_call.1} parent=15 // pred_region
          %p558 = scmp.lt.s32.totalorder %s34, 1
          %s559 = scalar_select %p558, %s34, 1
          %s560 = smul.addr %s559, 4
          %s561 = scalar_lea.vmem %s4, %s560
        $region36: #{tpu_custom_call.1} parent=15 // pred_fallthru
          _
        // Predicated region
        $region37: #{tpu_custom_call.1} parent=15 // pred_check
          %p562 = pneg %p188
        $region38: #{tpu_custom_call.1} parent=15 // pred_check_branch
          %564 = sbr.rel (%p562) target = $region40
        $region39: #{tpu_custom_call.1} parent=15 // pred_region
          %p565 = scmp.lt.s32.totalorder %s34, 1
          %s566 = scalar_select %p565, %s34, 1
          %s567 = smul.addr %s566, 16
          %s568 = smul.addr %s567, 8
          %s569 = scalar_lea.vmem %s5, %s568
        $region40: #{tpu_custom_call.1} parent=15 // pred_fallthru
          _
        // Predicated region
        $region41: #{tpu_custom_call.1} parent=15 // pred_check
          %p570 = pneg %p214
        $region42: #{tpu_custom_call.1} parent=15 // pred_check_branch
          %572 = sbr.rel (%p570) target = $region44
        $region43: #{tpu_custom_call.1} parent=15 // pred_region
          %p573 = scmp.lt.s32.totalorder %s34, 1
          %s574 = scalar_select %p573, %s34, 1
          %s575 = smul.addr %s574, 4
          %s576 = scalar_lea.vmem %s6, %s575
        $region44: #{tpu_custom_call.1} parent=15 // pred_fallthru
          _
        // Predicated region
        $region45: #{tpu_custom_call.1} parent=15 // pred_check
          %p577 = pneg %p240
        $region46: #{tpu_custom_call.1} parent=15 // pred_check_branch
          %579 = sbr.rel (%p577) target = $region48
        $region47: #{tpu_custom_call.1} parent=15 // pred_region
          %p580 = scmp.lt.s32.totalorder %s34, 1
          %s581 = scalar_select %p580, %s34, 1
          %s582 = smul.addr %s581, 4
          %s583 = smul.addr %s582, 8
          %s584 = scalar_lea.vmem %s7, %s583
        $region48: #{tpu_custom_call.1} parent=15 // pred_fallthru
          _
        // Predicated region
        $region49: #{tpu_custom_call.1} parent=15 // pred_check
          %p585 = pneg %p266
        $region50: #{tpu_custom_call.1} parent=15 // pred_check_branch
          %587 = sbr.rel (%p585) target = $region52
        $region51: #{tpu_custom_call.1} parent=15 // pred_region
          %p588 = scmp.lt.s32.totalorder %s34, 1
          %s589 = scalar_select %p588, %s34, 1
          %s590 = scalar_lea.vmem %s8, %s589
        $region52: #{tpu_custom_call.1} parent=15 // pred_fallthru
          _
        // Predicated region
        $region53: #{tpu_custom_call.1} parent=15 // pred_check
          %p591 = pneg %p292
        $region54: #{tpu_custom_call.1} parent=15 // pred_check_branch
          %593 = sbr.rel (%p591) target = $region56
        $region55: #{tpu_custom_call.1} parent=15 // pred_region
          %p594 = scmp.lt.s32.totalorder %s34, 1
          %s595 = scalar_select %p594, %s34, 1
          %s596 = scalar_lea.vmem %s9, %s595
        $region56: #{tpu_custom_call.1} parent=15 // pred_fallthru
          _
        // Predicated region
        $region57: #{tpu_custom_call.1} parent=15 // pred_check
          %p597 = pneg %p318
        $region58: #{tpu_custom_call.1} parent=15 // pred_check_branch
          %599 = sbr.rel (%p597) target = $region60
        $region59: #{tpu_custom_call.1} parent=15 // pred_region
          %p600 = scmp.lt.s32.totalorder %s34, 1
          %s601 = scalar_select %p600, %s34, 1
          %s602 = scalar_lea.vmem %s10, %s601
        $region60: #{tpu_custom_call.1} parent=15 // pred_fallthru
          _
        // Predicated region
        $region61: #{tpu_custom_call.1} parent=15 // pred_check
          %p603 = pneg %p344
        $region62: #{tpu_custom_call.1} parent=15 // pred_check_branch
          %605 = sbr.rel (%p603) target = $region64
        $region63: #{tpu_custom_call.1} parent=15 // pred_region
          %p606 = scmp.lt.s32.totalorder %s34, 1
          %s607 = scalar_select %p606, %s34, 1
          %s608 = smul.addr %s607, 4
          %s609 = smul.addr %s608, 8
          %s610 = scalar_lea.vmem %s11, %s609
        $region64: #{tpu_custom_call.1} parent=15 // pred_fallthru
          _
        // Predicated region
        $region65: #{tpu_custom_call.1} parent=15 // pred_check
          %p611 = pneg %p370
        $region66: #{tpu_custom_call.1} parent=15 // pred_check_branch
          %613 = sbr.rel (%p611) target = $region68
        $region67: #{tpu_custom_call.1} parent=15 // pred_region
          %p614 = scmp.lt.s32.totalorder %s34, 1
          %s615 = scalar_select %p614, %s34, 1
          %s616 = scalar_lea.vmem %s12, %s615
        $region68: #{tpu_custom_call.1} parent=15 // pred_fallthru
          _
        // Predicated region
        $region69: #{tpu_custom_call.1} parent=15 // pred_check
          %p617 = pneg %p396
        $region70: #{tpu_custom_call.1} parent=15 // pred_check_branch
          %619 = sbr.rel (%p617) target = $region72
        $region71: #{tpu_custom_call.1} parent=15 // pred_region
          %p620 = scmp.lt.s32.totalorder %s34, 1
          %s621 = scalar_select %p620, %s34, 1
          %s622 = smul.addr %s621, 8
          %s623 = smul.addr %s622, 8
          %s624 = scalar_lea.vmem %s13, %s623
        $region72: #{tpu_custom_call.1} parent=15 // pred_fallthru
          _
        // Predicated region
        $region73: #{tpu_custom_call.1} parent=15 // pred_check
          %p625 = pneg %p422
        $region74: #{tpu_custom_call.1} parent=15 // pred_check_branch
          %627 = sbr.rel (%p625) target = $region76
        $region75: #{tpu_custom_call.1} parent=15 // pred_region
          %p628 = scmp.lt.s32.totalorder %s34, 1
          %s629 = scalar_select %p628, %s34, 1
          %s630 = scalar_lea.vmem %s14, %s629
        $region76: #{tpu_custom_call.1} parent=15 // pred_fallthru
          _
        // Predicated region
        $region77: #{tpu_custom_call.1} parent=15 // pred_check
          %p631 = pneg %p448
        $region78: #{tpu_custom_call.1} parent=15 // pred_check_branch
          %633 = sbr.rel (%p631) target = $region80
        $region79: #{tpu_custom_call.1} parent=15 // pred_region
          %p634 = scmp.lt.s32.totalorder %s34, 1
          %s635 = scalar_select %p634, %s34, 1
          %s636 = scalar_lea.vmem %s15, %s635
        $region80: #{tpu_custom_call.1} parent=15 // pred_fallthru
          _
        // Predicated region
        $region81: #{tpu_custom_call.1} parent=15 // pred_check
          %p637 = pneg %p474
        $region82: #{tpu_custom_call.1} parent=15 // pred_check_branch
          %639 = sbr.rel (%p637) target = $region84
        $region83: #{tpu_custom_call.1} parent=15 // pred_region
          %p640 = scmp.lt.s32.totalorder %s34, 1
          %s641 = scalar_select %p640, %s34, 1
          %s642 = scalar_lea.vmem %s16, %s641
        $region84: #{tpu_custom_call.1} parent=15 // pred_fallthru
          _
      $region16: #{tpu_custom_call.1} parent=5 // pred_fallthru
        _
      %p643 = scmp.le.s32.totalorder 1, %s26
      %p644 = scmp.lt.s32.totalorder %s26, 5
      %p645 = pnand %p643, %p644
      %p646 = pneg %p645
      // Predicated region
      $region85: #{tpu_custom_call.1} parent=5 // pred_check
        _
      $region86: #{tpu_custom_call.1} parent=5 // pred_check_branch
        %648 = sbr.rel (%p645) target = $region88
      $region87: #{tpu_custom_call.1} parent=5 // pred_region
        %s649 = ssub.s32 %s26, 1
        %p650 = scmp.lt.s32.totalorder %s35, 1
        %s651 = scalar_select %p650, %s35, 1
        %s652 = smul.addr %s651, 8
        %s653 = scalar_lea.vmem %s0, %s652
        %p654 = pneg %p64
        %p655 = pneg %p61
        %p656 = scmp.lt.s32.totalorder %s36, 1
        %s657 = scalar_select %p656, %s36, 1
        %s658 = smul.addr %s657, 16
        %s659 = smul.addr %s658, 8
        %s660 = scalar_lea.vmem %s1, %s659
        %p661 = pneg %p90
        %p662 = pneg %p87
        %p663 = scmp.lt.s32.totalorder %s36, 1
        %s664 = scalar_select %p663, %s36, 1
        %s665 = smul.addr %s664, 4
        %s666 = scalar_lea.vmem %s2, %s665
        %p667 = pneg %p116
        %p668 = pneg %p113
        %p669 = scmp.lt.s32.totalorder %s36, 1
        %s670 = scalar_select %p669, %s36, 1
        %s671 = smul.addr %s670, 16
        %s672 = smul.addr %s671, 8
        %s673 = scalar_lea.vmem %s3, %s672
        %p674 = pneg %p142
        %p675 = pneg %p139
        %p676 = scmp.lt.s32.totalorder %s36, 1
        %s677 = scalar_select %p676, %s36, 1
        %s678 = smul.addr %s677, 4
        %s679 = scalar_lea.vmem %s4, %s678
        %p680 = pneg %p168
        %p681 = pneg %p165
        %p682 = scmp.lt.s32.totalorder %s36, 1
        %s683 = scalar_select %p682, %s36, 1
        %s684 = smul.addr %s683, 16
        %s685 = smul.addr %s684, 8
        %s686 = scalar_lea.vmem %s5, %s685
        %p687 = pneg %p194
        %p688 = pneg %p191
        %p689 = scmp.lt.s32.totalorder %s36, 1
        %s690 = scalar_select %p689, %s36, 1
        %s691 = smul.addr %s690, 4
        %s692 = scalar_lea.vmem %s6, %s691
        %p693 = pneg %p220
        %p694 = pneg %p217
        %p695 = scmp.lt.s32.totalorder %s36, 1
        %s696 = scalar_select %p695, %s36, 1
        %s697 = smul.addr %s696, 4
        %s698 = smul.addr %s697, 8
        %s699 = scalar_lea.vmem %s7, %s698
        %p700 = pneg %p246
        %p701 = pneg %p243
        %p702 = scmp.lt.s32.totalorder %s36, 1
        %s703 = scalar_select %p702, %s36, 1
        %s704 = scalar_lea.vmem %s8, %s703
        %p705 = pneg %p272
        %p706 = pneg %p269
        %p707 = scmp.lt.s32.totalorder %s36, 1
        %s708 = scalar_select %p707, %s36, 1
        %s709 = scalar_lea.vmem %s9, %s708
        %p710 = pneg %p298
        %p711 = pneg %p295
        %p712 = scmp.lt.s32.totalorder %s36, 1
        %s713 = scalar_select %p712, %s36, 1
        %s714 = scalar_lea.vmem %s10, %s713
        %p715 = pneg %p324
        %p716 = pneg %p321
        %p717 = scmp.lt.s32.totalorder %s36, 1
        %s718 = scalar_select %p717, %s36, 1
        %s719 = smul.addr %s718, 4
        %s720 = smul.addr %s719, 8
        %s721 = scalar_lea.vmem %s11, %s720
        %p722 = pneg %p350
        %p723 = pneg %p347
        %p724 = scmp.lt.s32.totalorder %s36, 1
        %s725 = scalar_select %p724, %s36, 1
        %s726 = scalar_lea.vmem %s12, %s725
        %p727 = pneg %p376
        %p728 = pneg %p373
        %p729 = scmp.lt.s32.totalorder %s36, 1
        %s730 = scalar_select %p729, %s36, 1
        %s731 = smul.addr %s730, 8
        %s732 = smul.addr %s731, 8
        %s733 = scalar_lea.vmem %s13, %s732
        %p734 = pneg %p402
        %p735 = pneg %p399
        %p736 = scmp.lt.s32.totalorder %s36, 1
        %s737 = scalar_select %p736, %s36, 1
        %s738 = scalar_lea.vmem %s14, %s737
        %p739 = pneg %p428
        %p740 = pneg %p425
        %p741 = scmp.lt.s32.totalorder %s36, 1
        %s742 = scalar_select %p741, %s36, 1
        %s743 = scalar_lea.vmem %s15, %s742
        %p744 = pneg %p454
        %p745 = pneg %p451
        %p746 = scmp.lt.s32.totalorder %s36, 1
        %s747 = scalar_select %p746, %s36, 1
        %s748 = scalar_lea.vmem %s16, %s747
        %p749 = pneg %p480
        %p750 = pneg %p477
        %p751 = pneg %p506
        %p752 = pneg %p503
        %s753 = sand.u32 %s493, 1
        %s754 = scalar_lea.sflag [#allocation4], %s753
        %s755 = sand.u32 %s493, 1
        %s756 = smul.addr %s755, 8
        %s757 = scalar_lea.vmem [#allocation3], %s756
        %p758 = scmp.lt.s32.totalorder %s35, 1
        %s759 = scalar_select %p758, %s35, 1
        %s760 = smul.addr %s759, 8
        %s761 = scalar_lea.vmem %s0, %s760
        %p762 = scmp.lt.s32.totalorder %s36, 1
        %s763 = scalar_select %p762, %s36, 1
        %s764 = smul.addr %s763, 16
        %s765 = smul.addr %s764, 8
        %s766 = scalar_lea.vmem %s1, %s765
        %p767 = scmp.lt.s32.totalorder %s36, 1
        %s768 = scalar_select %p767, %s36, 1
        %s769 = smul.addr %s768, 4
        %s770 = scalar_lea.vmem %s2, %s769
        %p771 = scmp.lt.s32.totalorder %s36, 1
        %s772 = scalar_select %p771, %s36, 1
        %s773 = smul.addr %s772, 16
        %s774 = smul.addr %s773, 8
        %s775 = scalar_lea.vmem %s3, %s774
        %p776 = scmp.lt.s32.totalorder %s36, 1
        %s777 = scalar_select %p776, %s36, 1
        %s778 = smul.addr %s777, 4
        %s779 = scalar_lea.vmem %s4, %s778
        %p780 = scmp.lt.s32.totalorder %s36, 1
        %s781 = scalar_select %p780, %s36, 1
        %s782 = smul.addr %s781, 16
        %s783 = smul.addr %s782, 8
        %s784 = scalar_lea.vmem %s5, %s783
        %p785 = scmp.lt.s32.totalorder %s36, 1
        %s786 = scalar_select %p785, %s36, 1
        %s787 = smul.addr %s786, 4
        %s788 = scalar_lea.vmem %s6, %s787
        %p789 = scmp.lt.s32.totalorder %s36, 1
        %s790 = scalar_select %p789, %s36, 1
        %s791 = smul.addr %s790, 4
        %s792 = smul.addr %s791, 8
        %s793 = scalar_lea.vmem %s7, %s792
        %p794 = scmp.lt.s32.totalorder %s36, 1
        %s795 = scalar_select %p794, %s36, 1
        %s796 = scalar_lea.vmem %s8, %s795
        %p797 = scmp.lt.s32.totalorder %s36, 1
        %s798 = scalar_select %p797, %s36, 1
        %s799 = scalar_lea.vmem %s9, %s798
        %p800 = scmp.lt.s32.totalorder %s36, 1
        %s801 = scalar_select %p800, %s36, 1
        %s802 = scalar_lea.vmem %s10, %s801
        %p803 = scmp.lt.s32.totalorder %s36, 1
        %s804 = scalar_select %p803, %s36, 1
        %s805 = smul.addr %s804, 4
        %s806 = smul.addr %s805, 8
        %s807 = scalar_lea.vmem %s11, %s806
        %p808 = scmp.lt.s32.totalorder %s36, 1
        %s809 = scalar_select %p808, %s36, 1
        %s810 = scalar_lea.vmem %s12, %s809
        %p811 = scmp.lt.s32.totalorder %s36, 1
        %s812 = scalar_select %p811, %s36, 1
        %s813 = smul.addr %s812, 8
        %s814 = smul.addr %s813, 8
        %s815 = scalar_lea.vmem %s13, %s814
        %p816 = scmp.lt.s32.totalorder %s36, 1
        %s817 = scalar_select %p816, %s36, 1
        %s818 = scalar_lea.vmem %s14, %s817
        %p819 = scmp.lt.s32.totalorder %s36, 1
        %s820 = scalar_select %p819, %s36, 1
        %s821 = scalar_lea.vmem %s15, %s820
        %p822 = scmp.lt.s32.totalorder %s36, 1
        %s823 = scalar_select %p822, %s36, 1
        %s824 = scalar_lea.vmem %s16, %s823
        %p825 = scmp.eq.s32.totalorder %s36, 0
        // Predicated region
        $region89: #{tpu_custom_call.1} parent=87 // pred_check
          %p826 = pneg %p825
        $region90: #{tpu_custom_call.1} parent=87 // pred_check_branch
          %828 = sbr.rel (%p826) target = $region92
        $region91: #{tpu_custom_call.1} parent=87 // pred_region
          %v829 = vld [vmem:[%s761] sm:$0xff]
          %vm830 = vcmask 261120
          %831 = vst.msk [vmem:[#allocation2] sm:$0xff] %vm830, %v829
        $region92: #{tpu_custom_call.1} parent=87 // pred_fallthru
          _
        %v832 = vld [vmem:[#allocation2] sm:$0xff]
        %v833 = vld [vmem:[%s766] sm:$0xff]
        %v834 = vld [vmem:[%s766 + $0x8] sm:$0xff]
        %v835 = vld [vmem:[%s766 + $0x10] sm:$0xff]
        %v836 = vld [vmem:[%s766 + $0x18] sm:$0xff]
        %v837 = vld [vmem:[%s766 + $0x20] sm:$0xff]
        %v838 = vld [vmem:[%s766 + $0x28] sm:$0xff]
        %v839 = vld [vmem:[%s766 + $0x30] sm:$0xff]
        %v840 = vld [vmem:[%s766 + $0x38] sm:$0xff]
        %v841 = vld [vmem:[%s766 + $0x40] sm:$0xff]
        %v842 = vld [vmem:[%s766 + $0x48] sm:$0xff]
        %v843 = vld [vmem:[%s766 + $0x50] sm:$0xff]
        %v844 = vld [vmem:[%s766 + $0x58] sm:$0xff]
        %v845 = vld [vmem:[%s766 + $0x60] sm:$0xff]
        %v846 = vld [vmem:[%s766 + $0x68] sm:$0xff]
        %v847 = vld [vmem:[%s766 + $0x70] sm:$0xff]
        %v848 = vld [vmem:[%s766 + $0x78] sm:$0xff]
        %v849 = vld [vmem:[%s770] sm:$0x1]
        %v850 = vld [vmem:[%s770 + $0x1] sm:$0x1]
        %v851 = vld [vmem:[%s770 + $0x2] sm:$0x1]
        %v852 = vld [vmem:[%s770 + $0x3] sm:$0x1]
        %v857 = vlaneseq
        %v858 = vshrl.u32 %v857, 7
        %v859 = vsub.s32 0, %v858
        %v860 = vrot.slane %v849, %v859
        %v861 = vlaneseq
        %v862 = vshrl.u32 %v861, 7
        %v863 = vsub.s32 0, %v862
        %v864 = vrot.slane %v850, %v863
        %v865 = vlaneseq
        %v866 = vshrl.u32 %v865, 7
        %v867 = vsub.s32 0, %v866
        %v868 = vrot.slane %v851, %v867
        %v869 = vlaneseq
        %v870 = vshrl.u32 %v869, 7
        %v871 = vsub.s32 0, %v870
        %v872 = vrot.slane %v852, %v871
        %vm877 = vcmask 261120
        %v879 = vsel %vm877, %v832, 0
        %881 = vmatprep.subr.mxu0 0.0
        %882 = vmatpush1.msra.mxu0 %v833
        %883 = vmatprep.subr.mxu0 0.0
        %884 = vmatpush1.msra.mxu0 %v834
        %885 = vmatprep.subr.mxu0 0.0
        %886 = vmatpush1.msra.mxu0 %v835
        %887 = vmatprep.subr.mxu0 0.0
        %888 = vmatpush1.msra.mxu0 %v836
        %889 = vmatprep.subr.mxu0 0.0
        %890 = vmatpush1.msra.mxu0 0.0
        %891 = vmatprep.subr.mxu0 0.0
        %892 = vmatpush1.msra.mxu0 0.0
        %893 = vmatprep.subr.mxu0 0.0
        %894 = vmatpush1.msra.mxu0 0.0
        %895 = vmatprep.subr.mxu0 0.0
        %896 = vmatpush1.msra.mxu0 0.0
        %897 = vmatprep.subr.mxu0 0.0
        %898 = vmatpush1.msra.mxu0 0.0
        %899 = vmatprep.subr.mxu0 0.0
        %900 = vmatpush1.msra.mxu0 0.0
        %901 = vmatprep.subr.mxu0 0.0
        %902 = vmatpush1.msra.mxu0 0.0
        %903 = vmatprep.subr.mxu0 0.0
        %904 = vmatpush1.msra.mxu0 0.0
        %905 = vmatprep.subr.mxu0 0.0
        %906 = vmatpush1.msra.mxu0 0.0
        %907 = vmatprep.subr.mxu0 0.0
        %908 = vmatpush1.msra.mxu0 0.0
        %909 = vmatprep.subr.mxu0 0.0
        %910 = vmatpush1.msra.mxu0 0.0
        %911 = vmatprep.subr.mxu0 0.0
        %912 = vmatpush1.msra.mxu0 0.0
        %913 = vmatprep.subr.mxu0 0.0
        %914 = vmatpush1.msra.mxu0 0.0
        %915 = vmatprep.subr.mxu0 0.0
        %916 = vmatpush1.msra.mxu0 0.0
        %917 = vmatprep.subr.mxu0 0.0
        %918 = vmatpush1.msra.mxu0 0.0
        %919 = vmatprep.subr.mxu0 0.0
        %920 = vmatpush1.msra.mxu0 0.0
        %921 = vmatprep.subr.mxu0 0.0
        %922 = vmatpush1.msra.mxu0 0.0
        %923 = vmatprep.subr.mxu0 0.0
        %924 = vmatpush1.msra.mxu0 0.0
        %925 = vmatprep.subr.mxu0 0.0
        %926 = vmatpush1.msra.mxu0 0.0
        %927 = vmatprep.subr.mxu0 0.0
        %928 = vmatpush1.msra.mxu0 0.0
        %929 = vmatprep.subr.mxu0 0.0
        %930 = vmatpush1.msra.mxu0 0.0
        %931 = vmatprep.subr.mxu0 0.0
        %932 = vmatpush1.msra.mxu0 0.0
        %933 = vmatprep.subr.mxu0 0.0
        %934 = vmatpush1.msra.mxu0 0.0
        %935 = vmatprep.subr.mxu0 0.0
        %936 = vmatpush1.msra.mxu0 0.0
        %937 = vmatprep.subr.mxu0 0.0
        %938 = vmatpush1.msra.mxu0 0.0
        %939 = vmatprep.subr.mxu0 0.0
        %940 = vmatpush1.msra.mxu0 0.0
        %941 = vmatprep.subr.mxu0 0.0
        %942 = vmatpush1.msra.mxu0 0.0
        %943 = vmatprep.subr.mxu0 0.0
        %944 = vmatpush1.msra.mxu0 0.0
        %945 = vmatprep.mubr.f32.mxu0 0.0
        %946 = vmatmul.mubr.f32.gmra.mrb[0].mxu0 %v879
        %v947 = vpop.f32.mrb[0].mxu0
        %v948 = vadd.f32 %v860, %v947
        %v949 = vpop.f32.mrb[0].mxu0
        %950 = vdwg.mxu0
        %951 = vmatprep.subr.mxu0 0.0
        %952 = vmatpush1.msra.mxu0 %v837
        %953 = vmatprep.subr.mxu0 0.0
        %954 = vmatpush1.msra.mxu0 %v838
        %955 = vmatprep.subr.mxu0 0.0
        %956 = vmatpush1.msra.mxu0 %v839
        %957 = vmatprep.subr.mxu0 0.0
        %958 = vmatpush1.msra.mxu0 %v840
        %959 = vmatprep.subr.mxu0 0.0
        %960 = vmatpush1.msra.mxu0 0.0
        %961 = vmatprep.subr.mxu0 0.0
        %962 = vmatpush1.msra.mxu0 0.0
        %963 = vmatprep.subr.mxu0 0.0
        %964 = vmatpush1.msra.mxu0 0.0
        %965 = vmatprep.subr.mxu0 0.0
        %966 = vmatpush1.msra.mxu0 0.0
        %967 = vmatprep.subr.mxu0 0.0
        %968 = vmatpush1.msra.mxu0 0.0
        %969 = vmatprep.subr.mxu0 0.0
        %970 = vmatpush1.msra.mxu0 0.0
        %971 = vmatprep.subr.mxu0 0.0
        %972 = vmatpush1.msra.mxu0 0.0
        %973 = vmatprep.subr.mxu0 0.0
        %974 = vmatpush1.msra.mxu0 0.0
        %975 = vmatprep.subr.mxu0 0.0
        %976 = vmatpush1.msra.mxu0 0.0
        %977 = vmatprep.subr.mxu0 0.0
        %978 = vmatpush1.msra.mxu0 0.0
        %979 = vmatprep.subr.mxu0 0.0
        %980 = vmatpush1.msra.mxu0 0.0
        %981 = vmatprep.subr.mxu0 0.0
        %982 = vmatpush1.msra.mxu0 0.0
        %983 = vmatprep.subr.mxu0 0.0
        %984 = vmatpush1.msra.mxu0 0.0
        %985 = vmatprep.subr.mxu0 0.0
        %986 = vmatpush1.msra.mxu0 0.0
        %987 = vmatprep.subr.mxu0 0.0
        %988 = vmatpush1.msra.mxu0 0.0
        %989 = vmatprep.subr.mxu0 0.0
        %990 = vmatpush1.msra.mxu0 0.0
        %991 = vmatprep.subr.mxu0 0.0
        %992 = vmatpush1.msra.mxu0 0.0
        %993 = vmatprep.subr.mxu0 0.0
        %994 = vmatpush1.msra.mxu0 0.0
        %995 = vmatprep.subr.mxu0 0.0
        %996 = vmatpush1.msra.mxu0 0.0
        %997 = vmatprep.subr.mxu0 0.0
        %998 = vmatpush1.msra.mxu0 0.0
        %999 = vmatprep.subr.mxu0 0.0
        %1000 = vmatpush1.msra.mxu0 0.0
        %1001 = vmatprep.subr.mxu0 0.0
        %1002 = vmatpush1.msra.mxu0 0.0
        %1003 = vmatprep.subr.mxu0 0.0
        %1004 = vmatpush1.msra.mxu0 0.0
        %1005 = vmatprep.subr.mxu0 0.0
        %1006 = vmatpush1.msra.mxu0 0.0
        %1007 = vmatprep.subr.mxu0 0.0
        %1008 = vmatpush1.msra.mxu0 0.0
        %1009 = vmatprep.subr.mxu0 0.0
        %1010 = vmatpush1.msra.mxu0 0.0
        %1011 = vmatprep.subr.mxu0 0.0
        %1012 = vmatpush1.msra.mxu0 0.0
        %1013 = vmatprep.subr.mxu0 0.0
        %1014 = vmatpush1.msra.mxu0 0.0
        %1015 = vmatprep.mubr.f32.mxu0 0.0
        %1016 = vmatmul.mubr.f32.gmra.mrb[0].mxu0 %v879
        %v1017 = vpop.f32.mrb[0].mxu0
        %v1018 = vadd.f32 %v864, %v1017
        %v1019 = vpop.f32.mrb[0].mxu0
        %1020 = vdwg.mxu0
        %1021 = vmatprep.subr.mxu0 0.0
        %1022 = vmatpush1.msra.mxu0 %v841
        %1023 = vmatprep.subr.mxu0 0.0
        %1024 = vmatpush1.msra.mxu0 %v842
        %1025 = vmatprep.subr.mxu0 0.0
        %1026 = vmatpush1.msra.mxu0 %v843
        %1027 = vmatprep.subr.mxu0 0.0
        %1028 = vmatpush1.msra.mxu0 %v844
        %1029 = vmatprep.subr.mxu0 0.0
        %1030 = vmatpush1.msra.mxu0 0.0
        %1031 = vmatprep.subr.mxu0 0.0
        %1032 = vmatpush1.msra.mxu0 0.0
        %1033 = vmatprep.subr.mxu0 0.0
        %1034 = vmatpush1.msra.mxu0 0.0
        %1035 = vmatprep.subr.mxu0 0.0
        %1036 = vmatpush1.msra.mxu0 0.0
        %1037 = vmatprep.subr.mxu0 0.0
        %1038 = vmatpush1.msra.mxu0 0.0
        %1039 = vmatprep.subr.mxu0 0.0
        %1040 = vmatpush1.msra.mxu0 0.0
        %1041 = vmatprep.subr.mxu0 0.0
        %1042 = vmatpush1.msra.mxu0 0.0
        %1043 = vmatprep.subr.mxu0 0.0
        %1044 = vmatpush1.msra.mxu0 0.0
        %1045 = vmatprep.subr.mxu0 0.0
        %1046 = vmatpush1.msra.mxu0 0.0
        %1047 = vmatprep.subr.mxu0 0.0
        %1048 = vmatpush1.msra.mxu0 0.0
        %1049 = vmatprep.subr.mxu0 0.0
        %1050 = vmatpush1.msra.mxu0 0.0
        %1051 = vmatprep.subr.mxu0 0.0
        %1052 = vmatpush1.msra.mxu0 0.0
        %1053 = vmatprep.subr.mxu0 0.0
        %1054 = vmatpush1.msra.mxu0 0.0
        %1055 = vmatprep.subr.mxu0 0.0
        %1056 = vmatpush1.msra.mxu0 0.0
        %1057 = vmatprep.subr.mxu0 0.0
        %1058 = vmatpush1.msra.mxu0 0.0
        %1059 = vmatprep.subr.mxu0 0.0
        %1060 = vmatpush1.msra.mxu0 0.0
        %1061 = vmatprep.subr.mxu0 0.0
        %1062 = vmatpush1.msra.mxu0 0.0
        %1063 = vmatprep.subr.mxu0 0.0
        %1064 = vmatpush1.msra.mxu0 0.0
        %1065 = vmatprep.subr.mxu0 0.0
        %1066 = vmatpush1.msra.mxu0 0.0
        %1067 = vmatprep.subr.mxu0 0.0
        %1068 = vmatpush1.msra.mxu0 0.0
        %1069 = vmatprep.subr.mxu0 0.0
        %1070 = vmatpush1.msra.mxu0 0.0
        %1071 = vmatprep.subr.mxu0 0.0
        %1072 = vmatpush1.msra.mxu0 0.0
        %1073 = vmatprep.subr.mxu0 0.0
        %1074 = vmatpush1.msra.mxu0 0.0
        %1075 = vmatprep.subr.mxu0 0.0
        %1076 = vmatpush1.msra.mxu0 0.0
        %1077 = vmatprep.subr.mxu0 0.0
        %1078 = vmatpush1.msra.mxu0 0.0
        %1079 = vmatprep.subr.mxu0 0.0
        %1080 = vmatpush1.msra.mxu0 0.0
        %1081 = vmatprep.subr.mxu0 0.0
        %1082 = vmatpush1.msra.mxu0 0.0
        %1083 = vmatprep.subr.mxu0 0.0
        %1084 = vmatpush1.msra.mxu0 0.0
        %1085 = vmatprep.mubr.f32.mxu0 0.0
        %1086 = vmatmul.mubr.f32.gmra.mrb[0].mxu0 %v879
        %v1087 = vpop.f32.mrb[0].mxu0
        %v1088 = vadd.f32 %v868, %v1087
        %v1089 = vpop.f32.mrb[0].mxu0
        %1090 = vdwg.mxu0
        %1091 = vmatprep.subr.mxu0 0.0
        %1092 = vmatpush1.msra.mxu0 %v845
        %1093 = vmatprep.subr.mxu0 0.0
        %1094 = vmatpush1.msra.mxu0 %v846
        %1095 = vmatprep.subr.mxu0 0.0
        %1096 = vmatpush1.msra.mxu0 %v847
        %1097 = vmatprep.subr.mxu0 0.0
        %1098 = vmatpush1.msra.mxu0 %v848
        %1099 = vmatprep.subr.mxu0 0.0
        %1100 = vmatpush1.msra.mxu0 0.0
        %1101 = vmatprep.subr.mxu0 0.0
        %1102 = vmatpush1.msra.mxu0 0.0
        %1103 = vmatprep.subr.mxu0 0.0
        %1104 = vmatpush1.msra.mxu0 0.0
        %1105 = vmatprep.subr.mxu0 0.0
        %1106 = vmatpush1.msra.mxu0 0.0
        %1107 = vmatprep.subr.mxu0 0.0
        %1108 = vmatpush1.msra.mxu0 0.0
        %1109 = vmatprep.subr.mxu0 0.0
        %1110 = vmatpush1.msra.mxu0 0.0
        %1111 = vmatprep.subr.mxu0 0.0
        %1112 = vmatpush1.msra.mxu0 0.0
        %1113 = vmatprep.subr.mxu0 0.0
        %1114 = vmatpush1.msra.mxu0 0.0
        %1115 = vmatprep.subr.mxu0 0.0
        %1116 = vmatpush1.msra.mxu0 0.0
        %1117 = vmatprep.subr.mxu0 0.0
        %1118 = vmatpush1.msra.mxu0 0.0
        %1119 = vmatprep.subr.mxu0 0.0
        %1120 = vmatpush1.msra.mxu0 0.0
        %1121 = vmatprep.subr.mxu0 0.0
        %1122 = vmatpush1.msra.mxu0 0.0
        %1123 = vmatprep.subr.mxu0 0.0
        %1124 = vmatpush1.msra.mxu0 0.0
        %1125 = vmatprep.subr.mxu0 0.0
        %1126 = vmatpush1.msra.mxu0 0.0
        %1127 = vmatprep.subr.mxu0 0.0
        %1128 = vmatpush1.msra.mxu0 0.0
        %1129 = vmatprep.subr.mxu0 0.0
        %1130 = vmatpush1.msra.mxu0 0.0
        %1131 = vmatprep.subr.mxu0 0.0
        %1132 = vmatpush1.msra.mxu0 0.0
        %1133 = vmatprep.subr.mxu0 0.0
        %1134 = vmatpush1.msra.mxu0 0.0
        %1135 = vmatprep.subr.mxu0 0.0
        %1136 = vmatpush1.msra.mxu0 0.0
        %1137 = vmatprep.subr.mxu0 0.0
        %1138 = vmatpush1.msra.mxu0 0.0
        %1139 = vmatprep.subr.mxu0 0.0
        %1140 = vmatpush1.msra.mxu0 0.0
        %1141 = vmatprep.subr.mxu0 0.0
        %1142 = vmatpush1.msra.mxu0 0.0
        %1143 = vmatprep.subr.mxu0 0.0
        %1144 = vmatpush1.msra.mxu0 0.0
        %1145 = vmatprep.subr.mxu0 0.0
        %1146 = vmatpush1.msra.mxu0 0.0
        %1147 = vmatprep.subr.mxu0 0.0
        %1148 = vmatpush1.msra.mxu0 0.0
        %1149 = vmatprep.subr.mxu0 0.0
        %1150 = vmatpush1.msra.mxu0 0.0
        %1151 = vmatprep.subr.mxu0 0.0
        %1152 = vmatpush1.msra.mxu0 0.0
        %1153 = vmatprep.subr.mxu0 0.0
        %1154 = vmatpush1.msra.mxu0 0.0
        %1155 = vmatprep.mubr.f32.mxu0 0.0
        %1156 = vmatmul.mubr.f32.gmra.mrb[0].mxu0 %v879
        %v1157 = vpop.f32.mrb[0].mxu0
        %v1158 = vadd.f32 %v872, %v1157
        %v1159 = vpop.f32.mrb[0].mxu0
        %1160 = vdwg.mxu0
        %v1161 = vld [vmem:[%s775] sm:$0xff]
        %v1162 = vld [vmem:[%s775 + $0x8] sm:$0xff]
        %v1163 = vld [vmem:[%s775 + $0x10] sm:$0xff]
        %v1164 = vld [vmem:[%s775 + $0x18] sm:$0xff]
        %v1165 = vld [vmem:[%s775 + $0x20] sm:$0xff]
        %v1166 = vld [vmem:[%s775 + $0x28] sm:$0xff]
        %v1167 = vld [vmem:[%s775 + $0x30] sm:$0xff]
        %v1168 = vld [vmem:[%s775 + $0x38] sm:$0xff]
        %v1169 = vld [vmem:[%s775 + $0x40] sm:$0xff]
        %v1170 = vld [vmem:[%s775 + $0x48] sm:$0xff]
        %v1171 = vld [vmem:[%s775 + $0x50] sm:$0xff]
        %v1172 = vld [vmem:[%s775 + $0x58] sm:$0xff]
        %v1173 = vld [vmem:[%s775 + $0x60] sm:$0xff]
        %v1174 = vld [vmem:[%s775 + $0x68] sm:$0xff]
        %v1175 = vld [vmem:[%s775 + $0x70] sm:$0xff]
        %v1176 = vld [vmem:[%s775 + $0x78] sm:$0xff]
        %v1177 = vld [vmem:[%s779] sm:$0x1]
        %v1178 = vld [vmem:[%s779 + $0x1] sm:$0x1]
        %v1179 = vld [vmem:[%s779 + $0x2] sm:$0x1]
        %v1180 = vld [vmem:[%s779 + $0x3] sm:$0x1]
        %v1185 = vlaneseq
        %v1186 = vshrl.u32 %v1185, 7
        %v1187 = vsub.s32 0, %v1186
        %v1188 = vrot.slane %v1177, %v1187
        %v1189 = vlaneseq
        %v1190 = vshrl.u32 %v1189, 7
        %v1191 = vsub.s32 0, %v1190
        %v1192 = vrot.slane %v1178, %v1191
        %v1193 = vlaneseq
        %v1194 = vshrl.u32 %v1193, 7
        %v1195 = vsub.s32 0, %v1194
        %v1196 = vrot.slane %v1179, %v1195
        %v1197 = vlaneseq
        %v1198 = vshrl.u32 %v1197, 7
        %v1199 = vsub.s32 0, %v1198
        %v1200 = vrot.slane %v1180, %v1199
        %1205 = vmatprep.subr.mxu0 0.0
        %1206 = vmatpush1.msra.mxu0 %v1161
        %1207 = vmatprep.subr.mxu0 0.0
        %1208 = vmatpush1.msra.mxu0 %v1162
        %1209 = vmatprep.subr.mxu0 0.0
        %1210 = vmatpush1.msra.mxu0 %v1163
        %1211 = vmatprep.subr.mxu0 0.0
        %1212 = vmatpush1.msra.mxu0 %v1164
        %1213 = vmatprep.subr.mxu0 0.0
        %1214 = vmatpush1.msra.mxu0 0.0
        %1215 = vmatprep.subr.mxu0 0.0
        %1216 = vmatpush1.msra.mxu0 0.0
        %1217 = vmatprep.subr.mxu0 0.0
        %1218 = vmatpush1.msra.mxu0 0.0
        %1219 = vmatprep.subr.mxu0 0.0
        %1220 = vmatpush1.msra.mxu0 0.0
        %1221 = vmatprep.subr.mxu0 0.0
        %1222 = vmatpush1.msra.mxu0 0.0
        %1223 = vmatprep.subr.mxu0 0.0
        %1224 = vmatpush1.msra.mxu0 0.0
        %1225 = vmatprep.subr.mxu0 0.0
        %1226 = vmatpush1.msra.mxu0 0.0
        %1227 = vmatprep.subr.mxu0 0.0
        %1228 = vmatpush1.msra.mxu0 0.0
        %1229 = vmatprep.subr.mxu0 0.0
        %1230 = vmatpush1.msra.mxu0 0.0
        %1231 = vmatprep.subr.mxu0 0.0
        %1232 = vmatpush1.msra.mxu0 0.0
        %1233 = vmatprep.subr.mxu0 0.0
        %1234 = vmatpush1.msra.mxu0 0.0
        %1235 = vmatprep.subr.mxu0 0.0
        %1236 = vmatpush1.msra.mxu0 0.0
        %1237 = vmatprep.subr.mxu0 0.0
        %1238 = vmatpush1.msra.mxu0 0.0
        %1239 = vmatprep.subr.mxu0 0.0
        %1240 = vmatpush1.msra.mxu0 0.0
        %1241 = vmatprep.subr.mxu0 0.0
        %1242 = vmatpush1.msra.mxu0 0.0
        %1243 = vmatprep.subr.mxu0 0.0
        %1244 = vmatpush1.msra.mxu0 0.0
        %1245 = vmatprep.subr.mxu0 0.0
        %1246 = vmatpush1.msra.mxu0 0.0
        %1247 = vmatprep.subr.mxu0 0.0
        %1248 = vmatpush1.msra.mxu0 0.0
        %1249 = vmatprep.subr.mxu0 0.0
        %1250 = vmatpush1.msra.mxu0 0.0
        %1251 = vmatprep.subr.mxu0 0.0
        %1252 = vmatpush1.msra.mxu0 0.0
        %1253 = vmatprep.subr.mxu0 0.0
        %1254 = vmatpush1.msra.mxu0 0.0
        %1255 = vmatprep.subr.mxu0 0.0
        %1256 = vmatpush1.msra.mxu0 0.0
        %1257 = vmatprep.subr.mxu0 0.0
        %1258 = vmatpush1.msra.mxu0 0.0
        %1259 = vmatprep.subr.mxu0 0.0
        %1260 = vmatpush1.msra.mxu0 0.0
        %1261 = vmatprep.subr.mxu0 0.0
        %1262 = vmatpush1.msra.mxu0 0.0
        %1263 = vmatprep.subr.mxu0 0.0
        %1264 = vmatpush1.msra.mxu0 0.0
        %1265 = vmatprep.subr.mxu0 0.0
        %1266 = vmatpush1.msra.mxu0 0.0
        %1267 = vmatprep.subr.mxu0 0.0
        %1268 = vmatpush1.msra.mxu0 0.0
        %1269 = vmatprep.mubr.f32.mxu0 0.0
        %1270 = vmatmul.mubr.f32.gmra.mrb[0].mxu0 %v879
        %v1271 = vpop.f32.mrb[0].mxu0
        %v1272 = vadd.f32 %v1188, %v1271
        %v1273 = vpop.f32.mrb[0].mxu0
        %1274 = vdwg.mxu0
        %1275 = vmatprep.subr.mxu0 0.0
        %1276 = vmatpush1.msra.mxu0 %v1165
        %1277 = vmatprep.subr.mxu0 0.0
        %1278 = vmatpush1.msra.mxu0 %v1166
        %1279 = vmatprep.subr.mxu0 0.0
        %1280 = vmatpush1.msra.mxu0 %v1167
        %1281 = vmatprep.subr.mxu0 0.0
        %1282 = vmatpush1.msra.mxu0 %v1168
        %1283 = vmatprep.subr.mxu0 0.0
        %1284 = vmatpush1.msra.mxu0 0.0
        %1285 = vmatprep.subr.mxu0 0.0
        %1286 = vmatpush1.msra.mxu0 0.0
        %1287 = vmatprep.subr.mxu0 0.0
        %1288 = vmatpush1.msra.mxu0 0.0
        %1289 = vmatprep.subr.mxu0 0.0
        %1290 = vmatpush1.msra.mxu0 0.0
        %1291 = vmatprep.subr.mxu0 0.0
        %1292 = vmatpush1.msra.mxu0 0.0
        %1293 = vmatprep.subr.mxu0 0.0
        %1294 = vmatpush1.msra.mxu0 0.0
        %1295 = vmatprep.subr.mxu0 0.0
        %1296 = vmatpush1.msra.mxu0 0.0
        %1297 = vmatprep.subr.mxu0 0.0
        %1298 = vmatpush1.msra.mxu0 0.0
        %1299 = vmatprep.subr.mxu0 0.0
        %1300 = vmatpush1.msra.mxu0 0.0
        %1301 = vmatprep.subr.mxu0 0.0
        %1302 = vmatpush1.msra.mxu0 0.0
        %1303 = vmatprep.subr.mxu0 0.0
        %1304 = vmatpush1.msra.mxu0 0.0
        %1305 = vmatprep.subr.mxu0 0.0
        %1306 = vmatpush1.msra.mxu0 0.0
        %1307 = vmatprep.subr.mxu0 0.0
        %1308 = vmatpush1.msra.mxu0 0.0
        %1309 = vmatprep.subr.mxu0 0.0
        %1310 = vmatpush1.msra.mxu0 0.0
        %1311 = vmatprep.subr.mxu0 0.0
        %1312 = vmatpush1.msra.mxu0 0.0
        %1313 = vmatprep.subr.mxu0 0.0
        %1314 = vmatpush1.msra.mxu0 0.0
        %1315 = vmatprep.subr.mxu0 0.0
        %1316 = vmatpush1.msra.mxu0 0.0
        %1317 = vmatprep.subr.mxu0 0.0
        %1318 = vmatpush1.msra.mxu0 0.0
        %1319 = vmatprep.subr.mxu0 0.0
        %1320 = vmatpush1.msra.mxu0 0.0
        %1321 = vmatprep.subr.mxu0 0.0
        %1322 = vmatpush1.msra.mxu0 0.0
        %1323 = vmatprep.subr.mxu0 0.0
        %1324 = vmatpush1.msra.mxu0 0.0
        %1325 = vmatprep.subr.mxu0 0.0
        %1326 = vmatpush1.msra.mxu0 0.0
        %1327 = vmatprep.subr.mxu0 0.0
        %1328 = vmatpush1.msra.mxu0 0.0
        %1329 = vmatprep.subr.mxu0 0.0
        %1330 = vmatpush1.msra.mxu0 0.0
        %1331 = vmatprep.subr.mxu0 0.0
        %1332 = vmatpush1.msra.mxu0 0.0
        %1333 = vmatprep.subr.mxu0 0.0
        %1334 = vmatpush1.msra.mxu0 0.0
        %1335 = vmatprep.subr.mxu0 0.0
        %1336 = vmatpush1.msra.mxu0 0.0
        %1337 = vmatprep.subr.mxu0 0.0
        %1338 = vmatpush1.msra.mxu0 0.0
        %1339 = vmatprep.mubr.f32.mxu0 0.0
        %1340 = vmatmul.mubr.f32.gmra.mrb[0].mxu0 %v879
        %v1341 = vpop.f32.mrb[0].mxu0
        %v1342 = vadd.f32 %v1192, %v1341
        %v1343 = vpop.f32.mrb[0].mxu0
        %1344 = vdwg.mxu0
        %1345 = vmatprep.subr.mxu0 0.0
        %1346 = vmatpush1.msra.mxu0 %v1169
        %1347 = vmatprep.subr.mxu0 0.0
        %1348 = vmatpush1.msra.mxu0 %v1170
        %1349 = vmatprep.subr.mxu0 0.0
        %1350 = vmatpush1.msra.mxu0 %v1171
        %1351 = vmatprep.subr.mxu0 0.0
        %1352 = vmatpush1.msra.mxu0 %v1172
        %1353 = vmatprep.subr.mxu0 0.0
        %1354 = vmatpush1.msra.mxu0 0.0
        %1355 = vmatprep.subr.mxu0 0.0
        %1356 = vmatpush1.msra.mxu0 0.0
        %1357 = vmatprep.subr.mxu0 0.0
        %1358 = vmatpush1.msra.mxu0 0.0
        %1359 = vmatprep.subr.mxu0 0.0
        %1360 = vmatpush1.msra.mxu0 0.0
        %1361 = vmatprep.subr.mxu0 0.0
        %1362 = vmatpush1.msra.mxu0 0.0
        %1363 = vmatprep.subr.mxu0 0.0
        %1364 = vmatpush1.msra.mxu0 0.0
        %1365 = vmatprep.subr.mxu0 0.0
        %1366 = vmatpush1.msra.mxu0 0.0
        %1367 = vmatprep.subr.mxu0 0.0
        %1368 = vmatpush1.msra.mxu0 0.0
        %1369 = vmatprep.subr.mxu0 0.0
        %1370 = vmatpush1.msra.mxu0 0.0
        %1371 = vmatprep.subr.mxu0 0.0
        %1372 = vmatpush1.msra.mxu0 0.0
        %1373 = vmatprep.subr.mxu0 0.0
        %1374 = vmatpush1.msra.mxu0 0.0
        %1375 = vmatprep.subr.mxu0 0.0
        %1376 = vmatpush1.msra.mxu0 0.0
        %1377 = vmatprep.subr.mxu0 0.0
        %1378 = vmatpush1.msra.mxu0 0.0
        %1379 = vmatprep.subr.mxu0 0.0
        %1380 = vmatpush1.msra.mxu0 0.0
        %1381 = vmatprep.subr.mxu0 0.0
        %1382 = vmatpush1.msra.mxu0 0.0
        %1383 = vmatprep.subr.mxu0 0.0
        %1384 = vmatpush1.msra.mxu0 0.0
        %1385 = vmatprep.subr.mxu0 0.0
        %1386 = vmatpush1.msra.mxu0 0.0
        %1387 = vmatprep.subr.mxu0 0.0
        %1388 = vmatpush1.msra.mxu0 0.0
        %1389 = vmatprep.subr.mxu0 0.0
        %1390 = vmatpush1.msra.mxu0 0.0
        %1391 = vmatprep.subr.mxu0 0.0
        %1392 = vmatpush1.msra.mxu0 0.0
        %1393 = vmatprep.subr.mxu0 0.0
        %1394 = vmatpush1.msra.mxu0 0.0
        %1395 = vmatprep.subr.mxu0 0.0
        %1396 = vmatpush1.msra.mxu0 0.0
        %1397 = vmatprep.subr.mxu0 0.0
        %1398 = vmatpush1.msra.mxu0 0.0
        %1399 = vmatprep.subr.mxu0 0.0
        %1400 = vmatpush1.msra.mxu0 0.0
        %1401 = vmatprep.subr.mxu0 0.0
        %1402 = vmatpush1.msra.mxu0 0.0
        %1403 = vmatprep.subr.mxu0 0.0
        %1404 = vmatpush1.msra.mxu0 0.0
        %1405 = vmatprep.subr.mxu0 0.0
        %1406 = vmatpush1.msra.mxu0 0.0
        %1407 = vmatprep.subr.mxu0 0.0
        %1408 = vmatpush1.msra.mxu0 0.0
        %1409 = vmatprep.mubr.f32.mxu0 0.0
        %1410 = vmatmul.mubr.f32.gmra.mrb[0].mxu0 %v879
        %v1411 = vpop.f32.mrb[0].mxu0
        %v1412 = vadd.f32 %v1196, %v1411
        %v1413 = vpop.f32.mrb[0].mxu0
        %1414 = vdwg.mxu0
        %1415 = vmatprep.subr.mxu0 0.0
        %1416 = vmatpush1.msra.mxu0 %v1173
        %1417 = vmatprep.subr.mxu0 0.0
        %1418 = vmatpush1.msra.mxu0 %v1174
        %1419 = vmatprep.subr.mxu0 0.0
        %1420 = vmatpush1.msra.mxu0 %v1175
        %1421 = vmatprep.subr.mxu0 0.0
        %1422 = vmatpush1.msra.mxu0 %v1176
        %1423 = vmatprep.subr.mxu0 0.0
        %1424 = vmatpush1.msra.mxu0 0.0
        %1425 = vmatprep.subr.mxu0 0.0
        %1426 = vmatpush1.msra.mxu0 0.0
        %1427 = vmatprep.subr.mxu0 0.0
        %1428 = vmatpush1.msra.mxu0 0.0
        %1429 = vmatprep.subr.mxu0 0.0
        %1430 = vmatpush1.msra.mxu0 0.0
        %1431 = vmatprep.subr.mxu0 0.0
        %1432 = vmatpush1.msra.mxu0 0.0
        %1433 = vmatprep.subr.mxu0 0.0
        %1434 = vmatpush1.msra.mxu0 0.0
        %1435 = vmatprep.subr.mxu0 0.0
        %1436 = vmatpush1.msra.mxu0 0.0
        %1437 = vmatprep.subr.mxu0 0.0
        %1438 = vmatpush1.msra.mxu0 0.0
        %1439 = vmatprep.subr.mxu0 0.0
        %1440 = vmatpush1.msra.mxu0 0.0
        %1441 = vmatprep.subr.mxu0 0.0
        %1442 = vmatpush1.msra.mxu0 0.0
        %1443 = vmatprep.subr.mxu0 0.0
        %1444 = vmatpush1.msra.mxu0 0.0
        %1445 = vmatprep.subr.mxu0 0.0
        %1446 = vmatpush1.msra.mxu0 0.0
        %1447 = vmatprep.subr.mxu0 0.0
        %1448 = vmatpush1.msra.mxu0 0.0
        %1449 = vmatprep.subr.mxu0 0.0
        %1450 = vmatpush1.msra.mxu0 0.0
        %1451 = vmatprep.subr.mxu0 0.0
        %1452 = vmatpush1.msra.mxu0 0.0
        %1453 = vmatprep.subr.mxu0 0.0
        %1454 = vmatpush1.msra.mxu0 0.0
        %1455 = vmatprep.subr.mxu0 0.0
        %1456 = vmatpush1.msra.mxu0 0.0
        %1457 = vmatprep.subr.mxu0 0.0
        %1458 = vmatpush1.msra.mxu0 0.0
        %1459 = vmatprep.subr.mxu0 0.0
        %1460 = vmatpush1.msra.mxu0 0.0
        %1461 = vmatprep.subr.mxu0 0.0
        %1462 = vmatpush1.msra.mxu0 0.0
        %1463 = vmatprep.subr.mxu0 0.0
        %1464 = vmatpush1.msra.mxu0 0.0
        %1465 = vmatprep.subr.mxu0 0.0
        %1466 = vmatpush1.msra.mxu0 0.0
        %1467 = vmatprep.subr.mxu0 0.0
        %1468 = vmatpush1.msra.mxu0 0.0
        %1469 = vmatprep.subr.mxu0 0.0
        %1470 = vmatpush1.msra.mxu0 0.0
        %1471 = vmatprep.subr.mxu0 0.0
        %1472 = vmatpush1.msra.mxu0 0.0
        %1473 = vmatprep.subr.mxu0 0.0
        %1474 = vmatpush1.msra.mxu0 0.0
        %1475 = vmatprep.subr.mxu0 0.0
        %1476 = vmatpush1.msra.mxu0 0.0
        %1477 = vmatprep.subr.mxu0 0.0
        %1478 = vmatpush1.msra.mxu0 0.0
        %1479 = vmatprep.mubr.f32.mxu0 0.0
        %1480 = vmatmul.mubr.f32.gmra.mrb[0].mxu0 %v879
        %v1481 = vpop.f32.mrb[0].mxu0
        %v1482 = vadd.f32 %v1200, %v1481
        %v1483 = vpop.f32.mrb[0].mxu0
        %1484 = vdwg.mxu0
        %v1485 = vld [vmem:[%s784] sm:$0xff]
        %v1486 = vld [vmem:[%s784 + $0x8] sm:$0xff]
        %v1487 = vld [vmem:[%s784 + $0x10] sm:$0xff]
        %v1488 = vld [vmem:[%s784 + $0x18] sm:$0xff]
        %v1489 = vld [vmem:[%s784 + $0x20] sm:$0xff]
        %v1490 = vld [vmem:[%s784 + $0x28] sm:$0xff]
        %v1491 = vld [vmem:[%s784 + $0x30] sm:$0xff]
        %v1492 = vld [vmem:[%s784 + $0x38] sm:$0xff]
        %v1493 = vld [vmem:[%s784 + $0x40] sm:$0xff]
        %v1494 = vld [vmem:[%s784 + $0x48] sm:$0xff]
        %v1495 = vld [vmem:[%s784 + $0x50] sm:$0xff]
        %v1496 = vld [vmem:[%s784 + $0x58] sm:$0xff]
        %v1497 = vld [vmem:[%s784 + $0x60] sm:$0xff]
        %v1498 = vld [vmem:[%s784 + $0x68] sm:$0xff]
        %v1499 = vld [vmem:[%s784 + $0x70] sm:$0xff]
        %v1500 = vld [vmem:[%s784 + $0x78] sm:$0xff]
        %v1501 = vld [vmem:[%s788] sm:$0x1]
        %v1502 = vld [vmem:[%s788 + $0x1] sm:$0x1]
        %v1503 = vld [vmem:[%s788 + $0x2] sm:$0x1]
        %v1504 = vld [vmem:[%s788 + $0x3] sm:$0x1]
        %v1509 = vlaneseq
        %v1510 = vshrl.u32 %v1509, 7
        %v1511 = vsub.s32 0, %v1510
        %v1512 = vrot.slane %v1501, %v1511
        %v1513 = vlaneseq
        %v1514 = vshrl.u32 %v1513, 7
        %v1515 = vsub.s32 0, %v1514
        %v1516 = vrot.slane %v1502, %v1515
        %v1517 = vlaneseq
        %v1518 = vshrl.u32 %v1517, 7
        %v1519 = vsub.s32 0, %v1518
        %v1520 = vrot.slane %v1503, %v1519
        %v1521 = vlaneseq
        %v1522 = vshrl.u32 %v1521, 7
        %v1523 = vsub.s32 0, %v1522
        %v1524 = vrot.slane %v1504, %v1523
        %1529 = vmatprep.subr.mxu0 0.0
        %1530 = vmatpush1.msra.mxu0 %v1485
        %1531 = vmatprep.subr.mxu0 0.0
        %1532 = vmatpush1.msra.mxu0 %v1486
        %1533 = vmatprep.subr.mxu0 0.0
        %1534 = vmatpush1.msra.mxu0 %v1487
        %1535 = vmatprep.subr.mxu0 0.0
        %1536 = vmatpush1.msra.mxu0 %v1488
        %1537 = vmatprep.subr.mxu0 0.0
        %1538 = vmatpush1.msra.mxu0 0.0
        %1539 = vmatprep.subr.mxu0 0.0
        %1540 = vmatpush1.msra.mxu0 0.0
        %1541 = vmatprep.subr.mxu0 0.0
        %1542 = vmatpush1.msra.mxu0 0.0
        %1543 = vmatprep.subr.mxu0 0.0
        %1544 = vmatpush1.msra.mxu0 0.0
        %1545 = vmatprep.subr.mxu0 0.0
        %1546 = vmatpush1.msra.mxu0 0.0
        %1547 = vmatprep.subr.mxu0 0.0
        %1548 = vmatpush1.msra.mxu0 0.0
        %1549 = vmatprep.subr.mxu0 0.0
        %1550 = vmatpush1.msra.mxu0 0.0
        %1551 = vmatprep.subr.mxu0 0.0
        %1552 = vmatpush1.msra.mxu0 0.0
        %1553 = vmatprep.subr.mxu0 0.0
        %1554 = vmatpush1.msra.mxu0 0.0
        %1555 = vmatprep.subr.mxu0 0.0
        %1556 = vmatpush1.msra.mxu0 0.0
        %1557 = vmatprep.subr.mxu0 0.0
        %1558 = vmatpush1.msra.mxu0 0.0
        %1559 = vmatprep.subr.mxu0 0.0
        %1560 = vmatpush1.msra.mxu0 0.0
        %1561 = vmatprep.subr.mxu0 0.0
        %1562 = vmatpush1.msra.mxu0 0.0
        %1563 = vmatprep.subr.mxu0 0.0
        %1564 = vmatpush1.msra.mxu0 0.0
        %1565 = vmatprep.subr.mxu0 0.0
        %1566 = vmatpush1.msra.mxu0 0.0
        %1567 = vmatprep.subr.mxu0 0.0
        %1568 = vmatpush1.msra.mxu0 0.0
        %1569 = vmatprep.subr.mxu0 0.0
        %1570 = vmatpush1.msra.mxu0 0.0
        %1571 = vmatprep.subr.mxu0 0.0
        %1572 = vmatpush1.msra.mxu0 0.0
        %1573 = vmatprep.subr.mxu0 0.0
        %1574 = vmatpush1.msra.mxu0 0.0
        %1575 = vmatprep.subr.mxu0 0.0
        %1576 = vmatpush1.msra.mxu0 0.0
        %1577 = vmatprep.subr.mxu0 0.0
        %1578 = vmatpush1.msra.mxu0 0.0
        %1579 = vmatprep.subr.mxu0 0.0
        %1580 = vmatpush1.msra.mxu0 0.0
        %1581 = vmatprep.subr.mxu0 0.0
        %1582 = vmatpush1.msra.mxu0 0.0
        %1583 = vmatprep.subr.mxu0 0.0
        %1584 = vmatpush1.msra.mxu0 0.0
        %1585 = vmatprep.subr.mxu0 0.0
        %1586 = vmatpush1.msra.mxu0 0.0
        %1587 = vmatprep.subr.mxu0 0.0
        %1588 = vmatpush1.msra.mxu0 0.0
        %1589 = vmatprep.subr.mxu0 0.0
        %1590 = vmatpush1.msra.mxu0 0.0
        %1591 = vmatprep.subr.mxu0 0.0
        %1592 = vmatpush1.msra.mxu0 0.0
        %1593 = vmatprep.mubr.f32.mxu0 0.0
        %1594 = vmatmul.mubr.f32.gmra.mrb[0].mxu0 %v879
        %v1595 = vpop.f32.mrb[0].mxu0
        %v1596 = vadd.f32 %v1512, %v1595
        %v1597 = vpop.f32.mrb[0].mxu0
        %1598 = vdwg.mxu0
        %1599 = vmatprep.subr.mxu0 0.0
        %1600 = vmatpush1.msra.mxu0 %v1489
        %1601 = vmatprep.subr.mxu0 0.0
        %1602 = vmatpush1.msra.mxu0 %v1490
        %1603 = vmatprep.subr.mxu0 0.0
        %1604 = vmatpush1.msra.mxu0 %v1491
        %1605 = vmatprep.subr.mxu0 0.0
        %1606 = vmatpush1.msra.mxu0 %v1492
        %1607 = vmatprep.subr.mxu0 0.0
        %1608 = vmatpush1.msra.mxu0 0.0
        %1609 = vmatprep.subr.mxu0 0.0
        %1610 = vmatpush1.msra.mxu0 0.0
        %1611 = vmatprep.subr.mxu0 0.0
        %1612 = vmatpush1.msra.mxu0 0.0
        %1613 = vmatprep.subr.mxu0 0.0
        %1614 = vmatpush1.msra.mxu0 0.0
        %1615 = vmatprep.subr.mxu0 0.0
        %1616 = vmatpush1.msra.mxu0 0.0
        %1617 = vmatprep.subr.mxu0 0.0
        %1618 = vmatpush1.msra.mxu0 0.0
        %1619 = vmatprep.subr.mxu0 0.0
        %1620 = vmatpush1.msra.mxu0 0.0
        %1621 = vmatprep.subr.mxu0 0.0
        %1622 = vmatpush1.msra.mxu0 0.0
        %1623 = vmatprep.subr.mxu0 0.0
        %1624 = vmatpush1.msra.mxu0 0.0
        %1625 = vmatprep.subr.mxu0 0.0
        %1626 = vmatpush1.msra.mxu0 0.0
        %1627 = vmatprep.subr.mxu0 0.0
        %1628 = vmatpush1.msra.mxu0 0.0
        %1629 = vmatprep.subr.mxu0 0.0
        %1630 = vmatpush1.msra.mxu0 0.0
        %1631 = vmatprep.subr.mxu0 0.0
        %1632 = vmatpush1.msra.mxu0 0.0
        %1633 = vmatprep.subr.mxu0 0.0
        %1634 = vmatpush1.msra.mxu0 0.0
        %1635 = vmatprep.subr.mxu0 0.0
        %1636 = vmatpush1.msra.mxu0 0.0
        %1637 = vmatprep.subr.mxu0 0.0
        %1638 = vmatpush1.msra.mxu0 0.0
        %1639 = vmatprep.subr.mxu0 0.0
        %1640 = vmatpush1.msra.mxu0 0.0
        %1641 = vmatprep.subr.mxu0 0.0
        %1642 = vmatpush1.msra.mxu0 0.0
        %1643 = vmatprep.subr.mxu0 0.0
        %1644 = vmatpush1.msra.mxu0 0.0
        %1645 = vmatprep.subr.mxu0 0.0
        %1646 = vmatpush1.msra.mxu0 0.0
        %1647 = vmatprep.subr.mxu0 0.0
        %1648 = vmatpush1.msra.mxu0 0.0
        %1649 = vmatprep.subr.mxu0 0.0
        %1650 = vmatpush1.msra.mxu0 0.0
        %1651 = vmatprep.subr.mxu0 0.0
        %1652 = vmatpush1.msra.mxu0 0.0
        %1653 = vmatprep.subr.mxu0 0.0
        %1654 = vmatpush1.msra.mxu0 0.0
        %1655 = vmatprep.subr.mxu0 0.0
        %1656 = vmatpush1.msra.mxu0 0.0
        %1657 = vmatprep.subr.mxu0 0.0
        %1658 = vmatpush1.msra.mxu0 0.0
        %1659 = vmatprep.subr.mxu0 0.0
        %1660 = vmatpush1.msra.mxu0 0.0
        %1661 = vmatprep.subr.mxu0 0.0
        %1662 = vmatpush1.msra.mxu0 0.0
        %1663 = vmatprep.mubr.f32.mxu0 0.0
        %1664 = vmatmul.mubr.f32.gmra.mrb[0].mxu0 %v879
        %v1665 = vpop.f32.mrb[0].mxu0
        %v1666 = vadd.f32 %v1516, %v1665
        %v1667 = vpop.f32.mrb[0].mxu0
        %1668 = vdwg.mxu0
        %1669 = vmatprep.subr.mxu0 0.0
        %1670 = vmatpush1.msra.mxu0 %v1493
        %1671 = vmatprep.subr.mxu0 0.0
        %1672 = vmatpush1.msra.mxu0 %v1494
        %1673 = vmatprep.subr.mxu0 0.0
        %1674 = vmatpush1.msra.mxu0 %v1495
        %1675 = vmatprep.subr.mxu0 0.0
        %1676 = vmatpush1.msra.mxu0 %v1496
        %1677 = vmatprep.subr.mxu0 0.0
        %1678 = vmatpush1.msra.mxu0 0.0
        %1679 = vmatprep.subr.mxu0 0.0
        %1680 = vmatpush1.msra.mxu0 0.0
        %1681 = vmatprep.subr.mxu0 0.0
        %1682 = vmatpush1.msra.mxu0 0.0
        %1683 = vmatprep.subr.mxu0 0.0
        %1684 = vmatpush1.msra.mxu0 0.0
        %1685 = vmatprep.subr.mxu0 0.0
        %1686 = vmatpush1.msra.mxu0 0.0
        %1687 = vmatprep.subr.mxu0 0.0
        %1688 = vmatpush1.msra.mxu0 0.0
        %1689 = vmatprep.subr.mxu0 0.0
        %1690 = vmatpush1.msra.mxu0 0.0
        %1691 = vmatprep.subr.mxu0 0.0
        %1692 = vmatpush1.msra.mxu0 0.0
        %1693 = vmatprep.subr.mxu0 0.0
        %1694 = vmatpush1.msra.mxu0 0.0
        %1695 = vmatprep.subr.mxu0 0.0
        %1696 = vmatpush1.msra.mxu0 0.0
        %1697 = vmatprep.subr.mxu0 0.0
        %1698 = vmatpush1.msra.mxu0 0.0
        %1699 = vmatprep.subr.mxu0 0.0
        %1700 = vmatpush1.msra.mxu0 0.0
        %1701 = vmatprep.subr.mxu0 0.0
        %1702 = vmatpush1.msra.mxu0 0.0
        %1703 = vmatprep.subr.mxu0 0.0
        %1704 = vmatpush1.msra.mxu0 0.0
        %1705 = vmatprep.subr.mxu0 0.0
        %1706 = vmatpush1.msra.mxu0 0.0
        %1707 = vmatprep.subr.mxu0 0.0
        %1708 = vmatpush1.msra.mxu0 0.0
        %1709 = vmatprep.subr.mxu0 0.0
        %1710 = vmatpush1.msra.mxu0 0.0
        %1711 = vmatprep.subr.mxu0 0.0
        %1712 = vmatpush1.msra.mxu0 0.0
        %1713 = vmatprep.subr.mxu0 0.0
        %1714 = vmatpush1.msra.mxu0 0.0
        %1715 = vmatprep.subr.mxu0 0.0
        %1716 = vmatpush1.msra.mxu0 0.0
        %1717 = vmatprep.subr.mxu0 0.0
        %1718 = vmatpush1.msra.mxu0 0.0
        %1719 = vmatprep.subr.mxu0 0.0
        %1720 = vmatpush1.msra.mxu0 0.0
        %1721 = vmatprep.subr.mxu0 0.0
        %1722 = vmatpush1.msra.mxu0 0.0
        %1723 = vmatprep.subr.mxu0 0.0
        %1724 = vmatpush1.msra.mxu0 0.0
        %1725 = vmatprep.subr.mxu0 0.0
        %1726 = vmatpush1.msra.mxu0 0.0
        %1727 = vmatprep.subr.mxu0 0.0
        %1728 = vmatpush1.msra.mxu0 0.0
        %1729 = vmatprep.subr.mxu0 0.0
        %1730 = vmatpush1.msra.mxu0 0.0
        %1731 = vmatprep.subr.mxu0 0.0
        %1732 = vmatpush1.msra.mxu0 0.0
        %1733 = vmatprep.mubr.f32.mxu0 0.0
        %1734 = vmatmul.mubr.f32.gmra.mrb[0].mxu0 %v879
        %v1735 = vpop.f32.mrb[0].mxu0
        %v1736 = vadd.f32 %v1520, %v1735
        %v1737 = vpop.f32.mrb[0].mxu0
        %1738 = vdwg.mxu0
        %1739 = vmatprep.subr.mxu0 0.0
        %1740 = vmatpush1.msra.mxu0 %v1497
        %1741 = vmatprep.subr.mxu0 0.0
        %1742 = vmatpush1.msra.mxu0 %v1498
        %1743 = vmatprep.subr.mxu0 0.0
        %1744 = vmatpush1.msra.mxu0 %v1499
        %1745 = vmatprep.subr.mxu0 0.0
        %1746 = vmatpush1.msra.mxu0 %v1500
        %1747 = vmatprep.subr.mxu0 0.0
        %1748 = vmatpush1.msra.mxu0 0.0
        %1749 = vmatprep.subr.mxu0 0.0
        %1750 = vmatpush1.msra.mxu0 0.0
        %1751 = vmatprep.subr.mxu0 0.0
        %1752 = vmatpush1.msra.mxu0 0.0
        %1753 = vmatprep.subr.mxu0 0.0
        %1754 = vmatpush1.msra.mxu0 0.0
        %1755 = vmatprep.subr.mxu0 0.0
        %1756 = vmatpush1.msra.mxu0 0.0
        %1757 = vmatprep.subr.mxu0 0.0
        %1758 = vmatpush1.msra.mxu0 0.0
        %1759 = vmatprep.subr.mxu0 0.0
        %1760 = vmatpush1.msra.mxu0 0.0
        %1761 = vmatprep.subr.mxu0 0.0
        %1762 = vmatpush1.msra.mxu0 0.0
        %1763 = vmatprep.subr.mxu0 0.0
        %1764 = vmatpush1.msra.mxu0 0.0
        %1765 = vmatprep.subr.mxu0 0.0
        %1766 = vmatpush1.msra.mxu0 0.0
        %1767 = vmatprep.subr.mxu0 0.0
        %1768 = vmatpush1.msra.mxu0 0.0
        %1769 = vmatprep.subr.mxu0 0.0
        %1770 = vmatpush1.msra.mxu0 0.0
        %1771 = vmatprep.subr.mxu0 0.0
        %1772 = vmatpush1.msra.mxu0 0.0
        %1773 = vmatprep.subr.mxu0 0.0
        %1774 = vmatpush1.msra.mxu0 0.0
        %1775 = vmatprep.subr.mxu0 0.0
        %1776 = vmatpush1.msra.mxu0 0.0
        %1777 = vmatprep.subr.mxu0 0.0
        %1778 = vmatpush1.msra.mxu0 0.0
        %1779 = vmatprep.subr.mxu0 0.0
        %1780 = vmatpush1.msra.mxu0 0.0
        %1781 = vmatprep.subr.mxu0 0.0
        %1782 = vmatpush1.msra.mxu0 0.0
        %1783 = vmatprep.subr.mxu0 0.0
        %1784 = vmatpush1.msra.mxu0 0.0
        %1785 = vmatprep.subr.mxu0 0.0
        %1786 = vmatpush1.msra.mxu0 0.0
        %1787 = vmatprep.subr.mxu0 0.0
        %1788 = vmatpush1.msra.mxu0 0.0
        %1789 = vmatprep.subr.mxu0 0.0
        %1790 = vmatpush1.msra.mxu0 0.0
        %1791 = vmatprep.subr.mxu0 0.0
        %1792 = vmatpush1.msra.mxu0 0.0
        %1793 = vmatprep.subr.mxu0 0.0
        %1794 = vmatpush1.msra.mxu0 0.0
        %1795 = vmatprep.subr.mxu0 0.0
        %1796 = vmatpush1.msra.mxu0 0.0
        %1797 = vmatprep.subr.mxu0 0.0
        %1798 = vmatpush1.msra.mxu0 0.0
        %1799 = vmatprep.subr.mxu0 0.0
        %1800 = vmatpush1.msra.mxu0 0.0
        %1801 = vmatprep.subr.mxu0 0.0
        %1802 = vmatpush1.msra.mxu0 0.0
        %1803 = vmatprep.mubr.f32.mxu0 0.0
        %1804 = vmatmul.mubr.f32.gmra.mrb[0].mxu0 %v879
        %v1805 = vpop.f32.mrb[0].mxu0
        %v1806 = vadd.f32 %v1524, %v1805
        %v1807 = vpop.f32.mrb[0].mxu0
        %1808 = vdwg.mxu0
        %vm1809 = vcmask 64512
        %v1811 = vsel %vm1809, %v948, 0
        %v1814 = vsel %vm1809, %v1272, 0
        %1816 = vmatprep.subr.mxu0 0.0
        %1817 = vmatpush1.xpose.msra.mxu0 %v1814
        %1818 = vmatprep.subr.mxu0 0.0
        %1819 = vmatpush1.xpose.msra.mxu0 0.0
        %1820 = vmatprep.subr.mxu0 0.0
        %1821 = vmatpush1.xpose.msra.mxu0 0.0
        %1822 = vmatprep.subr.mxu0 0.0
        %1823 = vmatpush1.xpose.msra.mxu0 0.0
        %1824 = vmatprep.subr.mxu0 0.0
        %1825 = vmatpush1.xpose.msra.mxu0 0.0
        %1826 = vmatprep.subr.mxu0 0.0
        %1827 = vmatpush1.xpose.msra.mxu0 0.0
        %1828 = vmatprep.subr.mxu0 0.0
        %1829 = vmatpush1.xpose.msra.mxu0 0.0
        %1830 = vmatprep.subr.mxu0 0.0
        %1831 = vmatpush1.xpose.msra.mxu0 0.0
        %1832 = vmatprep.subr.mxu0 0.0
        %1833 = vmatpush1.xpose.msra.mxu0 0.0
        %1834 = vmatprep.subr.mxu0 0.0
        %1835 = vmatpush1.xpose.msra.mxu0 0.0
        %1836 = vmatprep.subr.mxu0 0.0
        %1837 = vmatpush1.xpose.msra.mxu0 0.0
        %1838 = vmatprep.subr.mxu0 0.0
        %1839 = vmatpush1.xpose.msra.mxu0 0.0
        %1840 = vmatprep.subr.mxu0 0.0
        %1841 = vmatpush1.xpose.msra.mxu0 0.0
        %1842 = vmatprep.subr.mxu0 0.0
        %1843 = vmatpush1.xpose.msra.mxu0 0.0
        %1844 = vmatprep.subr.mxu0 0.0
        %1845 = vmatpush1.xpose.msra.mxu0 0.0
        %1846 = vmatprep.subr.mxu0 0.0
        %1847 = vmatpush1.xpose.msra.mxu0 0.0
        %1848 = vmatprep.subr.mxu0 0.0
        %1849 = vmatpush1.xpose.msra.mxu0 0.0
        %1850 = vmatprep.subr.mxu0 0.0
        %1851 = vmatpush1.xpose.msra.mxu0 0.0
        %1852 = vmatprep.subr.mxu0 0.0
        %1853 = vmatpush1.xpose.msra.mxu0 0.0
        %1854 = vmatprep.subr.mxu0 0.0
        %1855 = vmatpush1.xpose.msra.mxu0 0.0
        %1856 = vmatprep.subr.mxu0 0.0
        %1857 = vmatpush1.xpose.msra.mxu0 0.0
        %1858 = vmatprep.subr.mxu0 0.0
        %1859 = vmatpush1.xpose.msra.mxu0 0.0
        %1860 = vmatprep.subr.mxu0 0.0
        %1861 = vmatpush1.xpose.msra.mxu0 0.0
        %1862 = vmatprep.subr.mxu0 0.0
        %1863 = vmatpush1.xpose.msra.mxu0 0.0
        %1864 = vmatprep.subr.mxu0 0.0
        %1865 = vmatpush1.xpose.msra.mxu0 0.0
        %1866 = vmatprep.subr.mxu0 0.0
        %1867 = vmatpush1.xpose.msra.mxu0 0.0
        %1868 = vmatprep.subr.mxu0 0.0
        %1869 = vmatpush1.xpose.msra.mxu0 0.0
        %1870 = vmatprep.subr.mxu0 0.0
        %1871 = vmatpush1.xpose.msra.mxu0 0.0
        %1872 = vmatprep.subr.mxu0 0.0
        %1873 = vmatpush1.xpose.msra.mxu0 0.0
        %1874 = vmatprep.subr.mxu0 0.0
        %1875 = vmatpush1.xpose.msra.mxu0 0.0
        %1876 = vmatprep.subr.mxu0 0.0
        %1877 = vmatpush1.xpose.msra.mxu0 0.0
        %1878 = vmatprep.subr.mxu0 0.0
        %1879 = vmatpush1.xpose.msra.mxu0 0.0
        %1880 = vmatprep.mubr.f32.mxu0 0.0
        %1881 = vmatmul.mubr.f32.gmra.mrb[0].mxu0 %v1811
        %v1882 = vpop.f32.mrb[0].mxu0
        %v1883 = vadd.f32 0.0, %v1882
        %v1884 = vpop.f32.mrb[0].mxu0
        %1885 = vdwg.mxu0
        %v1887 = vsel %vm1809, %v1018, 0
        %v1890 = vsel %vm1809, %v1342, 0
        %1892 = vmatprep.subr.mxu0 0.0
        %1893 = vmatpush1.xpose.msra.mxu0 %v1890
        %1894 = vmatprep.subr.mxu0 0.0
        %1895 = vmatpush1.xpose.msra.mxu0 0.0
        %1896 = vmatprep.subr.mxu0 0.0
        %1897 = vmatpush1.xpose.msra.mxu0 0.0
        %1898 = vmatprep.subr.mxu0 0.0
        %1899 = vmatpush1.xpose.msra.mxu0 0.0
        %1900 = vmatprep.subr.mxu0 0.0
        %1901 = vmatpush1.xpose.msra.mxu0 0.0
        %1902 = vmatprep.subr.mxu0 0.0
        %1903 = vmatpush1.xpose.msra.mxu0 0.0
        %1904 = vmatprep.subr.mxu0 0.0
        %1905 = vmatpush1.xpose.msra.mxu0 0.0
        %1906 = vmatprep.subr.mxu0 0.0
        %1907 = vmatpush1.xpose.msra.mxu0 0.0
        %1908 = vmatprep.subr.mxu0 0.0
        %1909 = vmatpush1.xpose.msra.mxu0 0.0
        %1910 = vmatprep.subr.mxu0 0.0
        %1911 = vmatpush1.xpose.msra.mxu0 0.0
        %1912 = vmatprep.subr.mxu0 0.0
        %1913 = vmatpush1.xpose.msra.mxu0 0.0
        %1914 = vmatprep.subr.mxu0 0.0
        %1915 = vmatpush1.xpose.msra.mxu0 0.0
        %1916 = vmatprep.subr.mxu0 0.0
        %1917 = vmatpush1.xpose.msra.mxu0 0.0
        %1918 = vmatprep.subr.mxu0 0.0
        %1919 = vmatpush1.xpose.msra.mxu0 0.0
        %1920 = vmatprep.subr.mxu0 0.0
        %1921 = vmatpush1.xpose.msra.mxu0 0.0
        %1922 = vmatprep.subr.mxu0 0.0
        %1923 = vmatpush1.xpose.msra.mxu0 0.0
        %1924 = vmatprep.subr.mxu0 0.0
        %1925 = vmatpush1.xpose.msra.mxu0 0.0
        %1926 = vmatprep.subr.mxu0 0.0
        %1927 = vmatpush1.xpose.msra.mxu0 0.0
        %1928 = vmatprep.subr.mxu0 0.0
        %1929 = vmatpush1.xpose.msra.mxu0 0.0
        %1930 = vmatprep.subr.mxu0 0.0
        %1931 = vmatpush1.xpose.msra.mxu0 0.0
        %1932 = vmatprep.subr.mxu0 0.0
        %1933 = vmatpush1.xpose.msra.mxu0 0.0
        %1934 = vmatprep.subr.mxu0 0.0
        %1935 = vmatpush1.xpose.msra.mxu0 0.0
        %1936 = vmatprep.subr.mxu0 0.0
        %1937 = vmatpush1.xpose.msra.mxu0 0.0
        %1938 = vmatprep.subr.mxu0 0.0
        %1939 = vmatpush1.xpose.msra.mxu0 0.0
        %1940 = vmatprep.subr.mxu0 0.0
        %1941 = vmatpush1.xpose.msra.mxu0 0.0
        %1942 = vmatprep.subr.mxu0 0.0
        %1943 = vmatpush1.xpose.msra.mxu0 0.0
        %1944 = vmatprep.subr.mxu0 0.0
        %1945 = vmatpush1.xpose.msra.mxu0 0.0
        %1946 = vmatprep.subr.mxu0 0.0
        %1947 = vmatpush1.xpose.msra.mxu0 0.0
        %1948 = vmatprep.subr.mxu0 0.0
        %1949 = vmatpush1.xpose.msra.mxu0 0.0
        %1950 = vmatprep.subr.mxu0 0.0
        %1951 = vmatpush1.xpose.msra.mxu0 0.0
        %1952 = vmatprep.subr.mxu0 0.0
        %1953 = vmatpush1.xpose.msra.mxu0 0.0
        %1954 = vmatprep.subr.mxu0 0.0
        %1955 = vmatpush1.xpose.msra.mxu0 0.0
        %1956 = vmatprep.mubr.f32.mxu0 0.0
        %1957 = vmatmul.mubr.f32.gmra.mrb[0].mxu0 %v1887
        %v1958 = vpop.f32.mrb[0].mxu0
        %v1959 = vadd.f32 0.0, %v1958
        %v1960 = vpop.f32.mrb[0].mxu0
        %1961 = vdwg.mxu0
        %v1963 = vsel %vm1809, %v1088, 0
        %v1966 = vsel %vm1809, %v1412, 0
        %1968 = vmatprep.subr.mxu0 0.0
        %1969 = vmatpush1.xpose.msra.mxu0 %v1966
        %1970 = vmatprep.subr.mxu0 0.0
        %1971 = vmatpush1.xpose.msra.mxu0 0.0
        %1972 = vmatprep.subr.mxu0 0.0
        %1973 = vmatpush1.xpose.msra.mxu0 0.0
        %1974 = vmatprep.subr.mxu0 0.0
        %1975 = vmatpush1.xpose.msra.mxu0 0.0
        %1976 = vmatprep.subr.mxu0 0.0
        %1977 = vmatpush1.xpose.msra.mxu0 0.0
        %1978 = vmatprep.subr.mxu0 0.0
        %1979 = vmatpush1.xpose.msra.mxu0 0.0
        %1980 = vmatprep.subr.mxu0 0.0
        %1981 = vmatpush1.xpose.msra.mxu0 0.0
        %1982 = vmatprep.subr.mxu0 0.0
        %1983 = vmatpush1.xpose.msra.mxu0 0.0
        %1984 = vmatprep.subr.mxu0 0.0
        %1985 = vmatpush1.xpose.msra.mxu0 0.0
        %1986 = vmatprep.subr.mxu0 0.0
        %1987 = vmatpush1.xpose.msra.mxu0 0.0
        %1988 = vmatprep.subr.mxu0 0.0
        %1989 = vmatpush1.xpose.msra.mxu0 0.0
        %1990 = vmatprep.subr.mxu0 0.0
        %1991 = vmatpush1.xpose.msra.mxu0 0.0
        %1992 = vmatprep.subr.mxu0 0.0
        %1993 = vmatpush1.xpose.msra.mxu0 0.0
        %1994 = vmatprep.subr.mxu0 0.0
        %1995 = vmatpush1.xpose.msra.mxu0 0.0
        %1996 = vmatprep.subr.mxu0 0.0
        %1997 = vmatpush1.xpose.msra.mxu0 0.0
        %1998 = vmatprep.subr.mxu0 0.0
        %1999 = vmatpush1.xpose.msra.mxu0 0.0
        %2000 = vmatprep.subr.mxu0 0.0
        %2001 = vmatpush1.xpose.msra.mxu0 0.0
        %2002 = vmatprep.subr.mxu0 0.0
        %2003 = vmatpush1.xpose.msra.mxu0 0.0
        %2004 = vmatprep.subr.mxu0 0.0
        %2005 = vmatpush1.xpose.msra.mxu0 0.0
        %2006 = vmatprep.subr.mxu0 0.0
        %2007 = vmatpush1.xpose.msra.mxu0 0.0
        %2008 = vmatprep.subr.mxu0 0.0
        %2009 = vmatpush1.xpose.msra.mxu0 0.0
        %2010 = vmatprep.subr.mxu0 0.0
        %2011 = vmatpush1.xpose.msra.mxu0 0.0
        %2012 = vmatprep.subr.mxu0 0.0
        %2013 = vmatpush1.xpose.msra.mxu0 0.0
        %2014 = vmatprep.subr.mxu0 0.0
        %2015 = vmatpush1.xpose.msra.mxu0 0.0
        %2016 = vmatprep.subr.mxu0 0.0
        %2017 = vmatpush1.xpose.msra.mxu0 0.0
        %2018 = vmatprep.subr.mxu0 0.0
        %2019 = vmatpush1.xpose.msra.mxu0 0.0
        %2020 = vmatprep.subr.mxu0 0.0
        %2021 = vmatpush1.xpose.msra.mxu0 0.0
        %2022 = vmatprep.subr.mxu0 0.0
        %2023 = vmatpush1.xpose.msra.mxu0 0.0
        %2024 = vmatprep.subr.mxu0 0.0
        %2025 = vmatpush1.xpose.msra.mxu0 0.0
        %2026 = vmatprep.subr.mxu0 0.0
        %2027 = vmatpush1.xpose.msra.mxu0 0.0
        %2028 = vmatprep.subr.mxu0 0.0
        %2029 = vmatpush1.xpose.msra.mxu0 0.0
        %2030 = vmatprep.subr.mxu0 0.0
        %2031 = vmatpush1.xpose.msra.mxu0 0.0
        %2032 = vmatprep.mubr.f32.mxu0 0.0
        %2033 = vmatmul.mubr.f32.gmra.mrb[0].mxu0 %v1963
        %v2034 = vpop.f32.mrb[0].mxu0
        %v2035 = vadd.f32 0.0, %v2034
        %v2036 = vpop.f32.mrb[0].mxu0
        %2037 = vdwg.mxu0
        %v2039 = vsel %vm1809, %v1158, 0
        %v2042 = vsel %vm1809, %v1482, 0
        %2044 = vmatprep.subr.mxu0 0.0
        %2045 = vmatpush1.xpose.msra.mxu0 %v2042
        %2046 = vmatprep.subr.mxu0 0.0
        %2047 = vmatpush1.xpose.msra.mxu0 0.0
        %2048 = vmatprep.subr.mxu0 0.0
        %2049 = vmatpush1.xpose.msra.mxu0 0.0
        %2050 = vmatprep.subr.mxu0 0.0
        %2051 = vmatpush1.xpose.msra.mxu0 0.0
        %2052 = vmatprep.subr.mxu0 0.0
        %2053 = vmatpush1.xpose.msra.mxu0 0.0
        %2054 = vmatprep.subr.mxu0 0.0
        %2055 = vmatpush1.xpose.msra.mxu0 0.0
        %2056 = vmatprep.subr.mxu0 0.0
        %2057 = vmatpush1.xpose.msra.mxu0 0.0
        %2058 = vmatprep.subr.mxu0 0.0
        %2059 = vmatpush1.xpose.msra.mxu0 0.0
        %2060 = vmatprep.subr.mxu0 0.0
        %2061 = vmatpush1.xpose.msra.mxu0 0.0
        %2062 = vmatprep.subr.mxu0 0.0
        %2063 = vmatpush1.xpose.msra.mxu0 0.0
        %2064 = vmatprep.subr.mxu0 0.0
        %2065 = vmatpush1.xpose.msra.mxu0 0.0
        %2066 = vmatprep.subr.mxu0 0.0
        %2067 = vmatpush1.xpose.msra.mxu0 0.0
        %2068 = vmatprep.subr.mxu0 0.0
        %2069 = vmatpush1.xpose.msra.mxu0 0.0
        %2070 = vmatprep.subr.mxu0 0.0
        %2071 = vmatpush1.xpose.msra.mxu0 0.0
        %2072 = vmatprep.subr.mxu0 0.0
        %2073 = vmatpush1.xpose.msra.mxu0 0.0
        %2074 = vmatprep.subr.mxu0 0.0
        %2075 = vmatpush1.xpose.msra.mxu0 0.0
        %2076 = vmatprep.subr.mxu0 0.0
        %2077 = vmatpush1.xpose.msra.mxu0 0.0
        %2078 = vmatprep.subr.mxu0 0.0
        %2079 = vmatpush1.xpose.msra.mxu0 0.0
        %2080 = vmatprep.subr.mxu0 0.0
        %2081 = vmatpush1.xpose.msra.mxu0 0.0
        %2082 = vmatprep.subr.mxu0 0.0
        %2083 = vmatpush1.xpose.msra.mxu0 0.0
        %2084 = vmatprep.subr.mxu0 0.0
        %2085 = vmatpush1.xpose.msra.mxu0 0.0
        %2086 = vmatprep.subr.mxu0 0.0
        %2087 = vmatpush1.xpose.msra.mxu0 0.0
        %2088 = vmatprep.subr.mxu0 0.0
        %2089 = vmatpush1.xpose.msra.mxu0 0.0
        %2090 = vmatprep.subr.mxu0 0.0
        %2091 = vmatpush1.xpose.msra.mxu0 0.0
        %2092 = vmatprep.subr.mxu0 0.0
        %2093 = vmatpush1.xpose.msra.mxu0 0.0
        %2094 = vmatprep.subr.mxu0 0.0
        %2095 = vmatpush1.xpose.msra.mxu0 0.0
        %2096 = vmatprep.subr.mxu0 0.0
        %2097 = vmatpush1.xpose.msra.mxu0 0.0
        %2098 = vmatprep.subr.mxu0 0.0
        %2099 = vmatpush1.xpose.msra.mxu0 0.0
        %2100 = vmatprep.subr.mxu0 0.0
        %2101 = vmatpush1.xpose.msra.mxu0 0.0
        %2102 = vmatprep.subr.mxu0 0.0
        %2103 = vmatpush1.xpose.msra.mxu0 0.0
        %2104 = vmatprep.subr.mxu0 0.0
        %2105 = vmatpush1.xpose.msra.mxu0 0.0
        %2106 = vmatprep.subr.mxu0 0.0
        %2107 = vmatpush1.xpose.msra.mxu0 0.0
        %2108 = vmatprep.mubr.f32.mxu0 0.0
        %2109 = vmatmul.mubr.f32.gmra.mrb[0].mxu0 %v2039
        %v2110 = vpop.f32.mrb[0].mxu0
        %v2111 = vadd.f32 0.0, %v2110
        %v2112 = vpop.f32.mrb[0].mxu0
        %2113 = vdwg.mxu0
        %v2114 = vmul.f32 %v1883, 0.35355338
        %v2115 = vmul.f32 %v1959, 0.35355338
        %v2116 = vmul.f32 %v2035, 0.35355338
        %v2117 = vmul.f32 %v2111, 0.35355338
        %v2118 = vsel %vm1809, %v2114, -inf
        %2119 = vmax.xlane.f32.xlu0 %v2118
        %v2120 = vpop.xlane.xlu0 %2119
        %v2121 = vsel %vm1809, %v2115, -inf
        %2122 = vmax.xlane.f32.xlu0 %v2121
        %v2123 = vpop.xlane.xlu0 %2122
        %v2124 = vsel %vm1809, %v2116, -inf
        %2125 = vmax.xlane.f32.xlu0 %v2124
        %v2126 = vpop.xlane.xlu0 %2125
        %v2127 = vsel %vm1809, %v2117, -inf
        %2128 = vmax.xlane.f32.xlu0 %v2127
        %v2129 = vpop.xlane.xlu0 %2128
        %v2130 = vsub.f32 %v2114, %v2120
        %v2131 = vsub.f32 %v2115, %v2123
        %v2132 = vsub.f32 %v2116, %v2126
        %v2133 = vsub.f32 %v2117, %v2129
        %v2134 = vmul.f32 %v2130, 1.442695
        %v2135 = vpow.pop %v2134
        %v2136 = vmul.f32 %v2131, 1.442695
        %v2137 = vpow.pop %v2136
        %v2138 = vmul.f32 %v2132, 1.442695
        %v2139 = vpow.pop %v2138
        %v2140 = vmul.f32 %v2133, 1.442695
        %v2141 = vpow.pop %v2140
        %v2142 = vsel %vm1809, %v2135, 0.0
        %2143 = vadd.xlane.f32.xlu0 %v2142
        %v2144 = vpop.xlane.xlu0 %2143
        %v2145 = vsel %vm1809, %v2137, 0.0
        %2146 = vadd.xlane.f32.xlu0 %v2145
        %v2147 = vpop.xlane.xlu0 %2146
        %v2148 = vsel %vm1809, %v2139, 0.0
        %2149 = vadd.xlane.f32.xlu0 %v2148
        %v2150 = vpop.xlane.xlu0 %2149
        %v2151 = vsel %vm1809, %v2141, 0.0
        %2152 = vadd.xlane.f32.xlu0 %v2151
        %v2153 = vpop.xlane.xlu0 %2152
        %v2154 = vrcp.pop %v2144
        %v2155 = vrcp.pop %v2147
        %v2156 = vrcp.pop %v2150
        %v2157 = vrcp.pop %v2153
        %v2158 = vmul.f32 %v2135, %v2154
        %v2159 = vmul.f32 %v2137, %v2155
        %v2160 = vmul.f32 %v2139, %v2156
        %v2161 = vmul.f32 %v2141, %v2157
        %v2163 = vsel %vm1809, %v2158, 0
        %2165 = vmatprep.subr.mxu0 0.0
        %2166 = vmatpush1.msra.mxu0 %v1596
        %2167 = vmatprep.subr.mxu0 0.0
        %2168 = vmatpush1.msra.mxu0 0.0
        %2169 = vmatprep.subr.mxu0 0.0
        %2170 = vmatpush1.msra.mxu0 0.0
        %2171 = vmatprep.subr.mxu0 0.0
        %2172 = vmatpush1.msra.mxu0 0.0
        %2173 = vmatprep.subr.mxu0 0.0
        %2174 = vmatpush1.msra.mxu0 0.0
        %2175 = vmatprep.subr.mxu0 0.0
        %2176 = vmatpush1.msra.mxu0 0.0
        %2177 = vmatprep.subr.mxu0 0.0
        %2178 = vmatpush1.msra.mxu0 0.0
        %2179 = vmatprep.subr.mxu0 0.0
        %2180 = vmatpush1.msra.mxu0 0.0
        %2181 = vmatprep.subr.mxu0 0.0
        %2182 = vmatpush1.msra.mxu0 0.0
        %2183 = vmatprep.subr.mxu0 0.0
        %2184 = vmatpush1.msra.mxu0 0.0
        %2185 = vmatprep.subr.mxu0 0.0
        %2186 = vmatpush1.msra.mxu0 0.0
        %2187 = vmatprep.subr.mxu0 0.0
        %2188 = vmatpush1.msra.mxu0 0.0
        %2189 = vmatprep.subr.mxu0 0.0
        %2190 = vmatpush1.msra.mxu0 0.0
        %2191 = vmatprep.subr.mxu0 0.0
        %2192 = vmatpush1.msra.mxu0 0.0
        %2193 = vmatprep.subr.mxu0 0.0
        %2194 = vmatpush1.msra.mxu0 0.0
        %2195 = vmatprep.subr.mxu0 0.0
        %2196 = vmatpush1.msra.mxu0 0.0
        %2197 = vmatprep.subr.mxu0 0.0
        %2198 = vmatpush1.msra.mxu0 0.0
        %2199 = vmatprep.subr.mxu0 0.0
        %2200 = vmatpush1.msra.mxu0 0.0
        %2201 = vmatprep.subr.mxu0 0.0
        %2202 = vmatpush1.msra.mxu0 0.0
        %2203 = vmatprep.subr.mxu0 0.0
        %2204 = vmatpush1.msra.mxu0 0.0
        %2205 = vmatprep.subr.mxu0 0.0
        %2206 = vmatpush1.msra.mxu0 0.0
        %2207 = vmatprep.subr.mxu0 0.0
        %2208 = vmatpush1.msra.mxu0 0.0
        %2209 = vmatprep.subr.mxu0 0.0
        %2210 = vmatpush1.msra.mxu0 0.0
        %2211 = vmatprep.subr.mxu0 0.0
        %2212 = vmatpush1.msra.mxu0 0.0
        %2213 = vmatprep.subr.mxu0 0.0
        %2214 = vmatpush1.msra.mxu0 0.0
        %2215 = vmatprep.subr.mxu0 0.0
        %2216 = vmatpush1.msra.mxu0 0.0
        %2217 = vmatprep.subr.mxu0 0.0
        %2218 = vmatpush1.msra.mxu0 0.0
        %2219 = vmatprep.subr.mxu0 0.0
        %2220 = vmatpush1.msra.mxu0 0.0
        %2221 = vmatprep.subr.mxu0 0.0
        %2222 = vmatpush1.msra.mxu0 0.0
        %2223 = vmatprep.subr.mxu0 0.0
        %2224 = vmatpush1.msra.mxu0 0.0
        %2225 = vmatprep.subr.mxu0 0.0
        %2226 = vmatpush1.msra.mxu0 0.0
        %2227 = vmatprep.subr.mxu0 0.0
        %2228 = vmatpush1.msra.mxu0 0.0
        %2229 = vmatprep.mubr.f32.mxu0 0.0
        %2230 = vmatmul.mubr.f32.gmra.mrb[0].mxu0 %v2163
        %v2231 = vpop.f32.mrb[0].mxu0
        %v2232 = vadd.f32 0.0, %v2231
        %v2233 = vpop.f32.mrb[0].mxu0
        %2234 = vdwg.mxu0
        %v2236 = vsel %vm1809, %v2159, 0
        %2238 = vmatprep.subr.mxu0 0.0
        %2239 = vmatpush1.msra.mxu0 %v1666
        %2240 = vmatprep.subr.mxu0 0.0
        %2241 = vmatpush1.msra.mxu0 0.0
        %2242 = vmatprep.subr.mxu0 0.0
        %2243 = vmatpush1.msra.mxu0 0.0
        %2244 = vmatprep.subr.mxu0 0.0
        %2245 = vmatpush1.msra.mxu0 0.0
        %2246 = vmatprep.subr.mxu0 0.0
        %2247 = vmatpush1.msra.mxu0 0.0
        %2248 = vmatprep.subr.mxu0 0.0
        %2249 = vmatpush1.msra.mxu0 0.0
        %2250 = vmatprep.subr.mxu0 0.0
        %2251 = vmatpush1.msra.mxu0 0.0
        %2252 = vmatprep.subr.mxu0 0.0
        %2253 = vmatpush1.msra.mxu0 0.0
        %2254 = vmatprep.subr.mxu0 0.0
        %2255 = vmatpush1.msra.mxu0 0.0
        %2256 = vmatprep.subr.mxu0 0.0
        %2257 = vmatpush1.msra.mxu0 0.0
        %2258 = vmatprep.subr.mxu0 0.0
        %2259 = vmatpush1.msra.mxu0 0.0
        %2260 = vmatprep.subr.mxu0 0.0
        %2261 = vmatpush1.msra.mxu0 0.0
        %2262 = vmatprep.subr.mxu0 0.0
        %2263 = vmatpush1.msra.mxu0 0.0
        %2264 = vmatprep.subr.mxu0 0.0
        %2265 = vmatpush1.msra.mxu0 0.0
        %2266 = vmatprep.subr.mxu0 0.0
        %2267 = vmatpush1.msra.mxu0 0.0
        %2268 = vmatprep.subr.mxu0 0.0
        %2269 = vmatpush1.msra.mxu0 0.0
        %2270 = vmatprep.subr.mxu0 0.0
        %2271 = vmatpush1.msra.mxu0 0.0
        %2272 = vmatprep.subr.mxu0 0.0
        %2273 = vmatpush1.msra.mxu0 0.0
        %2274 = vmatprep.subr.mxu0 0.0
        %2275 = vmatpush1.msra.mxu0 0.0
        %2276 = vmatprep.subr.mxu0 0.0
        %2277 = vmatpush1.msra.mxu0 0.0
        %2278 = vmatprep.subr.mxu0 0.0
        %2279 = vmatpush1.msra.mxu0 0.0
        %2280 = vmatprep.subr.mxu0 0.0
        %2281 = vmatpush1.msra.mxu0 0.0
        %2282 = vmatprep.subr.mxu0 0.0
        %2283 = vmatpush1.msra.mxu0 0.0
        %2284 = vmatprep.subr.mxu0 0.0
        %2285 = vmatpush1.msra.mxu0 0.0
        %2286 = vmatprep.subr.mxu0 0.0
        %2287 = vmatpush1.msra.mxu0 0.0
        %2288 = vmatprep.subr.mxu0 0.0
        %2289 = vmatpush1.msra.mxu0 0.0
        %2290 = vmatprep.subr.mxu0 0.0
        %2291 = vmatpush1.msra.mxu0 0.0
        %2292 = vmatprep.subr.mxu0 0.0
        %2293 = vmatpush1.msra.mxu0 0.0
        %2294 = vmatprep.subr.mxu0 0.0
        %2295 = vmatpush1.msra.mxu0 0.0
        %2296 = vmatprep.subr.mxu0 0.0
        %2297 = vmatpush1.msra.mxu0 0.0
        %2298 = vmatprep.subr.mxu0 0.0
        %2299 = vmatpush1.msra.mxu0 0.0
        %2300 = vmatprep.subr.mxu0 0.0
        %2301 = vmatpush1.msra.mxu0 0.0
        %2302 = vmatprep.mubr.f32.mxu0 0.0
        %2303 = vmatmul.mubr.f32.gmra.mrb[0].mxu0 %v2236
        %v2304 = vpop.f32.mrb[0].mxu0
        %v2305 = vadd.f32 0.0, %v2304
        %v2306 = vpop.f32.mrb[0].mxu0
        %2307 = vdwg.mxu0
        %v2309 = vsel %vm1809, %v2160, 0
        %2311 = vmatprep.subr.mxu0 0.0
        %2312 = vmatpush1.msra.mxu0 %v1736
        %2313 = vmatprep.subr.mxu0 0.0
        %2314 = vmatpush1.msra.mxu0 0.0
        %2315 = vmatprep.subr.mxu0 0.0
        %2316 = vmatpush1.msra.mxu0 0.0
        %2317 = vmatprep.subr.mxu0 0.0
        %2318 = vmatpush1.msra.mxu0 0.0
        %2319 = vmatprep.subr.mxu0 0.0
        %2320 = vmatpush1.msra.mxu0 0.0
        %2321 = vmatprep.subr.mxu0 0.0
        %2322 = vmatpush1.msra.mxu0 0.0
        %2323 = vmatprep.subr.mxu0 0.0
        %2324 = vmatpush1.msra.mxu0 0.0
        %2325 = vmatprep.subr.mxu0 0.0
        %2326 = vmatpush1.msra.mxu0 0.0
        %2327 = vmatprep.subr.mxu0 0.0
        %2328 = vmatpush1.msra.mxu0 0.0
        %2329 = vmatprep.subr.mxu0 0.0
        %2330 = vmatpush1.msra.mxu0 0.0
        %2331 = vmatprep.subr.mxu0 0.0
        %2332 = vmatpush1.msra.mxu0 0.0
        %2333 = vmatprep.subr.mxu0 0.0
        %2334 = vmatpush1.msra.mxu0 0.0
        %2335 = vmatprep.subr.mxu0 0.0
        %2336 = vmatpush1.msra.mxu0 0.0
        %2337 = vmatprep.subr.mxu0 0.0
        %2338 = vmatpush1.msra.mxu0 0.0
        %2339 = vmatprep.subr.mxu0 0.0
        %2340 = vmatpush1.msra.mxu0 0.0
        %2341 = vmatprep.subr.mxu0 0.0
        %2342 = vmatpush1.msra.mxu0 0.0
        %2343 = vmatprep.subr.mxu0 0.0
        %2344 = vmatpush1.msra.mxu0 0.0
        %2345 = vmatprep.subr.mxu0 0.0
        %2346 = vmatpush1.msra.mxu0 0.0
        %2347 = vmatprep.subr.mxu0 0.0
        %2348 = vmatpush1.msra.mxu0 0.0
        %2349 = vmatprep.subr.mxu0 0.0
        %2350 = vmatpush1.msra.mxu0 0.0
        %2351 = vmatprep.subr.mxu0 0.0
        %2352 = vmatpush1.msra.mxu0 0.0
        %2353 = vmatprep.subr.mxu0 0.0
        %2354 = vmatpush1.msra.mxu0 0.0
        %2355 = vmatprep.subr.mxu0 0.0
        %2356 = vmatpush1.msra.mxu0 0.0
        %2357 = vmatprep.subr.mxu0 0.0
        %2358 = vmatpush1.msra.mxu0 0.0
        %2359 = vmatprep.subr.mxu0 0.0
        %2360 = vmatpush1.msra.mxu0 0.0
        %2361 = vmatprep.subr.mxu0 0.0
        %2362 = vmatpush1.msra.mxu0 0.0
        %2363 = vmatprep.subr.mxu0 0.0
        %2364 = vmatpush1.msra.mxu0 0.0
        %2365 = vmatprep.subr.mxu0 0.0
        %2366 = vmatpush1.msra.mxu0 0.0
        %2367 = vmatprep.subr.mxu0 0.0
        %2368 = vmatpush1.msra.mxu0 0.0
        %2369 = vmatprep.subr.mxu0 0.0
        %2370 = vmatpush1.msra.mxu0 0.0
        %2371 = vmatprep.subr.mxu0 0.0
        %2372 = vmatpush1.msra.mxu0 0.0
        %2373 = vmatprep.subr.mxu0 0.0
        %2374 = vmatpush1.msra.mxu0 0.0
        %2375 = vmatprep.mubr.f32.mxu0 0.0
        %2376 = vmatmul.mubr.f32.gmra.mrb[0].mxu0 %v2309
        %v2377 = vpop.f32.mrb[0].mxu0
        %v2378 = vadd.f32 0.0, %v2377
        %v2379 = vpop.f32.mrb[0].mxu0
        %2380 = vdwg.mxu0
        %v2382 = vsel %vm1809, %v2161, 0
        %2384 = vmatprep.subr.mxu0 0.0
        %2385 = vmatpush1.msra.mxu0 %v1806
        %2386 = vmatprep.subr.mxu0 0.0
        %2387 = vmatpush1.msra.mxu0 0.0
        %2388 = vmatprep.subr.mxu0 0.0
        %2389 = vmatpush1.msra.mxu0 0.0
        %2390 = vmatprep.subr.mxu0 0.0
        %2391 = vmatpush1.msra.mxu0 0.0
        %2392 = vmatprep.subr.mxu0 0.0
        %2393 = vmatpush1.msra.mxu0 0.0
        %2394 = vmatprep.subr.mxu0 0.0
        %2395 = vmatpush1.msra.mxu0 0.0
        %2396 = vmatprep.subr.mxu0 0.0
        %2397 = vmatpush1.msra.mxu0 0.0
        %2398 = vmatprep.subr.mxu0 0.0
        %2399 = vmatpush1.msra.mxu0 0.0
        %2400 = vmatprep.subr.mxu0 0.0
        %2401 = vmatpush1.msra.mxu0 0.0
        %2402 = vmatprep.subr.mxu0 0.0
        %2403 = vmatpush1.msra.mxu0 0.0
        %2404 = vmatprep.subr.mxu0 0.0
        %2405 = vmatpush1.msra.mxu0 0.0
        %2406 = vmatprep.subr.mxu0 0.0
        %2407 = vmatpush1.msra.mxu0 0.0
        %2408 = vmatprep.subr.mxu0 0.0
        %2409 = vmatpush1.msra.mxu0 0.0
        %2410 = vmatprep.subr.mxu0 0.0
        %2411 = vmatpush1.msra.mxu0 0.0
        %2412 = vmatprep.subr.mxu0 0.0
        %2413 = vmatpush1.msra.mxu0 0.0
        %2414 = vmatprep.subr.mxu0 0.0
        %2415 = vmatpush1.msra.mxu0 0.0
        %2416 = vmatprep.subr.mxu0 0.0
        %2417 = vmatpush1.msra.mxu0 0.0
        %2418 = vmatprep.subr.mxu0 0.0
        %2419 = vmatpush1.msra.mxu0 0.0
        %2420 = vmatprep.subr.mxu0 0.0
        %2421 = vmatpush1.msra.mxu0 0.0
        %2422 = vmatprep.subr.mxu0 0.0
        %2423 = vmatpush1.msra.mxu0 0.0
        %2424 = vmatprep.subr.mxu0 0.0
        %2425 = vmatpush1.msra.mxu0 0.0
        %2426 = vmatprep.subr.mxu0 0.0
        %2427 = vmatpush1.msra.mxu0 0.0
        %2428 = vmatprep.subr.mxu0 0.0
        %2429 = vmatpush1.msra.mxu0 0.0
        %2430 = vmatprep.subr.mxu0 0.0
        %2431 = vmatpush1.msra.mxu0 0.0
        %2432 = vmatprep.subr.mxu0 0.0
        %2433 = vmatpush1.msra.mxu0 0.0
        %2434 = vmatprep.subr.mxu0 0.0
        %2435 = vmatpush1.msra.mxu0 0.0
        %2436 = vmatprep.subr.mxu0 0.0
        %2437 = vmatpush1.msra.mxu0 0.0
        %2438 = vmatprep.subr.mxu0 0.0
        %2439 = vmatpush1.msra.mxu0 0.0
        %2440 = vmatprep.subr.mxu0 0.0
        %2441 = vmatpush1.msra.mxu0 0.0
        %2442 = vmatprep.subr.mxu0 0.0
        %2443 = vmatpush1.msra.mxu0 0.0
        %2444 = vmatprep.subr.mxu0 0.0
        %2445 = vmatpush1.msra.mxu0 0.0
        %2446 = vmatprep.subr.mxu0 0.0
        %2447 = vmatpush1.msra.mxu0 0.0
        %2448 = vmatprep.mubr.f32.mxu0 0.0
        %2449 = vmatmul.mubr.f32.gmra.mrb[0].mxu0 %v2382
        %v2450 = vpop.f32.mrb[0].mxu0
        %v2451 = vadd.f32 0.0, %v2450
        %v2452 = vpop.f32.mrb[0].mxu0
        %2453 = vdwg.mxu0
        %v2454 = vld [vmem:[%s793] sm:$0xff]
        %v2455 = vld [vmem:[%s793 + $0x8] sm:$0xff]
        %v2456 = vld [vmem:[%s793 + $0x10] sm:$0xff]
        %v2457 = vld [vmem:[%s793 + $0x18] sm:$0xff]
        %v2459 = vsel %vm1809, %v2232, 0
        %2461 = vmatprep.subr.mxu0 0.0
        %2462 = vmatpush1.msra.mxu0 %v2454
        %2463 = vmatprep.subr.mxu0 0.0
        %2464 = vmatpush1.msra.mxu0 0.0
        %2465 = vmatprep.subr.mxu0 0.0
        %2466 = vmatpush1.msra.mxu0 0.0
        %2467 = vmatprep.subr.mxu0 0.0
        %2468 = vmatpush1.msra.mxu0 0.0
        %2469 = vmatprep.subr.mxu0 0.0
        %2470 = vmatpush1.msra.mxu0 0.0
        %2471 = vmatprep.subr.mxu0 0.0
        %2472 = vmatpush1.msra.mxu0 0.0
        %2473 = vmatprep.subr.mxu0 0.0
        %2474 = vmatpush1.msra.mxu0 0.0
        %2475 = vmatprep.subr.mxu0 0.0
        %2476 = vmatpush1.msra.mxu0 0.0
        %2477 = vmatprep.subr.mxu0 0.0
        %2478 = vmatpush1.msra.mxu0 0.0
        %2479 = vmatprep.subr.mxu0 0.0
        %2480 = vmatpush1.msra.mxu0 0.0
        %2481 = vmatprep.subr.mxu0 0.0
        %2482 = vmatpush1.msra.mxu0 0.0
        %2483 = vmatprep.subr.mxu0 0.0
        %2484 = vmatpush1.msra.mxu0 0.0
        %2485 = vmatprep.subr.mxu0 0.0
        %2486 = vmatpush1.msra.mxu0 0.0
        %2487 = vmatprep.subr.mxu0 0.0
        %2488 = vmatpush1.msra.mxu0 0.0
        %2489 = vmatprep.subr.mxu0 0.0
        %2490 = vmatpush1.msra.mxu0 0.0
        %2491 = vmatprep.subr.mxu0 0.0
        %2492 = vmatpush1.msra.mxu0 0.0
        %2493 = vmatprep.subr.mxu0 0.0
        %2494 = vmatpush1.msra.mxu0 0.0
        %2495 = vmatprep.subr.mxu0 0.0
        %2496 = vmatpush1.msra.mxu0 0.0
        %2497 = vmatprep.subr.mxu0 0.0
        %2498 = vmatpush1.msra.mxu0 0.0
        %2499 = vmatprep.subr.mxu0 0.0
        %2500 = vmatpush1.msra.mxu0 0.0
        %2501 = vmatprep.subr.mxu0 0.0
        %2502 = vmatpush1.msra.mxu0 0.0
        %2503 = vmatprep.subr.mxu0 0.0
        %2504 = vmatpush1.msra.mxu0 0.0
        %2505 = vmatprep.subr.mxu0 0.0
        %2506 = vmatpush1.msra.mxu0 0.0
        %2507 = vmatprep.subr.mxu0 0.0
        %2508 = vmatpush1.msra.mxu0 0.0
        %2509 = vmatprep.subr.mxu0 0.0
        %2510 = vmatpush1.msra.mxu0 0.0
        %2511 = vmatprep.subr.mxu0 0.0
        %2512 = vmatpush1.msra.mxu0 0.0
        %2513 = vmatprep.subr.mxu0 0.0
        %2514 = vmatpush1.msra.mxu0 0.0
        %2515 = vmatprep.subr.mxu0 0.0
        %2516 = vmatpush1.msra.mxu0 0.0
        %2517 = vmatprep.subr.mxu0 0.0
        %2518 = vmatpush1.msra.mxu0 0.0
        %2519 = vmatprep.subr.mxu0 0.0
        %2520 = vmatpush1.msra.mxu0 0.0
        %2521 = vmatprep.subr.mxu0 0.0
        %2522 = vmatpush1.msra.mxu0 0.0
        %2523 = vmatprep.subr.mxu0 0.0
        %2524 = vmatpush1.msra.mxu0 0.0
        %2525 = vmatprep.mubr.f32.mxu0 0.0
        %2526 = vmatmul.mubr.f32.gmra.mrb[0].mxu0 %v2459
        %v2527 = vpop.f32.mrb[0].mxu0
        %v2528 = vadd.f32 0.0, %v2527
        %v2529 = vpop.f32.mrb[0].mxu0
        %2530 = vdwg.mxu0
        %v2532 = vsel %vm1809, %v2305, 0
        %2534 = vmatprep.subr.mxu0 0.0
        %2535 = vmatpush1.msra.mxu0 %v2455
        %2536 = vmatprep.subr.mxu0 0.0
        %2537 = vmatpush1.msra.mxu0 0.0
        %2538 = vmatprep.subr.mxu0 0.0
        %2539 = vmatpush1.msra.mxu0 0.0
        %2540 = vmatprep.subr.mxu0 0.0
        %2541 = vmatpush1.msra.mxu0 0.0
        %2542 = vmatprep.subr.mxu0 0.0
        %2543 = vmatpush1.msra.mxu0 0.0
        %2544 = vmatprep.subr.mxu0 0.0
        %2545 = vmatpush1.msra.mxu0 0.0
        %2546 = vmatprep.subr.mxu0 0.0
        %2547 = vmatpush1.msra.mxu0 0.0
        %2548 = vmatprep.subr.mxu0 0.0
        %2549 = vmatpush1.msra.mxu0 0.0
        %2550 = vmatprep.subr.mxu0 0.0
        %2551 = vmatpush1.msra.mxu0 0.0
        %2552 = vmatprep.subr.mxu0 0.0
        %2553 = vmatpush1.msra.mxu0 0.0
        %2554 = vmatprep.subr.mxu0 0.0
        %2555 = vmatpush1.msra.mxu0 0.0
        %2556 = vmatprep.subr.mxu0 0.0
        %2557 = vmatpush1.msra.mxu0 0.0
        %2558 = vmatprep.subr.mxu0 0.0
        %2559 = vmatpush1.msra.mxu0 0.0
        %2560 = vmatprep.subr.mxu0 0.0
        %2561 = vmatpush1.msra.mxu0 0.0
        %2562 = vmatprep.subr.mxu0 0.0
        %2563 = vmatpush1.msra.mxu0 0.0
        %2564 = vmatprep.subr.mxu0 0.0
        %2565 = vmatpush1.msra.mxu0 0.0
        %2566 = vmatprep.subr.mxu0 0.0
        %2567 = vmatpush1.msra.mxu0 0.0
        %2568 = vmatprep.subr.mxu0 0.0
        %2569 = vmatpush1.msra.mxu0 0.0
        %2570 = vmatprep.subr.mxu0 0.0
        %2571 = vmatpush1.msra.mxu0 0.0
        %2572 = vmatprep.subr.mxu0 0.0
        %2573 = vmatpush1.msra.mxu0 0.0
        %2574 = vmatprep.subr.mxu0 0.0
        %2575 = vmatpush1.msra.mxu0 0.0
        %2576 = vmatprep.subr.mxu0 0.0
        %2577 = vmatpush1.msra.mxu0 0.0
        %2578 = vmatprep.subr.mxu0 0.0
        %2579 = vmatpush1.msra.mxu0 0.0
        %2580 = vmatprep.subr.mxu0 0.0
        %2581 = vmatpush1.msra.mxu0 0.0
        %2582 = vmatprep.subr.mxu0 0.0
        %2583 = vmatpush1.msra.mxu0 0.0
        %2584 = vmatprep.subr.mxu0 0.0
        %2585 = vmatpush1.msra.mxu0 0.0
        %2586 = vmatprep.subr.mxu0 0.0
        %2587 = vmatpush1.msra.mxu0 0.0
        %2588 = vmatprep.subr.mxu0 0.0
        %2589 = vmatpush1.msra.mxu0 0.0
        %2590 = vmatprep.subr.mxu0 0.0
        %2591 = vmatpush1.msra.mxu0 0.0
        %2592 = vmatprep.subr.mxu0 0.0
        %2593 = vmatpush1.msra.mxu0 0.0
        %2594 = vmatprep.subr.mxu0 0.0
        %2595 = vmatpush1.msra.mxu0 0.0
        %2596 = vmatprep.subr.mxu0 0.0
        %2597 = vmatpush1.msra.mxu0 0.0
        %2598 = vmatprep.mubr.f32.mxu0 0.0
        %2599 = vmatmul.mubr.f32.gmra.mrb[0].mxu0 %v2532
        %v2600 = vpop.f32.mrb[0].mxu0
        %v2601 = vadd.f32 0.0, %v2600
        %v2602 = vpop.f32.mrb[0].mxu0
        %2603 = vdwg.mxu0
        %v2605 = vsel %vm1809, %v2378, 0
        %2607 = vmatprep.subr.mxu0 0.0
        %2608 = vmatpush1.msra.mxu0 %v2456
        %2609 = vmatprep.subr.mxu0 0.0
        %2610 = vmatpush1.msra.mxu0 0.0
        %2611 = vmatprep.subr.mxu0 0.0
        %2612 = vmatpush1.msra.mxu0 0.0
        %2613 = vmatprep.subr.mxu0 0.0
        %2614 = vmatpush1.msra.mxu0 0.0
        %2615 = vmatprep.subr.mxu0 0.0
        %2616 = vmatpush1.msra.mxu0 0.0
        %2617 = vmatprep.subr.mxu0 0.0
        %2618 = vmatpush1.msra.mxu0 0.0
        %2619 = vmatprep.subr.mxu0 0.0
        %2620 = vmatpush1.msra.mxu0 0.0
        %2621 = vmatprep.subr.mxu0 0.0
        %2622 = vmatpush1.msra.mxu0 0.0
        %2623 = vmatprep.subr.mxu0 0.0
        %2624 = vmatpush1.msra.mxu0 0.0
        %2625 = vmatprep.subr.mxu0 0.0
        %2626 = vmatpush1.msra.mxu0 0.0
        %2627 = vmatprep.subr.mxu0 0.0
        %2628 = vmatpush1.msra.mxu0 0.0
        %2629 = vmatprep.subr.mxu0 0.0
        %2630 = vmatpush1.msra.mxu0 0.0
        %2631 = vmatprep.subr.mxu0 0.0
        %2632 = vmatpush1.msra.mxu0 0.0
        %2633 = vmatprep.subr.mxu0 0.0
        %2634 = vmatpush1.msra.mxu0 0.0
        %2635 = vmatprep.subr.mxu0 0.0
        %2636 = vmatpush1.msra.mxu0 0.0
        %2637 = vmatprep.subr.mxu0 0.0
        %2638 = vmatpush1.msra.mxu0 0.0
        %2639 = vmatprep.subr.mxu0 0.0
        %2640 = vmatpush1.msra.mxu0 0.0
        %2641 = vmatprep.subr.mxu0 0.0
        %2642 = vmatpush1.msra.mxu0 0.0
        %2643 = vmatprep.subr.mxu0 0.0
        %2644 = vmatpush1.msra.mxu0 0.0
        %2645 = vmatprep.subr.mxu0 0.0
        %2646 = vmatpush1.msra.mxu0 0.0
        %2647 = vmatprep.subr.mxu0 0.0
        %2648 = vmatpush1.msra.mxu0 0.0
        %2649 = vmatprep.subr.mxu0 0.0
        %2650 = vmatpush1.msra.mxu0 0.0
        %2651 = vmatprep.subr.mxu0 0.0
        %2652 = vmatpush1.msra.mxu0 0.0
        %2653 = vmatprep.subr.mxu0 0.0
        %2654 = vmatpush1.msra.mxu0 0.0
        %2655 = vmatprep.subr.mxu0 0.0
        %2656 = vmatpush1.msra.mxu0 0.0
        %2657 = vmatprep.subr.mxu0 0.0
        %2658 = vmatpush1.msra.mxu0 0.0
        %2659 = vmatprep.subr.mxu0 0.0
        %2660 = vmatpush1.msra.mxu0 0.0
        %2661 = vmatprep.subr.mxu0 0.0
        %2662 = vmatpush1.msra.mxu0 0.0
        %2663 = vmatprep.subr.mxu0 0.0
        %2664 = vmatpush1.msra.mxu0 0.0
        %2665 = vmatprep.subr.mxu0 0.0
        %2666 = vmatpush1.msra.mxu0 0.0
        %2667 = vmatprep.subr.mxu0 0.0
        %2668 = vmatpush1.msra.mxu0 0.0
        %2669 = vmatprep.subr.mxu0 0.0
        %2670 = vmatpush1.msra.mxu0 0.0
        %2671 = vmatprep.mubr.f32.mxu0 0.0
        %2672 = vmatmul.mubr.f32.gmra.mrb[0].mxu0 %v2605
        %v2673 = vpop.f32.mrb[0].mxu0
        %v2674 = vadd.f32 0.0, %v2673
        %v2675 = vpop.f32.mrb[0].mxu0
        %2676 = vdwg.mxu0
        %v2678 = vsel %vm1809, %v2451, 0
        %2680 = vmatprep.subr.mxu0 0.0
        %2681 = vmatpush1.msra.mxu0 %v2457
        %2682 = vmatprep.subr.mxu0 0.0
        %2683 = vmatpush1.msra.mxu0 0.0
        %2684 = vmatprep.subr.mxu0 0.0
        %2685 = vmatpush1.msra.mxu0 0.0
        %2686 = vmatprep.subr.mxu0 0.0
        %2687 = vmatpush1.msra.mxu0 0.0
        %2688 = vmatprep.subr.mxu0 0.0
        %2689 = vmatpush1.msra.mxu0 0.0
        %2690 = vmatprep.subr.mxu0 0.0
        %2691 = vmatpush1.msra.mxu0 0.0
        %2692 = vmatprep.subr.mxu0 0.0
        %2693 = vmatpush1.msra.mxu0 0.0
        %2694 = vmatprep.subr.mxu0 0.0
        %2695 = vmatpush1.msra.mxu0 0.0
        %2696 = vmatprep.subr.mxu0 0.0
        %2697 = vmatpush1.msra.mxu0 0.0
        %2698 = vmatprep.subr.mxu0 0.0
        %2699 = vmatpush1.msra.mxu0 0.0
        %2700 = vmatprep.subr.mxu0 0.0
        %2701 = vmatpush1.msra.mxu0 0.0
        %2702 = vmatprep.subr.mxu0 0.0
        %2703 = vmatpush1.msra.mxu0 0.0
        %2704 = vmatprep.subr.mxu0 0.0
        %2705 = vmatpush1.msra.mxu0 0.0
        %2706 = vmatprep.subr.mxu0 0.0
        %2707 = vmatpush1.msra.mxu0 0.0
        %2708 = vmatprep.subr.mxu0 0.0
        %2709 = vmatpush1.msra.mxu0 0.0
        %2710 = vmatprep.subr.mxu0 0.0
        %2711 = vmatpush1.msra.mxu0 0.0
        %2712 = vmatprep.subr.mxu0 0.0
        %2713 = vmatpush1.msra.mxu0 0.0
        %2714 = vmatprep.subr.mxu0 0.0
        %2715 = vmatpush1.msra.mxu0 0.0
        %2716 = vmatprep.subr.mxu0 0.0
        %2717 = vmatpush1.msra.mxu0 0.0
        %2718 = vmatprep.subr.mxu0 0.0
        %2719 = vmatpush1.msra.mxu0 0.0
        %2720 = vmatprep.subr.mxu0 0.0
        %2721 = vmatpush1.msra.mxu0 0.0
        %2722 = vmatprep.subr.mxu0 0.0
        %2723 = vmatpush1.msra.mxu0 0.0
        %2724 = vmatprep.subr.mxu0 0.0
        %2725 = vmatpush1.msra.mxu0 0.0
        %2726 = vmatprep.subr.mxu0 0.0
        %2727 = vmatpush1.msra.mxu0 0.0
        %2728 = vmatprep.subr.mxu0 0.0
        %2729 = vmatpush1.msra.mxu0 0.0
        %2730 = vmatprep.subr.mxu0 0.0
        %2731 = vmatpush1.msra.mxu0 0.0
        %2732 = vmatprep.subr.mxu0 0.0
        %2733 = vmatpush1.msra.mxu0 0.0
        %2734 = vmatprep.subr.mxu0 0.0
        %2735 = vmatpush1.msra.mxu0 0.0
        %2736 = vmatprep.subr.mxu0 0.0
        %2737 = vmatpush1.msra.mxu0 0.0
        %2738 = vmatprep.subr.mxu0 0.0
        %2739 = vmatpush1.msra.mxu0 0.0
        %2740 = vmatprep.subr.mxu0 0.0
        %2741 = vmatpush1.msra.mxu0 0.0
        %2742 = vmatprep.subr.mxu0 0.0
        %2743 = vmatpush1.msra.mxu0 0.0
        %2744 = vmatprep.mubr.f32.mxu0 0.0
        %2745 = vmatmul.mubr.f32.gmra.mrb[0].mxu0 %v2678
        %v2746 = vpop.f32.mrb[0].mxu0
        %v2747 = vadd.f32 0.0, %v2746
        %v2748 = vpop.f32.mrb[0].mxu0
        %2749 = vdwg.mxu0
        %v2750 = vsel %vm877, %v2528, 0.0
        %v2751 = vsel %vm877, %v2601, 0.0
        %v2752 = vadd.f32 %v2750, %v2751
        %v2753 = vsel %vm877, %v2674, 0.0
        %v2754 = vadd.f32 %v2752, %v2753
        %v2755 = vsel %vm877, %v2747, 0.0
        %v2756 = vadd.f32 %v2754, %v2755
        %v2757 = vld [vmem:[%s796] sm:$0x1]
        %v2759 = vlaneseq
        %v2760 = vshrl.u32 %v2759, 7
        %v2761 = vsub.s32 0, %v2760
        %v2762 = vrot.slane %v2757, %v2761
        %v2764 = vadd.f32 %v2756, %v2762
        %v2765 = vadd.f32 %v832, %v2764
        %v2766 = vsel %vm877, %v2765, 0.0
        %2767 = vadd.xlane.f32.xlu0 %v2766
        %v2768 = vpop.xlane.xlu0 %2767
        %v2769 = vrcp.pop 32.0
        %v2770 = vmul.f32 %v2768, %v2769
        %v2771 = vsub.f32 %v2765, %v2770
        %v2772 = vmul.f32 %v2771, %v2771
        %v2773 = vsel %vm877, %v2772, 0.0
        %2774 = vadd.xlane.f32.xlu0 %v2773
        %v2775 = vpop.xlane.xlu0 %2774
        %v2776 = vmul.f32 %v2775, %v2769
        %v2777 = vadd.f32 %v2776, 1e-05
        %v2778 = vrsqrt.pop %v2777
        %v2779 = vmul.f32 %v2771, %v2778
        %v2780 = vld [vmem:[%s799] sm:$0x1]
        %v2782 = vlaneseq
        %v2783 = vshrl.u32 %v2782, 7
        %v2784 = vsub.s32 0, %v2783
        %v2785 = vrot.slane %v2780, %v2784
        %v2787 = vmul.f32 %v2779, %v2785
        %v2788 = vld [vmem:[%s802] sm:$0x1]
        %v2790 = vlaneseq
        %v2791 = vshrl.u32 %v2790, 7
        %v2792 = vsub.s32 0, %v2791
        %v2793 = vrot.slane %v2788, %v2792
        %v2795 = vadd.f32 %v2787, %v2793
        %v2796 = vld [vmem:[%s807] sm:$0xff]
        %v2797 = vld [vmem:[%s807 + $0x8] sm:$0xff]
        %v2798 = vld [vmem:[%s807 + $0x10] sm:$0xff]
        %v2799 = vld [vmem:[%s807 + $0x18] sm:$0xff]
        %v2800 = vld [vmem:[%s810] sm:$0x1]
        %v2802 = vlaneseq
        %v2803 = vshrl.u32 %v2802, 7
        %v2804 = vsub.s32 0, %v2803
        %v2805 = vrot.slane %v2800, %v2804
        %v2808 = vsel %vm877, %v2795, 0
        %2810 = vmatprep.subr.mxu0 0.0
        %2811 = vmatpush1.msra.mxu0 %v2796
        %2812 = vmatprep.subr.mxu0 0.0
        %2813 = vmatpush1.msra.mxu0 %v2797
        %2814 = vmatprep.subr.mxu0 0.0
        %2815 = vmatpush1.msra.mxu0 %v2798
        %2816 = vmatprep.subr.mxu0 0.0
        %2817 = vmatpush1.msra.mxu0 %v2799
        %2818 = vmatprep.subr.mxu0 0.0
        %2819 = vmatpush1.msra.mxu0 0.0
        %2820 = vmatprep.subr.mxu0 0.0
        %2821 = vmatpush1.msra.mxu0 0.0
        %2822 = vmatprep.subr.mxu0 0.0
        %2823 = vmatpush1.msra.mxu0 0.0
        %2824 = vmatprep.subr.mxu0 0.0
        %2825 = vmatpush1.msra.mxu0 0.0
        %2826 = vmatprep.subr.mxu0 0.0
        %2827 = vmatpush1.msra.mxu0 0.0
        %2828 = vmatprep.subr.mxu0 0.0
        %2829 = vmatpush1.msra.mxu0 0.0
        %2830 = vmatprep.subr.mxu0 0.0
        %2831 = vmatpush1.msra.mxu0 0.0
        %2832 = vmatprep.subr.mxu0 0.0
        %2833 = vmatpush1.msra.mxu0 0.0
        %2834 = vmatprep.subr.mxu0 0.0
        %2835 = vmatpush1.msra.mxu0 0.0
        %2836 = vmatprep.subr.mxu0 0.0
        %2837 = vmatpush1.msra.mxu0 0.0
        %2838 = vmatprep.subr.mxu0 0.0
        %2839 = vmatpush1.msra.mxu0 0.0
        %2840 = vmatprep.subr.mxu0 0.0
        %2841 = vmatpush1.msra.mxu0 0.0
        %2842 = vmatprep.subr.mxu0 0.0
        %2843 = vmatpush1.msra.mxu0 0.0
        %2844 = vmatprep.subr.mxu0 0.0
        %2845 = vmatpush1.msra.mxu0 0.0
        %2846 = vmatprep.subr.mxu0 0.0
        %2847 = vmatpush1.msra.mxu0 0.0
        %2848 = vmatprep.subr.mxu0 0.0
        %2849 = vmatpush1.msra.mxu0 0.0
        %2850 = vmatprep.subr.mxu0 0.0
        %2851 = vmatpush1.msra.mxu0 0.0
        %2852 = vmatprep.subr.mxu0 0.0
        %2853 = vmatpush1.msra.mxu0 0.0
        %2854 = vmatprep.subr.mxu0 0.0
        %2855 = vmatpush1.msra.mxu0 0.0
        %2856 = vmatprep.subr.mxu0 0.0
        %2857 = vmatpush1.msra.mxu0 0.0
        %2858 = vmatprep.subr.mxu0 0.0
        %2859 = vmatpush1.msra.mxu0 0.0
        %2860 = vmatprep.subr.mxu0 0.0
        %2861 = vmatpush1.msra.mxu0 0.0
        %2862 = vmatprep.subr.mxu0 0.0
        %2863 = vmatpush1.msra.mxu0 0.0
        %2864 = vmatprep.subr.mxu0 0.0
        %2865 = vmatpush1.msra.mxu0 0.0
        %2866 = vmatprep.subr.mxu0 0.0
        %2867 = vmatpush1.msra.mxu0 0.0
        %2868 = vmatprep.subr.mxu0 0.0
        %2869 = vmatpush1.msra.mxu0 0.0
        %2870 = vmatprep.subr.mxu0 0.0
        %2871 = vmatpush1.msra.mxu0 0.0
        %2872 = vmatprep.subr.mxu0 0.0
        %2873 = vmatpush1.msra.mxu0 0.0
        %2874 = vmatprep.mubr.f32.mxu0 0.0
        %2875 = vmatmul.mubr.f32.gmra.mrb[0].mxu0 %v2808
        %v2876 = vpop.f32.mrb[0].mxu0
        %v2877 = vadd.f32 %v2805, %v2876
        %v2878 = vpop.f32.mrb[0].mxu0
        %2879 = vdwg.mxu0
        %v2880 = vmax.f32 %v2877, 0.0
        %v2881 = vld [vmem:[%s815] sm:$0xff]
        %v2882 = vld [vmem:[%s815 + $0x8] sm:$0xff]
        %v2883 = vld [vmem:[%s815 + $0x10] sm:$0xff]
        %v2884 = vld [vmem:[%s815 + $0x18] sm:$0xff]
        %v2885 = vld [vmem:[%s815 + $0x20] sm:$0xff]
        %v2886 = vld [vmem:[%s815 + $0x28] sm:$0xff]
        %v2887 = vld [vmem:[%s815 + $0x30] sm:$0xff]
        %v2888 = vld [vmem:[%s815 + $0x38] sm:$0xff]
        %v2889 = vld [vmem:[%s818] sm:$0x1]
        %v2891 = vlaneseq
        %v2892 = vshrl.u32 %v2891, 7
        %v2893 = vsub.s32 0, %v2892
        %v2894 = vrot.slane %v2889, %v2893
        %vm2896 = vcmask 523264
        %v2898 = vsel %vm2896, %v2880, 0
        %2900 = vmatprep.subr.mxu0 0.0
        %2901 = vmatpush1.msra.mxu0 %v2881
        %2902 = vmatprep.subr.mxu0 0.0
        %2903 = vmatpush1.msra.mxu0 %v2882
        %2904 = vmatprep.subr.mxu0 0.0
        %2905 = vmatpush1.msra.mxu0 %v2883
        %2906 = vmatprep.subr.mxu0 0.0
        %2907 = vmatpush1.msra.mxu0 %v2884
        %2908 = vmatprep.subr.mxu0 0.0
        %2909 = vmatpush1.msra.mxu0 %v2885
        %2910 = vmatprep.subr.mxu0 0.0
        %2911 = vmatpush1.msra.mxu0 %v2886
        %2912 = vmatprep.subr.mxu0 0.0
        %2913 = vmatpush1.msra.mxu0 %v2887
        %2914 = vmatprep.subr.mxu0 0.0
        %2915 = vmatpush1.msra.mxu0 %v2888
        %2916 = vmatprep.subr.mxu0 0.0
        %2917 = vmatpush1.msra.mxu0 0.0
        %2918 = vmatprep.subr.mxu0 0.0
        %2919 = vmatpush1.msra.mxu0 0.0
        %2920 = vmatprep.subr.mxu0 0.0
        %2921 = vmatpush1.msra.mxu0 0.0
        %2922 = vmatprep.subr.mxu0 0.0
        %2923 = vmatpush1.msra.mxu0 0.0
        %2924 = vmatprep.subr.mxu0 0.0
        %2925 = vmatpush1.msra.mxu0 0.0
        %2926 = vmatprep.subr.mxu0 0.0
        %2927 = vmatpush1.msra.mxu0 0.0
        %2928 = vmatprep.subr.mxu0 0.0
        %2929 = vmatpush1.msra.mxu0 0.0
        %2930 = vmatprep.subr.mxu0 0.0
        %2931 = vmatpush1.msra.mxu0 0.0
        %2932 = vmatprep.subr.mxu0 0.0
        %2933 = vmatpush1.msra.mxu0 0.0
        %2934 = vmatprep.subr.mxu0 0.0
        %2935 = vmatpush1.msra.mxu0 0.0
        %2936 = vmatprep.subr.mxu0 0.0
        %2937 = vmatpush1.msra.mxu0 0.0
        %2938 = vmatprep.subr.mxu0 0.0
        %2939 = vmatpush1.msra.mxu0 0.0
        %2940 = vmatprep.subr.mxu0 0.0
        %2941 = vmatpush1.msra.mxu0 0.0
        %2942 = vmatprep.subr.mxu0 0.0
        %2943 = vmatpush1.msra.mxu0 0.0
        %2944 = vmatprep.subr.mxu0 0.0
        %2945 = vmatpush1.msra.mxu0 0.0
        %2946 = vmatprep.subr.mxu0 0.0
        %2947 = vmatpush1.msra.mxu0 0.0
        %2948 = vmatprep.subr.mxu0 0.0
        %2949 = vmatpush1.msra.mxu0 0.0
        %2950 = vmatprep.subr.mxu0 0.0
        %2951 = vmatpush1.msra.mxu0 0.0
        %2952 = vmatprep.subr.mxu0 0.0
        %2953 = vmatpush1.msra.mxu0 0.0
        %2954 = vmatprep.subr.mxu0 0.0
        %2955 = vmatpush1.msra.mxu0 0.0
        %2956 = vmatprep.subr.mxu0 0.0
        %2957 = vmatpush1.msra.mxu0 0.0
        %2958 = vmatprep.subr.mxu0 0.0
        %2959 = vmatpush1.msra.mxu0 0.0
        %2960 = vmatprep.subr.mxu0 0.0
        %2961 = vmatpush1.msra.mxu0 0.0
        %2962 = vmatprep.subr.mxu0 0.0
        %2963 = vmatpush1.msra.mxu0 0.0
        %2964 = vmatprep.mubr.f32.mxu0 0.0
        %2965 = vmatmul.mubr.f32.gmra.mrb[0].mxu0 %v2898
        %v2966 = vpop.f32.mrb[0].mxu0
        %v2967 = vadd.f32 %v2894, %v2966
        %v2968 = vpop.f32.mrb[0].mxu0
        %2969 = vdwg.mxu0
        %v2970 = vadd.f32 %v2795, %v2967
        %v2971 = vsel %vm877, %v2970, 0.0
        %2972 = vadd.xlane.f32.xlu0 %v2971
        %v2973 = vpop.xlane.xlu0 %2972
        %v2974 = vmul.f32 %v2973, %v2769
        %v2975 = vsub.f32 %v2970, %v2974
        %v2976 = vmul.f32 %v2975, %v2975
        %v2977 = vsel %vm877, %v2976, 0.0
        %2978 = vadd.xlane.f32.xlu0 %v2977
        %v2979 = vpop.xlane.xlu0 %2978
        %v2980 = vmul.f32 %v2979, %v2769
        %v2981 = vadd.f32 %v2980, 1e-05
        %v2982 = vrsqrt.pop %v2981
        %v2983 = vmul.f32 %v2975, %v2982
        %v2984 = vld [vmem:[%s821] sm:$0x1]
        %v2986 = vlaneseq
        %v2987 = vshrl.u32 %v2986, 7
        %v2988 = vsub.s32 0, %v2987
        %v2989 = vrot.slane %v2984, %v2988
        %v2991 = vmul.f32 %v2983, %v2989
        %v2992 = vld [vmem:[%s824] sm:$0x1]
        %v2994 = vlaneseq
        %v2995 = vshrl.u32 %v2994, 7
        %v2996 = vsub.s32 0, %v2995
        %v2997 = vrot.slane %v2992, %v2996
        %v2999 = vadd.f32 %v2991, %v2997
        %3000 = vst.msk [vmem:[#allocation2] sm:$0xff] %vm877, %v2999
        %p3001 = scmp.eq.s32.totalorder %s36, 1
        // Predicated region
        $region93: #{tpu_custom_call.1} parent=87 // pred_check
          %p3002 = pneg %p3001
        $region94: #{tpu_custom_call.1} parent=87 // pred_check_branch
          %3004 = sbr.rel (%p3002) target = $region96
        $region95: #{tpu_custom_call.1} parent=87 // pred_region
          %3005 = vst.msk [vmem:[%s757] sm:$0xff] %vm877, %v2999
        $region96: #{tpu_custom_call.1} parent=87 // pred_fallthru
          _
        %s3006 = sand.u32 %s493, 1
        %s3007 = scalar_lea.sflag [#allocation4], %s3006
        %s3008 = sand.u32 %s493, 1
        %s3009 = smul.addr %s3008, 8
        %s3010 = scalar_lea.vmem [#allocation3], %s3009
        // Predicated region
        $region97: #{tpu_custom_call.1} parent=87 // pred_check
          %p3011 = pneg %p503
        $region98: #{tpu_custom_call.1} parent=87 // pred_check_branch
          %3013 = sbr.rel (%p3011) target = $region100
        $region99: #{tpu_custom_call.1} parent=87 // pred_region
          %s3015 = ssub.s32 128, 128
          %3016 = vsyncadd %s3007, %s3015
          %s3017 = smul.addr %s35, 128
          %s3018 = scalar_lea.hbm %s17, %s3017
          %s3020 = sshll.u32 %s3010, 4
          %s3021 = int_to_ptr.vmem [resolvable:$true] %s3020
          %3023 = dma.vmem_to_hbm [thread:$0]  %s3021, 128, %s3018, %s3007
        $region100: #{tpu_custom_call.1} parent=87 // pred_fallthru
          _
      $region88: #{tpu_custom_call.1} parent=5 // pred_fallthru
        _
      %p3024 = scmp.le.s32.totalorder 2, %s26
      // Predicated region
      $region101: #{tpu_custom_call.1} parent=5 // pred_check
        %p3025 = pneg %p3024
      $region102: #{tpu_custom_call.1} parent=5 // pred_check_branch
        %3027 = sbr.rel (%p3025) target = $region104
      $region103: #{tpu_custom_call.1} parent=5 // pred_region
        %s3028 = ssub.s32 %s26, 2
        // Predicated region
        $region105: #{tpu_custom_call.1} parent=103 // pred_check
          %p3029 = pneg %p509
        $region106: #{tpu_custom_call.1} parent=103 // pred_check_branch
          %3031 = sbr.rel (%p3029) target = $region108
        $region107: #{tpu_custom_call.1} parent=103 // pred_region
          %s3032 = sand.u32 %s494, 1
          %s3033 = scalar_lea.sflag [#allocation4], %s3032
          %s3034 = sand.u32 %s494, 1
          %s3035 = smul.addr %s3034, 8
          %s3036 = scalar_lea.vmem [#allocation3], %s3035
          %3037 = dma.done %s3033, 128
        $region108: #{tpu_custom_call.1} parent=103 // pred_fallthru
          _
      $region104: #{tpu_custom_call.1} parent=5 // pred_fallthru
        _
    $region6: #{tpu_custom_call.1} parent=1 // loop_footer
      %s30 = sadd.s32 1, %s26
    $region7: #{tpu_custom_call.1} parent=1 // loop_footer_branch
      %25 = sbr.rel target = $region3
    $region8: #{tpu_custom_call.1} parent=1 // loop_exit
      _
    %3038 = vsyncpa [#allocation4], 1
    %s3039 = scalar_lea.sflag [#allocation4], 1
    %3040 = vsyncpa %s3039, 1

</llo_original>
